<compile_context>
chip_gen: v7x
topology: tpu7x:2x2x1
jax: 0.10.0
libtpu: 0.0.40
codegen_flags: <defaults>
</compile_context>

<pallas_src>
import functools

import numpy as np

import jax
import jax.numpy as jnp
from jax.experimental import pallas as pl
from jax.experimental.pallas import tpu as pltpu

_LANE = 128


def _round_up(x, m):
    return ((x + m - 1) // m) * m


# --------------------------------------------------------------------------- #
# Kernel
# --------------------------------------------------------------------------- #
def _cnn_highway_kernel(*refs, widths, group_sizes, num_highway, proj_after_cnn,
                        hw_dim, batch_tile, seq_len, input_dim, use_roll):
    nG = len(widths)
    it = iter(refs)
    x_ref = next(it)                                    # (Bt, L, D)      bf16
    wconv = [next(it) for _ in range(nG)]               # (w, D, Ng)      bf16
    bconv = [next(it) for _ in range(nG)]               # (1, Ng)         f32
    wh = [next(it) for _ in range(num_highway)]         # (Hd, 2*Hd)      bf16
    bh = [next(it) for _ in range(num_highway)]         # (1, 2*Hd)       f32
    wp_ref = next(it)                                   # (F_pad, O_pad)  bf16
    bp_ref = next(it)                                   # (1, O_pad)      f32
    out_ref = next(it)                                  # (Bt, O_pad)     f32

    Bt, L, D = batch_tile, seq_len, input_dim
    # One dense 2-D bf16 MXU operand shared by every conv tap
    # (the reshape is a free relayout when L is a multiple of 8 sublanes).
    x2 = x_ref[...].reshape(Bt * L, D)

    pooled = []
    for g, (w, ng) in enumerate(zip(widths, group_sizes)):
        T = L - w + 1
        acc = None
        for k in range(w):                              # static, tiny tap loop
            yk = jnp.dot(x2, wconv[g][k],
                         preferred_element_type=jnp.float32).reshape(Bt, L, ng)
            if use_roll:
                # Align tap k with the output time axis on the XLU (no unaligned
                # VMEM slice / relayout copy).  Wrapped tail is masked below.
                if k:
                    yk = pltpu.roll(yk, shift=L - k, axis=1)
            else:
                yk = yk[:, k:k + T, :]                  # fallback: valid-window slice
            acc = yk if acc is None else acc + yk
        if use_roll and w > 1:
            t_idx = jax.lax.broadcasted_iota(jnp.int32, (Bt, L, ng), 1)
            acc = jnp.where(t_idx < T, acc, -jnp.inf)   # invalid tail must be -inf
        # Conv bias is constant over time, so it commutes with the max.
        p = jnp.max(acc, axis=1) + bconv[g][...]        # (Bt, ng)
        pooled.append(jnp.maximum(p, 0.0))              # relu
    # Every chunk is a 128-lane multiple -> lane-aligned concat.
    h = pooled[0] if nG == 1 else jnp.concatenate(pooled, axis=-1)   # (Bt, F_pad)

    wp = wp_ref[...]
    bp = bp_ref[...]

    def dense(v, w_, b_):
        return jnp.dot(v.astype(jnp.bfloat16), w_,
                       preferred_element_type=jnp.float32) + b_

    if proj_after_cnn:
        h = dense(h, wp, bp)                            # (Bt, O_pad)

    Hd = hw_dim
    for j in range(num_highway):
        z = dense(h, wh[j][...], bh[j][...])            # fused o|g, (Bt, 2*Hd)
        o = jnp.maximum(z[:, :Hd], 0.0)                 # relu branch (128-aligned slice)
        gate = jax.nn.sigmoid(z[:, Hd:])
        h = gate * h + (1.0 - gate) * o

    if not proj_after_cnn:
        h = dense(h, wp, bp)                            # (Bt, O_pad)

    # TODO(synk): layer_norm=True and non-relu activations are not in the default
    # config and are not implemented (asserted off in prepare_cnn_highway_params).
    out_ref[...] = h.astype(out_ref.dtype)


# --------------------------------------------------------------------------- #
# One-time host-side weight packing (hoisted out of the per-call path)
# --------------------------------------------------------------------------- #
def prepare_cnn_highway_params(params, *, filters, input_dim, num_highway=1,
                               projection_location="after_highway",
                               activation="relu", layer_norm=False):
    """Pack PyTorch-layout weights into the kernel layout.  Call once, reuse.

    Filters are grouped per width; each group's channels (and the projection
    output) are zero-padded to a multiple of 128 lanes, and the highway / proj
    weights are permuted + zero-padded to match, so padded lanes stay exactly 0.
    """
    assert projection_location in ("after_cnn", "after_highway")
    assert activation == "relu", "only the default relu activation is implemented"
    assert not layer_norm, "layer_norm=True is not implemented"

    filters = [(int(w), int(n)) for w, n in filters]
    D = int(input_dim)
    F = sum(n for _, n in filters)
    O = int(params["proj_w"].shape[0])
    O_pad = _round_up(O, _LANE)

    widths = []
    for w, _ in filters:
        if w not in widths:
            widths.append(w)
    offs = np.cumsum([0] + [n for _, n in filters])

    conv_w, conv_b, group_sizes = [], [], []
    perm, pos = [], []        # grouped real channel -> (original F index, padded position)
    cur = 0
    for w in widths:
        idxs = [i for i, (wi, _) in enumerate(filters) if wi == w]
        ng = sum(filters[i][1] for i in idxs)
        ng_pad = _round_up(ng, _LANE)
        Wg = jnp.zeros((w, D, ng_pad), jnp.float32)
        bg = jnp.zeros((ng_pad,), jnp.float32)
        c = 0
        for i in idxs:
            n_i = filters[i][1]
            Wi = jnp.transpose(jnp.asarray(params["conv_w"][i], jnp.float32),
                               (2, 1, 0))               # (n, D, w) -> (w, D, n)
            Wg = Wg.at[:, :, c:c + n_i].set(Wi)
            bg = bg.at[c:c + n_i].set(jnp.asarray(params["conv_b"][i], jnp.float32))
            perm.extend(range(int(offs[i]), int(offs[i + 1])))
            pos.extend(range(cur + c, cur + c + n_i))
            c += n_i
        conv_w.append(Wg.astype(jnp.bfloat16))
        conv_b.append(bg.reshape(1, ng_pad))
        group_sizes.append(ng_pad)
        cur += ng_pad
    F_pad = cur
    perm = np.asarray(perm, np.int64)
    pos_j = jnp.asarray(np.asarray(pos, np.int64))

    # proj: torch (O, F) -> kernel (F_pad, O_pad); real rows scattered into the
    # grouped/padded layout, padded rows & columns are zero.
    wp = jnp.asarray(params["proj_w"], jnp.float32).T                 # (F, O)
    wp_rows = jnp.zeros((F_pad, O), jnp.float32).at[pos_j].set(wp[perm])
    wp_pad = jnp.zeros((F_pad, O_pad), jnp.float32).at[:, :O].set(wp_rows)
    bp_pad = jnp.zeros((1, O_pad), jnp.float32).at[:, :O].set(
        jnp.asarray(params["proj_b"], jnp.float32).reshape(1, O))

    after_cnn = projection_location == "after_cnn"
    hd_raw = O if after_cnn else F
    hw_dim = O_pad if after_cnn else F_pad

    if after_cnn:
        def pad_mat(Wx):      # (O, O) -> (O_pad, O_pad)
            return jnp.zeros((hw_dim, hw_dim), jnp.float32).at[:hd_raw, :hd_raw].set(Wx)

        def pad_vec(bx):
            return jnp.zeros((hw_dim,), jnp.float32).at[:hd_raw].set(bx)
    else:
        def pad_mat(Wx):      # (F, F) -> (F_pad, F_pad), both axes in grouped layout
            Wx = Wx[perm][:, perm]
            return jnp.zeros((hw_dim, hw_dim), jnp.float32).at[
                pos_j[:, None], pos_j[None, :]].set(Wx)

        def pad_vec(bx):
            return jnp.zeros((hw_dim,), jnp.float32).at[pos_j].set(bx[perm])

    hw_w, hw_b = [], []
    for j in range(num_highway):
        W = jnp.asarray(params["hw_w"][j], jnp.float32)     # (2*hd_raw, hd_raw)
        b = jnp.asarray(params["hw_b"][j], jnp.float32)     # (2*hd_raw,)
        Wo = pad_mat(W[:hd_raw].T)                          # kernel layout (in, out)
        Wg_ = pad_mat(W[hd_raw:].T)
        bo = pad_vec(b[:hd_raw])
        bg_ = pad_vec(b[hd_raw:])
        hw_w.append(jnp.concatenate([Wo, Wg_], axis=1).astype(jnp.bfloat16))
        hw_b.append(jnp.concatenate([bo, bg_]).reshape(1, 2 * hw_dim))

    return dict(widths=tuple(widths), group_sizes=tuple(group_sizes),
                input_dim=D, F_pad=F_pad, O=O, O_pad=O_pad, hw_dim=hw_dim,
                num_highway=int(num_highway), after_cnn=after_cnn,
                conv_w=conv_w, conv_b=conv_b, hw_w=hw_w, hw_b=hw_b,
                wp=wp_pad.astype(jnp.bfloat16), bp=bp_pad)


# --------------------------------------------------------------------------- #
# VMEM budgeting
# --------------------------------------------------------------------------- #
def _vmem_estimate(Bt, L, D, group_sizes, F_pad, O_pad, wbytes):
    x_b = 2 * Bt * L * D * 2                       # bf16 x, double-buffered
    acc_b = 2 * Bt * L * max(group_sizes) * 4      # widest per-group acc + matmul result
    act_b = 4 * Bt * max(F_pad, 2 * O_pad) * 4     # pooled / h / z temporaries
    out_b = 2 * Bt * O_pad * 4                     # f32 out, double-buffered
    return x_b + wbytes + acc_b + act_b + out_b


def _pick_batch_tile(B, L, D, group_sizes, F_pad, O_pad, wbytes, budget):
    # Largest batch tile whose working set fits the budget (whole batch if it fits);
    # sub-batch tiles are kept to multiples of 8 sublanes.
    cands = [B] + [t for t in range(B - B % 8, 0, -8) if t and B % t == 0]
    for t in cands:
        if _vmem_estimate(t, L, D, group_sizes, F_pad, O_pad, wbytes) <= budget:
            return t
    return cands[-1]


# --------------------------------------------------------------------------- #
# Wrapper
# --------------------------------------------------------------------------- #
def cnn_highway(x, mask, packed, *, batch_tile=None, vmem_budget_bytes=24 * 2**20):
    """x: (B, L, D).  `mask` is accepted for API parity but - exactly like the
    PyTorch CnnHighway.forward - unused.  `packed` comes from
    prepare_cnn_highway_params (one-time weight packing, hoisted out of this path)."""
    del mask
    B, L, D = x.shape
    assert D == packed["input_dim"]
    widths, group_sizes = packed["widths"], packed["group_sizes"]
    assert max(widths) <= L, "filter width larger than sequence length"
    O, O_pad, F_pad, Hd = packed["O"], packed["O_pad"], packed["F_pad"], packed["hw_dim"]
    NH, after_cnn = packed["num_highway"], packed["after_cnn"]

    # bf16 operand: half the HBM/VMEM traffic for x and bf16-native MXU rate.
    xb = x.astype(jnp.bfloat16)

    weights = (list(packed["conv_w"]) + list(packed["conv_b"])
               + list(packed["hw_w"]) + list(packed["hw_b"])
               + [packed["wp"], packed["bp"]])
    wbytes = sum(int(a.size) * a.dtype.itemsize for a in weights)

    if batch_tile is None:
        Bt = _pick_batch_tile(B, L, D, group_sizes, F_pad, O_pad, wbytes,
                              vmem_budget_bytes)
    else:
        Bt = int(batch_tile)
    assert B % Bt == 0
    nb = B // Bt

    # Advisory cost estimate so XLA can overlap neighbouring ops with the call.
    try:
        conv_flops = 2 * B * L * D * sum(w * n for w, n in zip(widths, group_sizes))
        flops = conv_flops + NH * 2 * B * Hd * (2 * Hd) + 2 * B * F_pad * O_pad
        cost = pl.CostEstimate(flops=int(flops), transcendentals=int(B * Hd * NH),
                               bytes_accessed=int(xb.size * 2 + wbytes + B * O_pad * 4))
    except Exception:                                   # noqa: BLE001
        cost = None

    vmem_est = _vmem_estimate(Bt, L, D, group_sizes, F_pad, O_pad, wbytes)
    cparams = pltpu.CompilerParams(
        dimension_semantics=("parallel",),
        vmem_limit_bytes=int(min(max(2 * vmem_est, 32 * 2**20), 64 * 2**20)))

    def build(single_buffer_weights, use_roll):
        kernel = functools.partial(
            _cnn_highway_kernel, widths=widths, group_sizes=group_sizes,
            num_highway=NH, proj_after_cnn=after_cnn, hw_dim=Hd,
            batch_tile=Bt, seq_len=L, input_dim=D, use_roll=use_roll)

        def const_spec(a):
            zeros = (0,) * a.ndim
            if single_buffer_weights:
                # Constant index map -> the block never changes; single-buffer it to
                # halve the weights' VMEM footprint (matters on v7x's 64 MiB VMEM).
                return pl.BlockSpec(a.shape, lambda b, _z=zeros: _z,
                                    pipeline_mode=pl.Buffered(1))
            return pl.BlockSpec(a.shape, lambda b, _z=zeros: _z)

        in_specs = ([pl.BlockSpec((Bt, L, D), lambda b: (b, 0, 0))]
                    + [const_spec(a) for a in weights])
        return pl.pallas_call(
            kernel,
            out_shape=jax.ShapeDtypeStruct((B, O_pad), jnp.float32),
            grid_spec=pltpu.PrefetchScalarGridSpec(
                num_scalar_prefetch=0, grid=(nb,),
                in_specs=in_specs,
                out_specs=pl.BlockSpec((Bt, O_pad), lambda b: (b, 0))),
            compiler_params=cparams,
            cost_estimate=cost)

    # Feature ladder: prefer single-buffered weights + XLU roll; degrade gracefully
    # if this jax/libtpu build rejects either (all variants compute the same result).
    out, last_err = None, None
    for single_buf, use_roll in ((True, True), (False, True),
                                 (True, False), (False, False)):
        try:
            out = build(single_buf, use_roll)(xb, *weights)
            break
        except Exception as e:                          # noqa: BLE001
            last_err = e
    if out is None:
        raise last_err

    return out[:, :O] if O_pad != O else out


# --------------------------------------------------------------------------- #
# Pure-JAX reference (mirror of the PyTorch forward; relu, no layer_norm)
# --------------------------------------------------------------------------- #
def _reference(x, params, *, filters, num_highway, projection_location):
    outs = []
    for (w, n), Wc, bc in zip(filters, params["conv_w"], params["conv_b"]):
        T = x.shape[1] - w + 1
        S = jnp.stack([x[:, t:t + w, :] for t in range(T)], axis=1)   # (B, T, w, D)
        c = jnp.einsum("btkd,ndk->btn", S, Wc) + bc[None, None, :]    # Conv1d (valid)
        outs.append(jax.nn.relu(jnp.max(c, axis=1)))                  # max over time
    h = jnp.concatenate(outs, axis=-1)

    def proj(v):
        return v @ params["proj_w"].T + params["proj_b"]

    if projection_location == "after_cnn":
        h = proj(h)
    Fd = h.shape[-1]
    for Wh, bh in zip(params["hw_w"], params["hw_b"]):
        z = h @ Wh.T + bh
        o = jax.nn.relu(z[:, :Fd])
        g = jax.nn.sigmoid(z[:, Fd:])
        h = g * h + (1.0 - g) * o
    if projection_location == "after_highway":
        h = proj(h)
    return h


if __name__ == "__main__":
    # Small config: batch=2, seq=8, input_dim=32, filters=[(2,16),(3,16)] -> F=32,
    # output_dim=32, num_highway=1, activation='relu', layer_norm=False.
    B, L, D = 2, 8, 32
    filters = [(2, 16), (3, 16)]
    F = sum(n for _, n in filters)      # 32
    O = 32
    NH = 1

    keys = iter(jax.random.split(jax.random.PRNGKey(0), 16))

    conv_w, conv_b = [], []
    for (w, n) in filters:
        std = (2.0 / (D * w)) ** 0.5    # kaiming-ish
        conv_w.append(std * jax.random.normal(next(keys), (n, D, w), jnp.float32))
        conv_b.append(0.1 * jax.random.normal(next(keys), (n,), jnp.float32))

    hw_scale = 1.0 / F ** 0.5
    hw_w = [hw_scale * jax.random.normal(next(keys), (2 * F, F), jnp.float32)
            for _ in range(NH)]
    hw_b = [jnp.concatenate([jnp.zeros((F,), jnp.float32),
                             jnp.ones((F,), jnp.float32)]) for _ in range(NH)]

    proj_w = hw_scale * jax.random.normal(next(keys), (O, F), jnp.float32)
    proj_b = 0.1 * jax.random.normal(next(keys), (O,), jnp.float32)

    params = dict(conv_w=conv_w, conv_b=conv_b, hw_w=hw_w, hw_b=hw_b,
                  proj_w=proj_w, proj_b=proj_b)

    x = jax.random.normal(next(keys), (B, L, D), jnp.float32)
    mask = jnp.ones((B, L), jnp.float32)     # unused by the forward (matches PyTorch)

    # The kernel feeds bf16 operands to the MXU (f32 accumulation); compare against
    # a reference built from bf16-rounded inputs/weights so only small activation
    # rounding / accumulation-order differences remain.
    _r = lambda a: jnp.asarray(a, jnp.float32).astype(jnp.bfloat16).astype(jnp.float32)
    params_r = jax.tree_util.tree_map(_r, params)
    x_r = _r(x)

    # F == O here, so the same params exercise both projection locations.
    for loc in ("after_highway", "after_cnn"):
        packed = prepare_cnn_highway_params(params, filters=filters, input_dim=D,
                                            num_highway=NH, projection_location=loc)
        out = jax.block_until_ready(cnn_highway(x, mask, packed))
        ref = _reference(x_r, params_r, filters=filters, num_highway=NH,
                         projection_location=loc)
        assert out.shape == (B, O)
        err = float(jnp.max(jnp.abs(out - ref)))
        assert err < 4e-2, f"{loc}: max err {err}"

    # Multi-block grid: exercises the pipelined "parallel" batch axis (both
    # TensorCores on v7x) and the resident single-buffered weight specs.
    B2 = 16
    x2 = jax.random.normal(next(keys), (B2, L, D), jnp.float32)
    packed = prepare_cnn_highway_params(params, filters=filters, input_dim=D,
                                        num_highway=NH,
                                        projection_location="after_highway")
    out2 = jax.block_until_ready(
        cnn_highway(x2, jnp.ones((B2, L), jnp.float32), packed, batch_tile=8))
    ref2 = _reference(_r(x2), params_r, filters=filters, num_highway=NH,
                      projection_location="after_highway")
    assert out2.shape == (B2, O)
    err2 = float(jnp.max(jnp.abs(out2 - ref2)))
    assert err2 < 4e-2, f"multi-block: max err {err2}"

    print("KERNEL_OK")
</pallas_src>

<mosaic_0001>
module attributes {stable_mosaic.version = 11 : i64} {
  func.func @_cnn_highway_kernel(%arg0: i32, %arg1: memref<2x8x32xbf16, #tpu.memory_space<vmem>>, %arg2: memref<2x32x128xbf16, #tpu.memory_space<vmem>>, %arg3: memref<3x32x128xbf16, #tpu.memory_space<vmem>>, %arg4: memref<1x128xf32, #tpu.memory_space<vmem>>, %arg5: memref<1x128xf32, #tpu.memory_space<vmem>>, %arg6: memref<256x512xbf16, #tpu.memory_space<vmem>>, %arg7: memref<1x512xf32, #tpu.memory_space<vmem>>, %arg8: memref<256x128xbf16, #tpu.memory_space<vmem>>, %arg9: memref<1x128xf32, #tpu.memory_space<vmem>>, %arg10: memref<2x128xf32, #tpu.memory_space<vmem>>) attributes {dimension_semantics = [#tpu.dimension_semantics<parallel>], iteration_bounds = array<i64: 1>, scalar_prefetch = 0 : i64, scratch_operands = 0 : i64, tpu.core_type = #tpu.core_type<tc>, window_params = [{transform_indices = @transform_0, window_bounds = array<i64: 2, 8, 32>}, {pipeline_mode = #tpu.pipeline_mode<synchronous>, transform_indices = @transform_1, window_bounds = array<i64: 2, 32, 128>}, {pipeline_mode = #tpu.pipeline_mode<synchronous>, transform_indices = @transform_2, window_bounds = array<i64: 3, 32, 128>}, {pipeline_mode = #tpu.pipeline_mode<synchronous>, transform_indices = @transform_3, window_bounds = array<i64: 1, 128>}, {pipeline_mode = #tpu.pipeline_mode<synchronous>, transform_indices = @transform_4, window_bounds = array<i64: 1, 128>}, {pipeline_mode = #tpu.pipeline_mode<synchronous>, transform_indices = @transform_5, window_bounds = array<i64: 256, 512>}, {pipeline_mode = #tpu.pipeline_mode<synchronous>, transform_indices = @transform_6, window_bounds = array<i64: 1, 512>}, {pipeline_mode = #tpu.pipeline_mode<synchronous>, transform_indices = @transform_7, window_bounds = array<i64: 256, 128>}, {pipeline_mode = #tpu.pipeline_mode<synchronous>, transform_indices = @transform_8, window_bounds = array<i64: 1, 128>}, {transform_indices = @transform_9, window_bounds = array<i64: 2, 128>}]} {
    %c0 = arith.constant 0 : index
    %c0_0 = arith.constant 0 : index
    %c0_1 = arith.constant 0 : index
    %0 = vector.load %arg1[%c0, %c0_0, %c0_1] : memref<2x8x32xbf16, #tpu.memory_space<vmem>>, vector<2x8x32xbf16>
    %1 = vector.shape_cast %0 : vector<2x8x32xbf16> to vector<16x32xbf16>
    %c0_2 = arith.constant 0 : index
    %c0_3 = arith.constant 0 : index
    %c0_4 = arith.constant 0 : index
    %2 = vector.load %arg2[%c0_2, %c0_3, %c0_4] : memref<2x32x128xbf16, #tpu.memory_space<vmem>>, vector<1x32x128xbf16>
    %3 = vector.shape_cast %2 : vector<1x32x128xbf16> to vector<32x128xbf16>
    %cst = arith.constant dense<0.000000e+00> : vector<16x128xf32>
    %4 = tpu.matmul %1, %3, %cst {dimension_numbers = #tpu.dot_dimension_numbers<[1], [0], [0], [1], [0, 0, 1, 1], [], []>} : vector<16x32xbf16>, vector<32x128xbf16>, vector<16x128xf32> -> vector<16x128xf32>
    %5 = vector.shape_cast %4 : vector<16x128xf32> to vector<2x8x128xf32>
    %c1 = arith.constant 1 : index
    %c0_5 = arith.constant 0 : index
    %c0_6 = arith.constant 0 : index
    %6 = vector.load %arg2[%c1, %c0_5, %c0_6] : memref<2x32x128xbf16, #tpu.memory_space<vmem>>, vector<1x32x128xbf16>
    %7 = vector.shape_cast %6 : vector<1x32x128xbf16> to vector<32x128xbf16>
    %cst_7 = arith.constant dense<0.000000e+00> : vector<16x128xf32>
    %8 = tpu.matmul %1, %7, %cst_7 {dimension_numbers = #tpu.dot_dimension_numbers<[1], [0], [0], [1], [0, 0, 1, 1], [], []>} : vector<16x32xbf16>, vector<32x128xbf16>, vector<16x128xf32> -> vector<16x128xf32>
    %9 = vector.shape_cast %8 : vector<16x128xf32> to vector<2x8x128xf32>
    %c7_i32 = arith.constant 7 : i32
    %10 = tpu.dynamic_rotate %9 by %c7_i32 dim 1 : vector<2x8x128xf32>, i32 -> vector<2x8x128xf32>
    %11 = arith.addf %5, %10 : vector<2x8x128xf32>
    %12 = tpu.iota {dimensions = array<i32: 1>} : vector<2x8x128xi32>
    %c7_i32_8 = arith.constant 7 : i32
    %13 = vector.broadcast %c7_i32_8 : i32 to vector<2x8x128xi32>
    %14 = arith.cmpi slt, %12, %13 : vector<2x8x128xi32>
    %cst_9 = arith.constant 0xFF800000 : f32
    %15 = vector.broadcast %cst_9 : f32 to vector<2x8x128xf32>
    %16 = arith.select %14, %11, %15 : vector<2x8x128xi1>, vector<2x8x128xf32>
    %cst_10 = arith.constant dense<0xFF800000> : vector<2x128xf32>
    %17 = vector.multi_reduction <maximumf>, %16, %cst_10 [1] : vector<2x8x128xf32> to vector<2x128xf32>
    %c0_11 = arith.constant 0 : index
    %c0_12 = arith.constant 0 : index
    %18 = vector.load %arg4[%c0_11, %c0_12] : memref<1x128xf32, #tpu.memory_space<vmem>>, vector<1x128xf32>
    %19 = vector.broadcast %18 : vector<1x128xf32> to vector<2x128xf32>
    %20 = arith.addf %17, %19 : vector<2x128xf32>
    %cst_13 = arith.constant 0.000000e+00 : f32
    %21 = vector.broadcast %cst_13 : f32 to vector<2x128xf32>
    %22 = arith.maximumf %20, %21 : vector<2x128xf32>
    %c0_14 = arith.constant 0 : index
    %c0_15 = arith.constant 0 : index
    %c0_16 = arith.constant 0 : index
    %23 = vector.load %arg3[%c0_14, %c0_15, %c0_16] : memref<3x32x128xbf16, #tpu.memory_space<vmem>>, vector<1x32x128xbf16>
    %24 = vector.shape_cast %23 : vector<1x32x128xbf16> to vector<32x128xbf16>
    %cst_17 = arith.constant dense<0.000000e+00> : vector<16x128xf32>
    %25 = tpu.matmul %1, %24, %cst_17 {dimension_numbers = #tpu.dot_dimension_numbers<[1], [0], [0], [1], [0, 0, 1, 1], [], []>} : vector<16x32xbf16>, vector<32x128xbf16>, vector<16x128xf32> -> vector<16x128xf32>
    %26 = vector.shape_cast %25 : vector<16x128xf32> to vector<2x8x128xf32>
    %c1_18 = arith.constant 1 : index
    %c0_19 = arith.constant 0 : index
    %c0_20 = arith.constant 0 : index
    %27 = vector.load %arg3[%c1_18, %c0_19, %c0_20] : memref<3x32x128xbf16, #tpu.memory_space<vmem>>, vector<1x32x128xbf16>
    %28 = vector.shape_cast %27 : vector<1x32x128xbf16> to vector<32x128xbf16>
    %cst_21 = arith.constant dense<0.000000e+00> : vector<16x128xf32>
    %29 = tpu.matmul %1, %28, %cst_21 {dimension_numbers = #tpu.dot_dimension_numbers<[1], [0], [0], [1], [0, 0, 1, 1], [], []>} : vector<16x32xbf16>, vector<32x128xbf16>, vector<16x128xf32> -> vector<16x128xf32>
    %30 = vector.shape_cast %29 : vector<16x128xf32> to vector<2x8x128xf32>
    %c7_i32_22 = arith.constant 7 : i32
    %31 = tpu.dynamic_rotate %30 by %c7_i32_22 dim 1 : vector<2x8x128xf32>, i32 -> vector<2x8x128xf32>
    %32 = arith.addf %26, %31 : vector<2x8x128xf32>
    %c2 = arith.constant 2 : index
    %c0_23 = arith.constant 0 : index
    %c0_24 = arith.constant 0 : index
    %33 = vector.load %arg3[%c2, %c0_23, %c0_24] : memref<3x32x128xbf16, #tpu.memory_space<vmem>>, vector<1x32x128xbf16>
    %34 = vector.shape_cast %33 : vector<1x32x128xbf16> to vector<32x128xbf16>
    %cst_25 = arith.constant dense<0.000000e+00> : vector<16x128xf32>
    %35 = tpu.matmul %1, %34, %cst_25 {dimension_numbers = #tpu.dot_dimension_numbers<[1], [0], [0], [1], [0, 0, 1, 1], [], []>} : vector<16x32xbf16>, vector<32x128xbf16>, vector<16x128xf32> -> vector<16x128xf32>
    %36 = vector.shape_cast %35 : vector<16x128xf32> to vector<2x8x128xf32>
    %c6_i32 = arith.constant 6 : i32
    %37 = tpu.dynamic_rotate %36 by %c6_i32 dim 1 : vector<2x8x128xf32>, i32 -> vector<2x8x128xf32>
    %38 = arith.addf %32, %37 : vector<2x8x128xf32>
    %39 = tpu.iota {dimensions = array<i32: 1>} : vector<2x8x128xi32>
    %c6_i32_26 = arith.constant 6 : i32
    %40 = vector.broadcast %c6_i32_26 : i32 to vector<2x8x128xi32>
    %41 = arith.cmpi slt, %39, %40 : vector<2x8x128xi32>
    %cst_27 = arith.constant 0xFF800000 : f32
    %42 = vector.broadcast %cst_27 : f32 to vector<2x8x128xf32>
    %43 = arith.select %41, %38, %42 : vector<2x8x128xi1>, vector<2x8x128xf32>
    %cst_28 = arith.constant dense<0xFF800000> : vector<2x128xf32>
    %44 = vector.multi_reduction <maximumf>, %43, %cst_28 [1] : vector<2x8x128xf32> to vector<2x128xf32>
    %c0_29 = arith.constant 0 : index
    %c0_30 = arith.constant 0 : index
    %45 = vector.load %arg5[%c0_29, %c0_30] : memref<1x128xf32, #tpu.memory_space<vmem>>, vector<1x128xf32>
    %46 = vector.broadcast %45 : vector<1x128xf32> to vector<2x128xf32>
    %47 = arith.addf %44, %46 : vector<2x128xf32>
    %cst_31 = arith.constant 0.000000e+00 : f32
    %48 = vector.broadcast %cst_31 : f32 to vector<2x128xf32>
    %49 = arith.maximumf %47, %48 : vector<2x128xf32>
    %50 = tpu.concatenate %22, %49 in 1 : vector<2x128xf32>, vector<2x128xf32> -> vector<2x256xf32>
    %c0_32 = arith.constant 0 : index
    %c0_33 = arith.constant 0 : index
    %51 = vector.load %arg8[%c0_32, %c0_33] : memref<256x128xbf16, #tpu.memory_space<vmem>>, vector<256x128xbf16>
    %c0_34 = arith.constant 0 : index
    %c0_35 = arith.constant 0 : index
    %52 = vector.load %arg9[%c0_34, %c0_35] : memref<1x128xf32, #tpu.memory_space<vmem>>, vector<1x128xf32>
    %c0_36 = arith.constant 0 : index
    %c0_37 = arith.constant 0 : index
    %53 = vector.load %arg6[%c0_36, %c0_37] : memref<256x512xbf16, #tpu.memory_space<vmem>>, vector<256x512xbf16>
    %c0_38 = arith.constant 0 : index
    %c0_39 = arith.constant 0 : index
    %54 = vector.load %arg7[%c0_38, %c0_39] : memref<1x512xf32, #tpu.memory_space<vmem>>, vector<1x512xf32>
    %55 = arith.truncf %50 : vector<2x256xf32> to vector<2x256xbf16>
    %cst_40 = arith.constant dense<0.000000e+00> : vector<2x512xf32>
    %56 = tpu.matmul %55, %53, %cst_40 {dimension_numbers = #tpu.dot_dimension_numbers<[1], [0], [0], [1], [0, 0, 1, 1], [], []>} : vector<2x256xbf16>, vector<256x512xbf16>, vector<2x512xf32> -> vector<2x512xf32>
    %57 = vector.broadcast %54 : vector<1x512xf32> to vector<2x512xf32>
    %58 = arith.addf %56, %57 : vector<2x512xf32>
    %59 = vector.extract_strided_slice %58 {offsets = [0, 0], sizes = [2, 256], strides = [1, 1]} : vector<2x512xf32> to vector<2x256xf32>
    %cst_41 = arith.constant 0.000000e+00 : f32
    %60 = vector.broadcast %cst_41 : f32 to vector<2x256xf32>
    %61 = arith.maximumf %59, %60 : vector<2x256xf32>
    %62 = vector.extract_strided_slice %58 {offsets = [0, 256], sizes = [2, 256], strides = [1, 1]} : vector<2x512xf32> to vector<2x256xf32>
    %63 = arith.negf %62 : vector<2x256xf32>
    %64 = math.exp %63 : vector<2x256xf32>
    %cst_42 = arith.constant 1.000000e+00 : f32
    %65 = vector.broadcast %cst_42 : f32 to vector<2x256xf32>
    %66 = arith.addf %65, %64 : vector<2x256xf32>
    %67 = arith.divf %65, %66 : vector<2x256xf32>
    %68 = arith.mulf %67, %50 : vector<2x256xf32>
    %cst_43 = arith.constant 1.000000e+00 : f32
    %69 = vector.broadcast %cst_43 : f32 to vector<2x256xf32>
    %70 = arith.subf %69, %67 : vector<2x256xf32>
    %71 = arith.mulf %70, %61 : vector<2x256xf32>
    %72 = arith.addf %68, %71 : vector<2x256xf32>
    %73 = arith.truncf %72 : vector<2x256xf32> to vector<2x256xbf16>
    %cst_44 = arith.constant dense<0.000000e+00> : vector<2x128xf32>
    %74 = tpu.matmul %73, %51, %cst_44 {dimension_numbers = #tpu.dot_dimension_numbers<[1], [0], [0], [1], [0, 0, 1, 1], [], []>} : vector<2x256xbf16>, vector<256x128xbf16>, vector<2x128xf32> -> vector<2x128xf32>
    %75 = vector.broadcast %52 : vector<1x128xf32> to vector<2x128xf32>
    %76 = arith.addf %74, %75 : vector<2x128xf32>
    %c0_45 = arith.constant 0 : index
    %c0_46 = arith.constant 0 : index
    %77 = vector.load %arg10[%c0_45, %c0_46] : memref<2x128xf32, #tpu.memory_space<vmem>>, vector<2x128xf32>
    tpu.vector_store %arg10[%c0_45, %c0_46], %76 {strides = array<i32>} : memref<2x128xf32, #tpu.memory_space<vmem>>, vector<2x128xf32>,
    return
  }
  func.func @transform_0(%arg0: i32) -> (i32, i32, i32) {
    %c0_i32 = arith.constant 0 : i32
    %c0_i32_0 = arith.constant 0 : i32
    %c0_i32_1 = arith.constant 0 : i32
    return %arg0, %c0_i32, %c0_i32_0 : i32, i32, i32
  }
  func.func @transform_1(%arg0: i32) -> (i32, i32, i32) {
    %c0_i32 = arith.constant 0 : i32
    %c0_i32_0 = arith.constant 0 : i32
    %c0_i32_1 = arith.constant 0 : i32
    %c0_i32_2 = arith.constant 0 : i32
    return %c0_i32, %c0_i32_0, %c0_i32_1 : i32, i32, i32
  }
  func.func @transform_2(%arg0: i32) -> (i32, i32, i32) {
    %c0_i32 = arith.constant 0 : i32
    %c0_i32_0 = arith.constant 0 : i32
    %c0_i32_1 = arith.constant 0 : i32
    %c0_i32_2 = arith.constant 0 : i32
    return %c0_i32, %c0_i32_0, %c0_i32_1 : i32, i32, i32
  }
  func.func @transform_3(%arg0: i32) -> (i32, i32) {
    %c0_i32 = arith.constant 0 : i32
    %c0_i32_0 = arith.constant 0 : i32
    %c0_i32_1 = arith.constant 0 : i32
    return %c0_i32, %c0_i32_0 : i32, i32
  }
  func.func @transform_4(%arg0: i32) -> (i32, i32) {
    %c0_i32 = arith.constant 0 : i32
    %c0_i32_0 = arith.constant 0 : i32
    %c0_i32_1 = arith.constant 0 : i32
    return %c0_i32, %c0_i32_0 : i32, i32
  }
  func.func @transform_5(%arg0: i32) -> (i32, i32) {
    %c0_i32 = arith.constant 0 : i32
    %c0_i32_0 = arith.constant 0 : i32
    %c0_i32_1 = arith.constant 0 : i32
    return %c0_i32, %c0_i32_0 : i32, i32
  }
  func.func @transform_6(%arg0: i32) -> (i32, i32) {
    %c0_i32 = arith.constant 0 : i32
    %c0_i32_0 = arith.constant 0 : i32
    %c0_i32_1 = arith.constant 0 : i32
    return %c0_i32, %c0_i32_0 : i32, i32
  }
  func.func @transform_7(%arg0: i32) -> (i32, i32) {
    %c0_i32 = arith.constant 0 : i32
    %c0_i32_0 = arith.constant 0 : i32
    %c0_i32_1 = arith.constant 0 : i32
    return %c0_i32, %c0_i32_0 : i32, i32
  }
  func.func @transform_8(%arg0: i32) -> (i32, i32) {
    %c0_i32 = arith.constant 0 : i32
    %c0_i32_0 = arith.constant 0 : i32
    %c0_i32_1 = arith.constant 0 : i32
    return %c0_i32, %c0_i32_0 : i32, i32
  }
  func.func @transform_9(%arg0: i32) -> (i32, i32) {
    %c0_i32 = arith.constant 0 : i32
    %c0_i32_0 = arith.constant 0 : i32
    return %arg0, %c0_i32 : i32, i32
  }
}

module attributes {stable_mosaic.version = 11 : i64} {
  func.func @_cnn_highway_kernel(%arg0: i32, %arg1: memref<2x8x32xbf16, #tpu.memory_space<vmem>>, %arg2: memref<2x32x128xbf16, #tpu.memory_space<vmem>>, %arg3: memref<3x32x128xbf16, #tpu.memory_space<vmem>>, %arg4: memref<1x128xf32, #tpu.memory_space<vmem>>, %arg5: memref<1x128xf32, #tpu.memory_space<vmem>>, %arg6: memref<256x512xbf16, #tpu.memory_space<vmem>>, %arg7: memref<1x512xf32, #tpu.memory_space<vmem>>, %arg8: memref<256x128xbf16, #tpu.memory_space<vmem>>, %arg9: memref<1x128xf32, #tpu.memory_space<vmem>>, %arg10: memref<2x128xf32, #tpu.memory_space<vmem>>) attributes {dimension_semantics = [#tpu.dimension_semantics<parallel>], iteration_bounds = array<i64: 1>, scalar_prefetch = 0 : i64, scratch_operands = 0 : i64, tpu.core_type = #tpu.core_type<tc>, window_params = [{transform_indices = @transform_0, window_bounds = array<i64: 2, 8, 32>}, {pipeline_mode = #tpu.pipeline_mode<synchronous>, transform_indices = @transform_1, window_bounds = array<i64: 2, 32, 128>}, {pipeline_mode = #tpu.pipeline_mode<synchronous>, transform_indices = @transform_2, window_bounds = array<i64: 3, 32, 128>}, {pipeline_mode = #tpu.pipeline_mode<synchronous>, transform_indices = @transform_3, window_bounds = array<i64: 1, 128>}, {pipeline_mode = #tpu.pipeline_mode<synchronous>, transform_indices = @transform_4, window_bounds = array<i64: 1, 128>}, {pipeline_mode = #tpu.pipeline_mode<synchronous>, transform_indices = @transform_5, window_bounds = array<i64: 256, 512>}, {pipeline_mode = #tpu.pipeline_mode<synchronous>, transform_indices = @transform_6, window_bounds = array<i64: 1, 512>}, {pipeline_mode = #tpu.pipeline_mode<synchronous>, transform_indices = @transform_7, window_bounds = array<i64: 256, 128>}, {pipeline_mode = #tpu.pipeline_mode<synchronous>, transform_indices = @transform_8, window_bounds = array<i64: 1, 128>}, {transform_indices = @transform_9, window_bounds = array<i64: 2, 128>}]} {
    %c0 = arith.constant 0 : index
    %c0_0 = arith.constant 0 : index
    %c0_1 = arith.constant 0 : index
    %0 = vector.load %arg1[%c0, %c0_0, %c0_1] : memref<2x8x32xbf16, #tpu.memory_space<vmem>>, vector<2x8x32xbf16>
    %1 = vector.shape_cast %0 : vector<2x8x32xbf16> to vector<16x32xbf16>
    %c0_2 = arith.constant 0 : index
    %c0_3 = arith.constant 0 : index
    %c0_4 = arith.constant 0 : index
    %2 = vector.load %arg2[%c0_2, %c0_3, %c0_4] : memref<2x32x128xbf16, #tpu.memory_space<vmem>>, vector<1x32x128xbf16>
    %3 = vector.shape_cast %2 : vector<1x32x128xbf16> to vector<32x128xbf16>
    %cst = arith.constant dense<0.000000e+00> : vector<16x128xf32>
    %4 = tpu.matmul %1, %3, %cst {dimension_numbers = #tpu.dot_dimension_numbers<[1], [0], [0], [1], [0, 0, 1, 1], [], []>} : vector<16x32xbf16>, vector<32x128xbf16>, vector<16x128xf32> -> vector<16x128xf32>
    %5 = vector.shape_cast %4 : vector<16x128xf32> to vector<2x8x128xf32>
    %c1 = arith.constant 1 : index
    %c0_5 = arith.constant 0 : index
    %c0_6 = arith.constant 0 : index
    %6 = vector.load %arg2[%c1, %c0_5, %c0_6] : memref<2x32x128xbf16, #tpu.memory_space<vmem>>, vector<1x32x128xbf16>
    %7 = vector.shape_cast %6 : vector<1x32x128xbf16> to vector<32x128xbf16>
    %cst_7 = arith.constant dense<0.000000e+00> : vector<16x128xf32>
    %8 = tpu.matmul %1, %7, %cst_7 {dimension_numbers = #tpu.dot_dimension_numbers<[1], [0], [0], [1], [0, 0, 1, 1], [], []>} : vector<16x32xbf16>, vector<32x128xbf16>, vector<16x128xf32> -> vector<16x128xf32>
    %9 = vector.shape_cast %8 : vector<16x128xf32> to vector<2x8x128xf32>
    %c7_i32 = arith.constant 7 : i32
    %10 = tpu.dynamic_rotate %9 by %c7_i32 dim 1 : vector<2x8x128xf32>, i32 -> vector<2x8x128xf32>
    %11 = arith.addf %5, %10 : vector<2x8x128xf32>
    %12 = tpu.iota {dimensions = array<i32: 1>} : vector<2x8x128xi32>
    %c7_i32_8 = arith.constant 7 : i32
    %13 = vector.broadcast %c7_i32_8 : i32 to vector<2x8x128xi32>
    %14 = arith.cmpi slt, %12, %13 : vector<2x8x128xi32>
    %cst_9 = arith.constant 0xFF800000 : f32
    %15 = vector.broadcast %cst_9 : f32 to vector<2x8x128xf32>
    %16 = arith.select %14, %11, %15 : vector<2x8x128xi1>, vector<2x8x128xf32>
    %cst_10 = arith.constant dense<0xFF800000> : vector<2x128xf32>
    %17 = vector.multi_reduction <maximumf>, %16, %cst_10 [1] : vector<2x8x128xf32> to vector<2x128xf32>
    %c0_11 = arith.constant 0 : index
    %c0_12 = arith.constant 0 : index
    %18 = vector.load %arg4[%c0_11, %c0_12] : memref<1x128xf32, #tpu.memory_space<vmem>>, vector<1x128xf32>
    %19 = vector.broadcast %18 : vector<1x128xf32> to vector<2x128xf32>
    %20 = arith.addf %17, %19 : vector<2x128xf32>
    %cst_13 = arith.constant 0.000000e+00 : f32
    %21 = vector.broadcast %cst_13 : f32 to vector<2x128xf32>
    %22 = arith.maximumf %20, %21 : vector<2x128xf32>
    %c0_14 = arith.constant 0 : index
    %c0_15 = arith.constant 0 : index
    %c0_16 = arith.constant 0 : index
    %23 = vector.load %arg3[%c0_14, %c0_15, %c0_16] : memref<3x32x128xbf16, #tpu.memory_space<vmem>>, vector<1x32x128xbf16>
    %24 = vector.shape_cast %23 : vector<1x32x128xbf16> to vector<32x128xbf16>
    %cst_17 = arith.constant dense<0.000000e+00> : vector<16x128xf32>
    %25 = tpu.matmul %1, %24, %cst_17 {dimension_numbers = #tpu.dot_dimension_numbers<[1], [0], [0], [1], [0, 0, 1, 1], [], []>} : vector<16x32xbf16>, vector<32x128xbf16>, vector<16x128xf32> -> vector<16x128xf32>
    %26 = vector.shape_cast %25 : vector<16x128xf32> to vector<2x8x128xf32>
    %c1_18 = arith.constant 1 : index
    %c0_19 = arith.constant 0 : index
    %c0_20 = arith.constant 0 : index
    %27 = vector.load %arg3[%c1_18, %c0_19, %c0_20] : memref<3x32x128xbf16, #tpu.memory_space<vmem>>, vector<1x32x128xbf16>
    %28 = vector.shape_cast %27 : vector<1x32x128xbf16> to vector<32x128xbf16>
    %cst_21 = arith.constant dense<0.000000e+00> : vector<16x128xf32>
    %29 = tpu.matmul %1, %28, %cst_21 {dimension_numbers = #tpu.dot_dimension_numbers<[1], [0], [0], [1], [0, 0, 1, 1], [], []>} : vector<16x32xbf16>, vector<32x128xbf16>, vector<16x128xf32> -> vector<16x128xf32>
    %30 = vector.shape_cast %29 : vector<16x128xf32> to vector<2x8x128xf32>
    %c7_i32_22 = arith.constant 7 : i32
    %31 = tpu.dynamic_rotate %30 by %c7_i32_22 dim 1 : vector<2x8x128xf32>, i32 -> vector<2x8x128xf32>
    %32 = arith.addf %26, %31 : vector<2x8x128xf32>
    %c2 = arith.constant 2 : index
    %c0_23 = arith.constant 0 : index
    %c0_24 = arith.constant 0 : index
    %33 = vector.load %arg3[%c2, %c0_23, %c0_24] : memref<3x32x128xbf16, #tpu.memory_space<vmem>>, vector<1x32x128xbf16>
    %34 = vector.shape_cast %33 : vector<1x32x128xbf16> to vector<32x128xbf16>
    %cst_25 = arith.constant dense<0.000000e+00> : vector<16x128xf32>
    %35 = tpu.matmul %1, %34, %cst_25 {dimension_numbers = #tpu.dot_dimension_numbers<[1], [0], [0], [1], [0, 0, 1, 1], [], []>} : vector<16x32xbf16>, vector<32x128xbf16>, vector<16x128xf32> -> vector<16x128xf32>
    %36 = vector.shape_cast %35 : vector<16x128xf32> to vector<2x8x128xf32>
    %c6_i32 = arith.constant 6 : i32
    %37 = tpu.dynamic_rotate %36 by %c6_i32 dim 1 : vector<2x8x128xf32>, i32 -> vector<2x8x128xf32>
    %38 = arith.addf %32, %37 : vector<2x8x128xf32>
    %39 = tpu.iota {dimensions = array<i32: 1>} : vector<2x8x128xi32>
    %c6_i32_26 = arith.constant 6 : i32
    %40 = vector.broadcast %c6_i32_26 : i32 to vector<2x8x128xi32>
    %41 = arith.cmpi slt, %39, %40 : vector<2x8x128xi32>
    %cst_27 = arith.constant 0xFF800000 : f32
    %42 = vector.broadcast %cst_27 : f32 to vector<2x8x128xf32>
    %43 = arith.select %41, %38, %42 : vector<2x8x128xi1>, vector<2x8x128xf32>
    %cst_28 = arith.constant dense<0xFF800000> : vector<2x128xf32>
    %44 = vector.multi_reduction <maximumf>, %43, %cst_28 [1] : vector<2x8x128xf32> to vector<2x128xf32>
    %c0_29 = arith.constant 0 : index
    %c0_30 = arith.constant 0 : index
    %45 = vector.load %arg5[%c0_29, %c0_30] : memref<1x128xf32, #tpu.memory_space<vmem>>, vector<1x128xf32>
    %46 = vector.broadcast %45 : vector<1x128xf32> to vector<2x128xf32>
    %47 = arith.addf %44, %46 : vector<2x128xf32>
    %cst_31 = arith.constant 0.000000e+00 : f32
    %48 = vector.broadcast %cst_31 : f32 to vector<2x128xf32>
    %49 = arith.maximumf %47, %48 : vector<2x128xf32>
    %50 = tpu.concatenate %22, %49 in 1 : vector<2x128xf32>, vector<2x128xf32> -> vector<2x256xf32>
    %c0_32 = arith.constant 0 : index
    %c0_33 = arith.constant 0 : index
    %51 = vector.load %arg8[%c0_32, %c0_33] : memref<256x128xbf16, #tpu.memory_space<vmem>>, vector<256x128xbf16>
    %c0_34 = arith.constant 0 : index
    %c0_35 = arith.constant 0 : index
    %52 = vector.load %arg9[%c0_34, %c0_35] : memref<1x128xf32, #tpu.memory_space<vmem>>, vector<1x128xf32>
    %c0_36 = arith.constant 0 : index
    %c0_37 = arith.constant 0 : index
    %53 = vector.load %arg6[%c0_36, %c0_37] : memref<256x512xbf16, #tpu.memory_space<vmem>>, vector<256x512xbf16>
    %c0_38 = arith.constant 0 : index
    %c0_39 = arith.constant 0 : index
    %54 = vector.load %arg7[%c0_38, %c0_39] : memref<1x512xf32, #tpu.memory_space<vmem>>, vector<1x512xf32>
    %55 = arith.truncf %50 : vector<2x256xf32> to vector<2x256xbf16>
    %cst_40 = arith.constant dense<0.000000e+00> : vector<2x512xf32>
    %56 = tpu.matmul %55, %53, %cst_40 {dimension_numbers = #tpu.dot_dimension_numbers<[1], [0], [0], [1], [0, 0, 1, 1], [], []>} : vector<2x256xbf16>, vector<256x512xbf16>, vector<2x512xf32> -> vector<2x512xf32>
    %57 = vector.broadcast %54 : vector<1x512xf32> to vector<2x512xf32>
    %58 = arith.addf %56, %57 : vector<2x512xf32>
    %59 = vector.extract_strided_slice %58 {offsets = [0, 0], sizes = [2, 256], strides = [1, 1]} : vector<2x512xf32> to vector<2x256xf32>
    %cst_41 = arith.constant 0.000000e+00 : f32
    %60 = vector.broadcast %cst_41 : f32 to vector<2x256xf32>
    %61 = arith.maximumf %59, %60 : vector<2x256xf32>
    %62 = vector.extract_strided_slice %58 {offsets = [0, 256], sizes = [2, 256], strides = [1, 1]} : vector<2x512xf32> to vector<2x256xf32>
    %63 = arith.negf %62 : vector<2x256xf32>
    %64 = math.exp %63 : vector<2x256xf32>
    %cst_42 = arith.constant 1.000000e+00 : f32
    %65 = vector.broadcast %cst_42 : f32 to vector<2x256xf32>
    %66 = arith.addf %65, %64 : vector<2x256xf32>
    %67 = arith.divf %65, %66 : vector<2x256xf32>
    %68 = arith.mulf %67, %50 : vector<2x256xf32>
    %cst_43 = arith.constant 1.000000e+00 : f32
    %69 = vector.broadcast %cst_43 : f32 to vector<2x256xf32>
    %70 = arith.subf %69, %67 : vector<2x256xf32>
    %71 = arith.mulf %70, %61 : vector<2x256xf32>
    %72 = arith.addf %68, %71 : vector<2x256xf32>
    %73 = arith.truncf %72 : vector<2x256xf32> to vector<2x256xbf16>
    %cst_44 = arith.constant dense<0.000000e+00> : vector<2x128xf32>
    %74 = tpu.matmul %73, %51, %cst_44 {dimension_numbers = #tpu.dot_dimension_numbers<[1], [0], [0], [1], [0, 0, 1, 1], [], []>} : vector<2x256xbf16>, vector<256x128xbf16>, vector<2x128xf32> -> vector<2x128xf32>
    %75 = vector.broadcast %52 : vector<1x128xf32> to vector<2x128xf32>
    %76 = arith.addf %74, %75 : vector<2x128xf32>
    %c0_45 = arith.constant 0 : index
    %c0_46 = arith.constant 0 : index
    %77 = vector.load %arg10[%c0_45, %c0_46] : memref<2x128xf32, #tpu.memory_space<vmem>>, vector<2x128xf32>
    tpu.vector_store %arg10[%c0_45, %c0_46], %76 {strides = array<i32>} : memref<2x128xf32, #tpu.memory_space<vmem>>, vector<2x128xf32>,
    return
  }
  func.func @transform_0(%arg0: i32) -> (i32, i32, i32) {
    %c0_i32 = arith.constant 0 : i32
    %c0_i32_0 = arith.constant 0 : i32
    %c0_i32_1 = arith.constant 0 : i32
    return %arg0, %c0_i32, %c0_i32_0 : i32, i32, i32
  }
  func.func @transform_1(%arg0: i32) -> (i32, i32, i32) {
    %c0_i32 = arith.constant 0 : i32
    %c0_i32_0 = arith.constant 0 : i32
    %c0_i32_1 = arith.constant 0 : i32
    %c0_i32_2 = arith.constant 0 : i32
    return %c0_i32, %c0_i32_0, %c0_i32_1 : i32, i32, i32
  }
  func.func @transform_2(%arg0: i32) -> (i32, i32, i32) {
    %c0_i32 = arith.constant 0 : i32
    %c0_i32_0 = arith.constant 0 : i32
    %c0_i32_1 = arith.constant 0 : i32
    %c0_i32_2 = arith.constant 0 : i32
    return %c0_i32, %c0_i32_0, %c0_i32_1 : i32, i32, i32
  }
  func.func @transform_3(%arg0: i32) -> (i32, i32) {
    %c0_i32 = arith.constant 0 : i32
    %c0_i32_0 = arith.constant 0 : i32
    %c0_i32_1 = arith.constant 0 : i32
    return %c0_i32, %c0_i32_0 : i32, i32
  }
  func.func @transform_4(%arg0: i32) -> (i32, i32) {
    %c0_i32 = arith.constant 0 : i32
    %c0_i32_0 = arith.constant 0 : i32
    %c0_i32_1 = arith.constant 0 : i32
    return %c0_i32, %c0_i32_0 : i32, i32
  }
  func.func @transform_5(%arg0: i32) -> (i32, i32) {
    %c0_i32 = arith.constant 0 : i32
    %c0_i32_0 = arith.constant 0 : i32
    %c0_i32_1 = arith.constant 0 : i32
    return %c0_i32, %c0_i32_0 : i32, i32
  }
  func.func @transform_6(%arg0: i32) -> (i32, i32) {
    %c0_i32 = arith.constant 0 : i32
    %c0_i32_0 = arith.constant 0 : i32
    %c0_i32_1 = arith.constant 0 : i32
    return %c0_i32, %c0_i32_0 : i32, i32
  }
  func.func @transform_7(%arg0: i32) -> (i32, i32) {
    %c0_i32 = arith.constant 0 : i32
    %c0_i32_0 = arith.constant 0 : i32
    %c0_i32_1 = arith.constant 0 : i32
    return %c0_i32, %c0_i32_0 : i32, i32
  }
  func.func @transform_8(%arg0: i32) -> (i32, i32) {
    %c0_i32 = arith.constant 0 : i32
    %c0_i32_0 = arith.constant 0 : i32
    %c0_i32_1 = arith.constant 0 : i32
    return %c0_i32, %c0_i32_0 : i32, i32
  }
  func.func @transform_9(%arg0: i32) -> (i32, i32) {
    %c0_i32 = arith.constant 0 : i32
    %c0_i32_0 = arith.constant 0 : i32
    return %arg0, %c0_i32 : i32, i32
  }
}

module attributes {stable_mosaic.version = 11 : i64} {
  func.func @_cnn_highway_kernel(%arg0: i32, %arg1: memref<2x8x32xbf16, #tpu.memory_space<vmem>>, %arg2: memref<2x32x128xbf16, #tpu.memory_space<vmem>>, %arg3: memref<3x32x128xbf16, #tpu.memory_space<vmem>>, %arg4: memref<1x128xf32, #tpu.memory_space<vmem>>, %arg5: memref<1x128xf32, #tpu.memory_space<vmem>>, %arg6: memref<256x512xbf16, #tpu.memory_space<vmem>>, %arg7: memref<1x512xf32, #tpu.memory_space<vmem>>, %arg8: memref<256x128xbf16, #tpu.memory_space<vmem>>, %arg9: memref<1x128xf32, #tpu.memory_space<vmem>>, %arg10: memref<2x128xf32, #tpu.memory_space<vmem>>) attributes {dimension_semantics = [#tpu.dimension_semantics<parallel>], iteration_bounds = array<i64: 1>, scalar_prefetch = 0 : i64, scratch_operands = 0 : i64, tpu.core_type = #tpu.core_type<tc>, window_params = [{transform_indices = @transform_0, window_bounds = array<i64: 2, 8, 32>}, {pipeline_mode = #tpu.pipeline_mode<synchronous>, transform_indices = @transform_1, window_bounds = array<i64: 2, 32, 128>}, {pipeline_mode = #tpu.pipeline_mode<synchronous>, transform_indices = @transform_2, window_bounds = array<i64: 3, 32, 128>}, {pipeline_mode = #tpu.pipeline_mode<synchronous>, transform_indices = @transform_3, window_bounds = array<i64: 1, 128>}, {pipeline_mode = #tpu.pipeline_mode<synchronous>, transform_indices = @transform_4, window_bounds = array<i64: 1, 128>}, {pipeline_mode = #tpu.pipeline_mode<synchronous>, transform_indices = @transform_5, window_bounds = array<i64: 256, 512>}, {pipeline_mode = #tpu.pipeline_mode<synchronous>, transform_indices = @transform_6, window_bounds = array<i64: 1, 512>}, {pipeline_mode = #tpu.pipeline_mode<synchronous>, transform_indices = @transform_7, window_bounds = array<i64: 256, 128>}, {pipeline_mode = #tpu.pipeline_mode<synchronous>, transform_indices = @transform_8, window_bounds = array<i64: 1, 128>}, {transform_indices = @transform_9, window_bounds = array<i64: 2, 128>}]} {
    %c0 = arith.constant 0 : index
    %c0_0 = arith.constant 0 : index
    %c0_1 = arith.constant 0 : index
    %0 = vector.load %arg1[%c0, %c0_0, %c0_1] : memref<2x8x32xbf16, #tpu.memory_space<vmem>>, vector<2x8x32xbf16>
    %1 = vector.shape_cast %0 : vector<2x8x32xbf16> to vector<16x32xbf16>
    %c0_2 = arith.constant 0 : index
    %c0_3 = arith.constant 0 : index
    %c0_4 = arith.constant 0 : index
    %2 = vector.load %arg2[%c0_2, %c0_3, %c0_4] : memref<2x32x128xbf16, #tpu.memory_space<vmem>>, vector<1x32x128xbf16>
    %3 = vector.shape_cast %2 : vector<1x32x128xbf16> to vector<32x128xbf16>
    %cst = arith.constant dense<0.000000e+00> : vector<16x128xf32>
    %4 = tpu.matmul %1, %3, %cst {dimension_numbers = #tpu.dot_dimension_numbers<[1], [0], [0], [1], [0, 0, 1, 1], [], []>} : vector<16x32xbf16>, vector<32x128xbf16>, vector<16x128xf32> -> vector<16x128xf32>
    %5 = vector.shape_cast %4 : vector<16x128xf32> to vector<2x8x128xf32>
    %6 = vector.extract_strided_slice %5 {offsets = [0, 0, 0], sizes = [2, 7, 128], strides = [1, 1, 1]} : vector<2x8x128xf32> to vector<2x7x128xf32>
    %c1 = arith.constant 1 : index
    %c0_5 = arith.constant 0 : index
    %c0_6 = arith.constant 0 : index
    %7 = vector.load %arg2[%c1, %c0_5, %c0_6] : memref<2x32x128xbf16, #tpu.memory_space<vmem>>, vector<1x32x128xbf16>
    %8 = vector.shape_cast %7 : vector<1x32x128xbf16> to vector<32x128xbf16>
    %cst_7 = arith.constant dense<0.000000e+00> : vector<16x128xf32>
    %9 = tpu.matmul %1, %8, %cst_7 {dimension_numbers = #tpu.dot_dimension_numbers<[1], [0], [0], [1], [0, 0, 1, 1], [], []>} : vector<16x32xbf16>, vector<32x128xbf16>, vector<16x128xf32> -> vector<16x128xf32>
    %10 = vector.shape_cast %9 : vector<16x128xf32> to vector<2x8x128xf32>
    %11 = vector.extract_strided_slice %10 {offsets = [0, 1, 0], sizes = [2, 7, 128], strides = [1, 1, 1]} : vector<2x8x128xf32> to vector<2x7x128xf32>
    %12 = arith.addf %6, %11 : vector<2x7x128xf32>
    %cst_8 = arith.constant dense<0xFF800000> : vector<2x128xf32>
    %13 = vector.multi_reduction <maximumf>, %12, %cst_8 [1] : vector<2x7x128xf32> to vector<2x128xf32>
    %c0_9 = arith.constant 0 : index
    %c0_10 = arith.constant 0 : index
    %14 = vector.load %arg4[%c0_9, %c0_10] : memref<1x128xf32, #tpu.memory_space<vmem>>, vector<1x128xf32>
    %15 = vector.broadcast %14 : vector<1x128xf32> to vector<2x128xf32>
    %16 = arith.addf %13, %15 : vector<2x128xf32>
    %cst_11 = arith.constant 0.000000e+00 : f32
    %17 = vector.broadcast %cst_11 : f32 to vector<2x128xf32>
    %18 = arith.maximumf %16, %17 : vector<2x128xf32>
    %c0_12 = arith.constant 0 : index
    %c0_13 = arith.constant 0 : index
    %c0_14 = arith.constant 0 : index
    %19 = vector.load %arg3[%c0_12, %c0_13, %c0_14] : memref<3x32x128xbf16, #tpu.memory_space<vmem>>, vector<1x32x128xbf16>
    %20 = vector.shape_cast %19 : vector<1x32x128xbf16> to vector<32x128xbf16>
    %cst_15 = arith.constant dense<0.000000e+00> : vector<16x128xf32>
    %21 = tpu.matmul %1, %20, %cst_15 {dimension_numbers = #tpu.dot_dimension_numbers<[1], [0], [0], [1], [0, 0, 1, 1], [], []>} : vector<16x32xbf16>, vector<32x128xbf16>, vector<16x128xf32> -> vector<16x128xf32>
    %22 = vector.shape_cast %21 : vector<16x128xf32> to vector<2x8x128xf32>
    %23 = vector.extract_strided_slice %22 {offsets = [0, 0, 0], sizes = [2, 6, 128], strides = [1, 1, 1]} : vector<2x8x128xf32> to vector<2x6x128xf32>
    %c1_16 = arith.constant 1 : index
    %c0_17 = arith.constant 0 : index
    %c0_18 = arith.constant 0 : index
    %24 = vector.load %arg3[%c1_16, %c0_17, %c0_18] : memref<3x32x128xbf16, #tpu.memory_space<vmem>>, vector<1x32x128xbf16>
    %25 = vector.shape_cast %24 : vector<1x32x128xbf16> to vector<32x128xbf16>
    %cst_19 = arith.constant dense<0.000000e+00> : vector<16x128xf32>
    %26 = tpu.matmul %1, %25, %cst_19 {dimension_numbers = #tpu.dot_dimension_numbers<[1], [0], [0], [1], [0, 0, 1, 1], [], []>} : vector<16x32xbf16>, vector<32x128xbf16>, vector<16x128xf32> -> vector<16x128xf32>
    %27 = vector.shape_cast %26 : vector<16x128xf32> to vector<2x8x128xf32>
    %28 = vector.extract_strided_slice %27 {offsets = [0, 1, 0], sizes = [2, 6, 128], strides = [1, 1, 1]} : vector<2x8x128xf32> to vector<2x6x128xf32>
    %29 = arith.addf %23, %28 : vector<2x6x128xf32>
    %c2 = arith.constant 2 : index
    %c0_20 = arith.constant 0 : index
    %c0_21 = arith.constant 0 : index
    %30 = vector.load %arg3[%c2, %c0_20, %c0_21] : memref<3x32x128xbf16, #tpu.memory_space<vmem>>, vector<1x32x128xbf16>
    %31 = vector.shape_cast %30 : vector<1x32x128xbf16> to vector<32x128xbf16>
    %cst_22 = arith.constant dense<0.000000e+00> : vector<16x128xf32>
    %32 = tpu.matmul %1, %31, %cst_22 {dimension_numbers = #tpu.dot_dimension_numbers<[1], [0], [0], [1], [0, 0, 1, 1], [], []>} : vector<16x32xbf16>, vector<32x128xbf16>, vector<16x128xf32> -> vector<16x128xf32>
    %33 = vector.shape_cast %32 : vector<16x128xf32> to vector<2x8x128xf32>
    %34 = vector.extract_strided_slice %33 {offsets = [0, 2, 0], sizes = [2, 6, 128], strides = [1, 1, 1]} : vector<2x8x128xf32> to vector<2x6x128xf32>
    %35 = arith.addf %29, %34 : vector<2x6x128xf32>
    %cst_23 = arith.constant dense<0xFF800000> : vector<2x128xf32>
    %36 = vector.multi_reduction <maximumf>, %35, %cst_23 [1] : vector<2x6x128xf32> to vector<2x128xf32>
    %c0_24 = arith.constant 0 : index
    %c0_25 = arith.constant 0 : index
    %37 = vector.load %arg5[%c0_24, %c0_25] : memref<1x128xf32, #tpu.memory_space<vmem>>, vector<1x128xf32>
    %38 = vector.broadcast %37 : vector<1x128xf32> to vector<2x128xf32>
    %39 = arith.addf %36, %38 : vector<2x128xf32>
    %cst_26 = arith.constant 0.000000e+00 : f32
    %40 = vector.broadcast %cst_26 : f32 to vector<2x128xf32>
    %41 = arith.maximumf %39, %40 : vector<2x128xf32>
    %42 = tpu.concatenate %18, %41 in 1 : vector<2x128xf32>, vector<2x128xf32> -> vector<2x256xf32>
    %c0_27 = arith.constant 0 : index
    %c0_28 = arith.constant 0 : index
    %43 = vector.load %arg8[%c0_27, %c0_28] : memref<256x128xbf16, #tpu.memory_space<vmem>>, vector<256x128xbf16>
    %c0_29 = arith.constant 0 : index
    %c0_30 = arith.constant 0 : index
    %44 = vector.load %arg9[%c0_29, %c0_30] : memref<1x128xf32, #tpu.memory_space<vmem>>, vector<1x128xf32>
    %c0_31 = arith.constant 0 : index
    %c0_32 = arith.constant 0 : index
    %45 = vector.load %arg6[%c0_31, %c0_32] : memref<256x512xbf16, #tpu.memory_space<vmem>>, vector<256x512xbf16>
    %c0_33 = arith.constant 0 : index
    %c0_34 = arith.constant 0 : index
    %46 = vector.load %arg7[%c0_33, %c0_34] : memref<1x512xf32, #tpu.memory_space<vmem>>, vector<1x512xf32>
    %47 = arith.truncf %42 : vector<2x256xf32> to vector<2x256xbf16>
    %cst_35 = arith.constant dense<0.000000e+00> : vector<2x512xf32>
    %48 = tpu.matmul %47, %45, %cst_35 {dimension_numbers = #tpu.dot_dimension_numbers<[1], [0], [0], [1], [0, 0, 1, 1], [], []>} : vector<2x256xbf16>, vector<256x512xbf16>, vector<2x512xf32> -> vector<2x512xf32>
    %49 = vector.broadcast %46 : vector<1x512xf32> to vector<2x512xf32>
    %50 = arith.addf %48, %49 : vector<2x512xf32>
    %51 = vector.extract_strided_slice %50 {offsets = [0, 0], sizes = [2, 256], strides = [1, 1]} : vector<2x512xf32> to vector<2x256xf32>
    %cst_36 = arith.constant 0.000000e+00 : f32
    %52 = vector.broadcast %cst_36 : f32 to vector<2x256xf32>
    %53 = arith.maximumf %51, %52 : vector<2x256xf32>
    %54 = vector.extract_strided_slice %50 {offsets = [0, 256], sizes = [2, 256], strides = [1, 1]} : vector<2x512xf32> to vector<2x256xf32>
    %55 = arith.negf %54 : vector<2x256xf32>
    %56 = math.exp %55 : vector<2x256xf32>
    %cst_37 = arith.constant 1.000000e+00 : f32
    %57 = vector.broadcast %cst_37 : f32 to vector<2x256xf32>
    %58 = arith.addf %57, %56 : vector<2x256xf32>
    %59 = arith.divf %57, %58 : vector<2x256xf32>
    %60 = arith.mulf %59, %42 : vector<2x256xf32>
    %cst_38 = arith.constant 1.000000e+00 : f32
    %61 = vector.broadcast %cst_38 : f32 to vector<2x256xf32>
    %62 = arith.subf %61, %59 : vector<2x256xf32>
    %63 = arith.mulf %62, %53 : vector<2x256xf32>
    %64 = arith.addf %60, %63 : vector<2x256xf32>
    %65 = arith.truncf %64 : vector<2x256xf32> to vector<2x256xbf16>
    %cst_39 = arith.constant dense<0.000000e+00> : vector<2x128xf32>
    %66 = tpu.matmul %65, %43, %cst_39 {dimension_numbers = #tpu.dot_dimension_numbers<[1], [0], [0], [1], [0, 0, 1, 1], [], []>} : vector<2x256xbf16>, vector<256x128xbf16>, vector<2x128xf32> -> vector<2x128xf32>
    %67 = vector.broadcast %44 : vector<1x128xf32> to vector<2x128xf32>
    %68 = arith.addf %66, %67 : vector<2x128xf32>
    %c0_40 = arith.constant 0 : index
    %c0_41 = arith.constant 0 : index
    %69 = vector.load %arg10[%c0_40, %c0_41] : memref<2x128xf32, #tpu.memory_space<vmem>>, vector<2x128xf32>
    tpu.vector_store %arg10[%c0_40, %c0_41], %68 {strides = array<i32>} : memref<2x128xf32, #tpu.memory_space<vmem>>, vector<2x128xf32>,
    return
  }
  func.func @transform_0(%arg0: i32) -> (i32, i32, i32) {
    %c0_i32 = arith.constant 0 : i32
    %c0_i32_0 = arith.constant 0 : i32
    %c0_i32_1 = arith.constant 0 : i32
    return %arg0, %c0_i32, %c0_i32_0 : i32, i32, i32
  }
  func.func @transform_1(%arg0: i32) -> (i32, i32, i32) {
    %c0_i32 = arith.constant 0 : i32
    %c0_i32_0 = arith.constant 0 : i32
    %c0_i32_1 = arith.constant 0 : i32
    %c0_i32_2 = arith.constant 0 : i32
    return %c0_i32, %c0_i32_0, %c0_i32_1 : i32, i32, i32
  }
  func.func @transform_2(%arg0: i32) -> (i32, i32, i32) {
    %c0_i32 = arith.constant 0 : i32
    %c0_i32_0 = arith.constant 0 : i32
    %c0_i32_1 = arith.constant 0 : i32
    %c0_i32_2 = arith.constant 0 : i32
    return %c0_i32, %c0_i32_0, %c0_i32_1 : i32, i32, i32
  }
  func.func @transform_3(%arg0: i32) -> (i32, i32) {
    %c0_i32 = arith.constant 0 : i32
    %c0_i32_0 = arith.constant 0 : i32
    %c0_i32_1 = arith.constant 0 : i32
    return %c0_i32, %c0_i32_0 : i32, i32
  }
  func.func @transform_4(%arg0: i32) -> (i32, i32) {
    %c0_i32 = arith.constant 0 : i32
    %c0_i32_0 = arith.constant 0 : i32
    %c0_i32_1 = arith.constant 0 : i32
    return %c0_i32, %c0_i32_0 : i32, i32
  }
  func.func @transform_5(%arg0: i32) -> (i32, i32) {
    %c0_i32 = arith.constant 0 : i32
    %c0_i32_0 = arith.constant 0 : i32
    %c0_i32_1 = arith.constant 0 : i32
    return %c0_i32, %c0_i32_0 : i32, i32
  }
  func.func @transform_6(%arg0: i32) -> (i32, i32) {
    %c0_i32 = arith.constant 0 : i32
    %c0_i32_0 = arith.constant 0 : i32
    %c0_i32_1 = arith.constant 0 : i32
    return %c0_i32, %c0_i32_0 : i32, i32
  }
  func.func @transform_7(%arg0: i32) -> (i32, i32) {
    %c0_i32 = arith.constant 0 : i32
    %c0_i32_0 = arith.constant 0 : i32
    %c0_i32_1 = arith.constant 0 : i32
    return %c0_i32, %c0_i32_0 : i32, i32
  }
  func.func @transform_8(%arg0: i32) -> (i32, i32) {
    %c0_i32 = arith.constant 0 : i32
    %c0_i32_0 = arith.constant 0 : i32
    %c0_i32_1 = arith.constant 0 : i32
    return %c0_i32, %c0_i32_0 : i32, i32
  }
  func.func @transform_9(%arg0: i32) -> (i32, i32) {
    %c0_i32 = arith.constant 0 : i32
    %c0_i32_0 = arith.constant 0 : i32
    return %arg0, %c0_i32 : i32, i32
  }
}

module attributes {stable_mosaic.version = 11 : i64} {
  func.func @_cnn_highway_kernel(%arg0: i32, %arg1: memref<2x8x32xbf16, #tpu.memory_space<vmem>>, %arg2: memref<2x32x128xbf16, #tpu.memory_space<vmem>>, %arg3: memref<3x32x128xbf16, #tpu.memory_space<vmem>>, %arg4: memref<1x128xf32, #tpu.memory_space<vmem>>, %arg5: memref<1x128xf32, #tpu.memory_space<vmem>>, %arg6: memref<256x512xbf16, #tpu.memory_space<vmem>>, %arg7: memref<1x512xf32, #tpu.memory_space<vmem>>, %arg8: memref<256x128xbf16, #tpu.memory_space<vmem>>, %arg9: memref<1x128xf32, #tpu.memory_space<vmem>>, %arg10: memref<2x128xf32, #tpu.memory_space<vmem>>) attributes {dimension_semantics = [#tpu.dimension_semantics<parallel>], iteration_bounds = array<i64: 1>, scalar_prefetch = 0 : i64, scratch_operands = 0 : i64, tpu.core_type = #tpu.core_type<tc>, window_params = [{transform_indices = @transform_0, window_bounds = array<i64: 2, 8, 32>}, {pipeline_mode = #tpu.pipeline_mode<synchronous>, transform_indices = @transform_1, window_bounds = array<i64: 2, 32, 128>}, {pipeline_mode = #tpu.pipeline_mode<synchronous>, transform_indices = @transform_2, window_bounds = array<i64: 3, 32, 128>}, {pipeline_mode = #tpu.pipeline_mode<synchronous>, transform_indices = @transform_3, window_bounds = array<i64: 1, 128>}, {pipeline_mode = #tpu.pipeline_mode<synchronous>, transform_indices = @transform_4, window_bounds = array<i64: 1, 128>}, {pipeline_mode = #tpu.pipeline_mode<synchronous>, transform_indices = @transform_5, window_bounds = array<i64: 256, 512>}, {pipeline_mode = #tpu.pipeline_mode<synchronous>, transform_indices = @transform_6, window_bounds = array<i64: 1, 512>}, {pipeline_mode = #tpu.pipeline_mode<synchronous>, transform_indices = @transform_7, window_bounds = array<i64: 256, 128>}, {pipeline_mode = #tpu.pipeline_mode<synchronous>, transform_indices = @transform_8, window_bounds = array<i64: 1, 128>}, {transform_indices = @transform_9, window_bounds = array<i64: 2, 128>}]} {
    %c0 = arith.constant 0 : index
    %c0_0 = arith.constant 0 : index
    %c0_1 = arith.constant 0 : index
    %0 = vector.load %arg1[%c0, %c0_0, %c0_1] : memref<2x8x32xbf16, #tpu.memory_space<vmem>>, vector<2x8x32xbf16>
    %1 = vector.shape_cast %0 : vector<2x8x32xbf16> to vector<16x32xbf16>
    %c0_2 = arith.constant 0 : index
    %c0_3 = arith.constant 0 : index
    %c0_4 = arith.constant 0 : index
    %2 = vector.load %arg2[%c0_2, %c0_3, %c0_4] : memref<2x32x128xbf16, #tpu.memory_space<vmem>>, vector<1x32x128xbf16>
    %3 = vector.shape_cast %2 : vector<1x32x128xbf16> to vector<32x128xbf16>
    %cst = arith.constant dense<0.000000e+00> : vector<16x128xf32>
    %4 = tpu.matmul %1, %3, %cst {dimension_numbers = #tpu.dot_dimension_numbers<[1], [0], [0], [1], [0, 0, 1, 1], [], []>} : vector<16x32xbf16>, vector<32x128xbf16>, vector<16x128xf32> -> vector<16x128xf32>
    %5 = vector.shape_cast %4 : vector<16x128xf32> to vector<2x8x128xf32>
    %6 = vector.extract_strided_slice %5 {offsets = [0, 0, 0], sizes = [2, 7, 128], strides = [1, 1, 1]} : vector<2x8x128xf32> to vector<2x7x128xf32>
    %c1 = arith.constant 1 : index
    %c0_5 = arith.constant 0 : index
    %c0_6 = arith.constant 0 : index
    %7 = vector.load %arg2[%c1, %c0_5, %c0_6] : memref<2x32x128xbf16, #tpu.memory_space<vmem>>, vector<1x32x128xbf16>
    %8 = vector.shape_cast %7 : vector<1x32x128xbf16> to vector<32x128xbf16>
    %cst_7 = arith.constant dense<0.000000e+00> : vector<16x128xf32>
    %9 = tpu.matmul %1, %8, %cst_7 {dimension_numbers = #tpu.dot_dimension_numbers<[1], [0], [0], [1], [0, 0, 1, 1], [], []>} : vector<16x32xbf16>, vector<32x128xbf16>, vector<16x128xf32> -> vector<16x128xf32>
    %10 = vector.shape_cast %9 : vector<16x128xf32> to vector<2x8x128xf32>
    %11 = vector.extract_strided_slice %10 {offsets = [0, 1, 0], sizes = [2, 7, 128], strides = [1, 1, 1]} : vector<2x8x128xf32> to vector<2x7x128xf32>
    %12 = arith.addf %6, %11 : vector<2x7x128xf32>
    %cst_8 = arith.constant dense<0xFF800000> : vector<2x128xf32>
    %13 = vector.multi_reduction <maximumf>, %12, %cst_8 [1] : vector<2x7x128xf32> to vector<2x128xf32>
    %c0_9 = arith.constant 0 : index
    %c0_10 = arith.constant 0 : index
    %14 = vector.load %arg4[%c0_9, %c0_10] : memref<1x128xf32, #tpu.memory_space<vmem>>, vector<1x128xf32>
    %15 = vector.broadcast %14 : vector<1x128xf32> to vector<2x128xf32>
    %16 = arith.addf %13, %15 : vector<2x128xf32>
    %cst_11 = arith.constant 0.000000e+00 : f32
    %17 = vector.broadcast %cst_11 : f32 to vector<2x128xf32>
    %18 = arith.maximumf %16, %17 : vector<2x128xf32>
    %c0_12 = arith.constant 0 : index
    %c0_13 = arith.constant 0 : index
    %c0_14 = arith.constant 0 : index
    %19 = vector.load %arg3[%c0_12, %c0_13, %c0_14] : memref<3x32x128xbf16, #tpu.memory_space<vmem>>, vector<1x32x128xbf16>
    %20 = vector.shape_cast %19 : vector<1x32x128xbf16> to vector<32x128xbf16>
    %cst_15 = arith.constant dense<0.000000e+00> : vector<16x128xf32>
    %21 = tpu.matmul %1, %20, %cst_15 {dimension_numbers = #tpu.dot_dimension_numbers<[1], [0], [0], [1], [0, 0, 1, 1], [], []>} : vector<16x32xbf16>, vector<32x128xbf16>, vector<16x128xf32> -> vector<16x128xf32>
    %22 = vector.shape_cast %21 : vector<16x128xf32> to vector<2x8x128xf32>
    %23 = vector.extract_strided_slice %22 {offsets = [0, 0, 0], sizes = [2, 6, 128], strides = [1, 1, 1]} : vector<2x8x128xf32> to vector<2x6x128xf32>
    %c1_16 = arith.constant 1 : index
    %c0_17 = arith.constant 0 : index
    %c0_18 = arith.constant 0 : index
    %24 = vector.load %arg3[%c1_16, %c0_17, %c0_18] : memref<3x32x128xbf16, #tpu.memory_space<vmem>>, vector<1x32x128xbf16>
    %25 = vector.shape_cast %24 : vector<1x32x128xbf16> to vector<32x128xbf16>
    %cst_19 = arith.constant dense<0.000000e+00> : vector<16x128xf32>
    %26 = tpu.matmul %1, %25, %cst_19 {dimension_numbers = #tpu.dot_dimension_numbers<[1], [0], [0], [1], [0, 0, 1, 1], [], []>} : vector<16x32xbf16>, vector<32x128xbf16>, vector<16x128xf32> -> vector<16x128xf32>
    %27 = vector.shape_cast %26 : vector<16x128xf32> to vector<2x8x128xf32>
    %28 = vector.extract_strided_slice %27 {offsets = [0, 1, 0], sizes = [2, 6, 128], strides = [1, 1, 1]} : vector<2x8x128xf32> to vector<2x6x128xf32>
    %29 = arith.addf %23, %28 : vector<2x6x128xf32>
    %c2 = arith.constant 2 : index
    %c0_20 = arith.constant 0 : index
    %c0_21 = arith.constant 0 : index
    %30 = vector.load %arg3[%c2, %c0_20, %c0_21] : memref<3x32x128xbf16, #tpu.memory_space<vmem>>, vector<1x32x128xbf16>
    %31 = vector.shape_cast %30 : vector<1x32x128xbf16> to vector<32x128xbf16>
    %cst_22 = arith.constant dense<0.000000e+00> : vector<16x128xf32>
    %32 = tpu.matmul %1, %31, %cst_22 {dimension_numbers = #tpu.dot_dimension_numbers<[1], [0], [0], [1], [0, 0, 1, 1], [], []>} : vector<16x32xbf16>, vector<32x128xbf16>, vector<16x128xf32> -> vector<16x128xf32>
    %33 = vector.shape_cast %32 : vector<16x128xf32> to vector<2x8x128xf32>
    %34 = vector.extract_strided_slice %33 {offsets = [0, 2, 0], sizes = [2, 6, 128], strides = [1, 1, 1]} : vector<2x8x128xf32> to vector<2x6x128xf32>
    %35 = arith.addf %29, %34 : vector<2x6x128xf32>
    %cst_23 = arith.constant dense<0xFF800000> : vector<2x128xf32>
    %36 = vector.multi_reduction <maximumf>, %35, %cst_23 [1] : vector<2x6x128xf32> to vector<2x128xf32>
    %c0_24 = arith.constant 0 : index
    %c0_25 = arith.constant 0 : index
    %37 = vector.load %arg5[%c0_24, %c0_25] : memref<1x128xf32, #tpu.memory_space<vmem>>, vector<1x128xf32>
    %38 = vector.broadcast %37 : vector<1x128xf32> to vector<2x128xf32>
    %39 = arith.addf %36, %38 : vector<2x128xf32>
    %cst_26 = arith.constant 0.000000e+00 : f32
    %40 = vector.broadcast %cst_26 : f32 to vector<2x128xf32>
    %41 = arith.maximumf %39, %40 : vector<2x128xf32>
    %42 = tpu.concatenate %18, %41 in 1 : vector<2x128xf32>, vector<2x128xf32> -> vector<2x256xf32>
    %c0_27 = arith.constant 0 : index
    %c0_28 = arith.constant 0 : index
    %43 = vector.load %arg8[%c0_27, %c0_28] : memref<256x128xbf16, #tpu.memory_space<vmem>>, vector<256x128xbf16>
    %c0_29 = arith.constant 0 : index
    %c0_30 = arith.constant 0 : index
    %44 = vector.load %arg9[%c0_29, %c0_30] : memref<1x128xf32, #tpu.memory_space<vmem>>, vector<1x128xf32>
    %c0_31 = arith.constant 0 : index
    %c0_32 = arith.constant 0 : index
    %45 = vector.load %arg6[%c0_31, %c0_32] : memref<256x512xbf16, #tpu.memory_space<vmem>>, vector<256x512xbf16>
    %c0_33 = arith.constant 0 : index
    %c0_34 = arith.constant 0 : index
    %46 = vector.load %arg7[%c0_33, %c0_34] : memref<1x512xf32, #tpu.memory_space<vmem>>, vector<1x512xf32>
    %47 = arith.truncf %42 : vector<2x256xf32> to vector<2x256xbf16>
    %cst_35 = arith.constant dense<0.000000e+00> : vector<2x512xf32>
    %48 = tpu.matmul %47, %45, %cst_35 {dimension_numbers = #tpu.dot_dimension_numbers<[1], [0], [0], [1], [0, 0, 1, 1], [], []>} : vector<2x256xbf16>, vector<256x512xbf16>, vector<2x512xf32> -> vector<2x512xf32>
    %49 = vector.broadcast %46 : vector<1x512xf32> to vector<2x512xf32>
    %50 = arith.addf %48, %49 : vector<2x512xf32>
    %51 = vector.extract_strided_slice %50 {offsets = [0, 0], sizes = [2, 256], strides = [1, 1]} : vector<2x512xf32> to vector<2x256xf32>
    %cst_36 = arith.constant 0.000000e+00 : f32
    %52 = vector.broadcast %cst_36 : f32 to vector<2x256xf32>
    %53 = arith.maximumf %51, %52 : vector<2x256xf32>
    %54 = vector.extract_strided_slice %50 {offsets = [0, 256], sizes = [2, 256], strides = [1, 1]} : vector<2x512xf32> to vector<2x256xf32>
    %55 = arith.negf %54 : vector<2x256xf32>
    %56 = math.exp %55 : vector<2x256xf32>
    %cst_37 = arith.constant 1.000000e+00 : f32
    %57 = vector.broadcast %cst_37 : f32 to vector<2x256xf32>
    %58 = arith.addf %57, %56 : vector<2x256xf32>
    %59 = arith.divf %57, %58 : vector<2x256xf32>
    %60 = arith.mulf %59, %42 : vector<2x256xf32>
    %cst_38 = arith.constant 1.000000e+00 : f32
    %61 = vector.broadcast %cst_38 : f32 to vector<2x256xf32>
    %62 = arith.subf %61, %59 : vector<2x256xf32>
    %63 = arith.mulf %62, %53 : vector<2x256xf32>
    %64 = arith.addf %60, %63 : vector<2x256xf32>
    %65 = arith.truncf %64 : vector<2x256xf32> to vector<2x256xbf16>
    %cst_39 = arith.constant dense<0.000000e+00> : vector<2x128xf32>
    %66 = tpu.matmul %65, %43, %cst_39 {dimension_numbers = #tpu.dot_dimension_numbers<[1], [0], [0], [1], [0, 0, 1, 1], [], []>} : vector<2x256xbf16>, vector<256x128xbf16>, vector<2x128xf32> -> vector<2x128xf32>
    %67 = vector.broadcast %44 : vector<1x128xf32> to vector<2x128xf32>
    %68 = arith.addf %66, %67 : vector<2x128xf32>
    %c0_40 = arith.constant 0 : index
    %c0_41 = arith.constant 0 : index
    %69 = vector.load %arg10[%c0_40, %c0_41] : memref<2x128xf32, #tpu.memory_space<vmem>>, vector<2x128xf32>
    tpu.vector_store %arg10[%c0_40, %c0_41], %68 {strides = array<i32>} : memref<2x128xf32, #tpu.memory_space<vmem>>, vector<2x128xf32>,
    return
  }
  func.func @transform_0(%arg0: i32) -> (i32, i32, i32) {
    %c0_i32 = arith.constant 0 : i32
    %c0_i32_0 = arith.constant 0 : i32
    %c0_i32_1 = arith.constant 0 : i32
    return %arg0, %c0_i32, %c0_i32_0 : i32, i32, i32
  }
  func.func @transform_1(%arg0: i32) -> (i32, i32, i32) {
    %c0_i32 = arith.constant 0 : i32
    %c0_i32_0 = arith.constant 0 : i32
    %c0_i32_1 = arith.constant 0 : i32
    %c0_i32_2 = arith.constant 0 : i32
    return %c0_i32, %c0_i32_0, %c0_i32_1 : i32, i32, i32
  }
  func.func @transform_2(%arg0: i32) -> (i32, i32, i32) {
    %c0_i32 = arith.constant 0 : i32
    %c0_i32_0 = arith.constant 0 : i32
    %c0_i32_1 = arith.constant 0 : i32
    %c0_i32_2 = arith.constant 0 : i32
    return %c0_i32, %c0_i32_0, %c0_i32_1 : i32, i32, i32
  }
  func.func @transform_3(%arg0: i32) -> (i32, i32) {
    %c0_i32 = arith.constant 0 : i32
    %c0_i32_0 = arith.constant 0 : i32
    %c0_i32_1 = arith.constant 0 : i32
    return %c0_i32, %c0_i32_0 : i32, i32
  }
  func.func @transform_4(%arg0: i32) -> (i32, i32) {
    %c0_i32 = arith.constant 0 : i32
    %c0_i32_0 = arith.constant 0 : i32
    %c0_i32_1 = arith.constant 0 : i32
    return %c0_i32, %c0_i32_0 : i32, i32
  }
  func.func @transform_5(%arg0: i32) -> (i32, i32) {
    %c0_i32 = arith.constant 0 : i32
    %c0_i32_0 = arith.constant 0 : i32
    %c0_i32_1 = arith.constant 0 : i32
    return %c0_i32, %c0_i32_0 : i32, i32
  }
  func.func @transform_6(%arg0: i32) -> (i32, i32) {
    %c0_i32 = arith.constant 0 : i32
    %c0_i32_0 = arith.constant 0 : i32
    %c0_i32_1 = arith.constant 0 : i32
    return %c0_i32, %c0_i32_0 : i32, i32
  }
  func.func @transform_7(%arg0: i32) -> (i32, i32) {
    %c0_i32 = arith.constant 0 : i32
    %c0_i32_0 = arith.constant 0 : i32
    %c0_i32_1 = arith.constant 0 : i32
    return %c0_i32, %c0_i32_0 : i32, i32
  }
  func.func @transform_8(%arg0: i32) -> (i32, i32) {
    %c0_i32 = arith.constant 0 : i32
    %c0_i32_0 = arith.constant 0 : i32
    %c0_i32_1 = arith.constant 0 : i32
    return %c0_i32, %c0_i32_0 : i32, i32
  }
  func.func @transform_9(%arg0: i32) -> (i32, i32) {
    %c0_i32 = arith.constant 0 : i32
    %c0_i32_0 = arith.constant 0 : i32
    return %arg0, %c0_i32 : i32, i32
  }
}

</mosaic_0001>

<llo_original>
// kernel: tpu_custom_call.1
$region0: #{tpu_custom_call.1}
  #allocation0 [shape = 'u32[]', space=smem, size = 0x4, offset = 0x4, fixed_abs, tag = 'smem constant byte address 0x4 - core index']
  #allocation1 [shape = 'u32[144,128]{1,0:T(1,128)}', space=vmem, size = 0x12000, scoped, tag = 'internal scratch']
  %s0 = inlined_call_operand.hbm [shape: bf16[2,8,32], index: 0, kind: input, shape index: {}]
  %s1 = inlined_call_operand.hbm [shape: bf16[2,32,128], index: 1, kind: input, shape index: {}]
  %s2 = inlined_call_operand.hbm [shape: bf16[3,32,128], index: 2, kind: input, shape index: {}]
  %s3 = inlined_call_operand.vmem [shape: f32[1,128], index: 3, kind: input, shape index: {}]
  %s4 = inlined_call_operand.vmem [shape: f32[1,128], index: 4, kind: input, shape index: {}]
  %s5 = inlined_call_operand.hbm [shape: bf16[256,512], index: 5, kind: input, shape index: {}]
  %s6 = inlined_call_operand.vmem [shape: f32[1,512], index: 6, kind: input, shape index: {}]
  %s7 = inlined_call_operand.hbm [shape: bf16[256,128], index: 7, kind: input, shape index: {}]
  %s8 = inlined_call_operand.vmem [shape: f32[1,128], index: 8, kind: input, shape index: {}]
  %s9 = inlined_call_operand.hbm [shape: f32[2,128], index: 9, kind: output, shape index: {}]
  %s10 = sld [smem:[#allocation0]]
  $region66: #{tpu_custom_call.1} parent=0
    _
  %s12 = ssub.s32 1, %s10
  %s13 = scalar_select 0, %s12, %s10
  $region1: #{tpu_custom_call.1} parent=0
    #allocation2 [shape = 'u8[4096]{0}', space=vmem, size = 0x1000, scoped, tag = 'input window, operand 0, single buffered']
    #allocation3 [shape = 's32[1]{0}', space=sflag, size = 0x4, scoped, tag = 'scoped memory for tpu_custom_call.1']
    #allocation4 [shape = 's32[1]{0}', space=sflag, size = 0x4, scoped, tag = 'scoped memory for tpu_custom_call.1']
    #allocation5 [shape = 'u8[16384]{0}', space=vmem, size = 0x4000, scoped, tag = 'input window, operand 1, single buffered']
    #allocation6 [shape = 's32[1]{0}', space=sflag, size = 0x4, scoped, tag = 'scoped memory for tpu_custom_call.1']
    #allocation7 [shape = 'u8[24576]{0}', space=vmem, size = 0x6000, scoped, tag = 'input window, operand 2, single buffered']
    #allocation8 [shape = 'u8[262144]{0}', space=vmem, size = 0x40000, scoped, tag = 'input window, operand 5, single buffered']
    #allocation9 [shape = 's32[1]{0}', space=sflag, size = 0x4, scoped, tag = 'scoped memory for tpu_custom_call.1']
    #allocation10 [shape = 'u8[65536]{0}', space=vmem, size = 0x10000, scoped, tag = 'input window, operand 7, single buffered']
    #allocation11 [shape = 'u8[1024]{0}', space=vmem, size = 0x400, scoped, tag = 'output window, operand 0, single buffered']
    %14 = vsyncpa [#allocation3], 0
    %15 = vsyncpa [#allocation6], 0
    %16 = vsyncpa [#allocation9], 0
    %17 = vsyncpa [#allocation4], 0
    // Predicated region
    $region2: #{tpu_custom_call.1} parent=1 // pred_check
      _
    $region3: #{tpu_custom_call.1} parent=1 // pred_check_branch
      %19 = sbr.rel (0) target = $region5
    $region4: #{tpu_custom_call.1} parent=1 // pred_region
      %s21 = ssub.s32 128, 128
      %22 = vsyncadd [#allocation3], %s21
      %s23 = sshll.u32 [#allocation2], 4
      %s24 = int_to_ptr.vmem [resolvable:$true] %s23
      %29 = dma.hbm_to_vmem [thread:$0]  %s0, 128, %s24, [#allocation3], 64, 64, 4
    $region5: #{tpu_custom_call.1} parent=1 // pred_fallthru
      _
    // Predicated region
    $region6: #{tpu_custom_call.1} parent=1 // pred_check
      _
    $region7: #{tpu_custom_call.1} parent=1 // pred_check_branch
      %31 = sbr.rel (0) target = $region9
    $region8: #{tpu_custom_call.1} parent=1 // pred_region
      %s33 = ssub.s32 512, 512
      %34 = vsyncadd [#allocation6], %s33
      %s35 = sshll.u32 [#allocation5], 4
      %s36 = int_to_ptr.vmem [resolvable:$true] %s35
      %41 = dma.hbm_to_vmem [thread:$0]  %s1, 512, %s36, [#allocation6], 64, 64, 4
    $region9: #{tpu_custom_call.1} parent=1 // pred_fallthru
      _
    // Predicated region
    $region10: #{tpu_custom_call.1} parent=1 // pred_check
      _
    $region11: #{tpu_custom_call.1} parent=1 // pred_check_branch
      %43 = sbr.rel (0) target = $region13
    $region12: #{tpu_custom_call.1} parent=1 // pred_region
      %s45 = ssub.s32 768, 768
      %46 = vsyncadd [#allocation6], %s45
      %s47 = sshll.u32 [#allocation7], 4
      %s48 = int_to_ptr.vmem [resolvable:$true] %s47
      %53 = dma.hbm_to_vmem [thread:$0]  %s2, 768, %s48, [#allocation6], 64, 64, 4
    $region13: #{tpu_custom_call.1} parent=1 // pred_fallthru
      _
    // Predicated region
    $region14: #{tpu_custom_call.1} parent=1 // pred_check
      _
    $region15: #{tpu_custom_call.1} parent=1 // pred_check_branch
      %55 = sbr.rel (0) target = $region17
    $region16: #{tpu_custom_call.1} parent=1 // pred_region
      _
    $region17: #{tpu_custom_call.1} parent=1 // pred_fallthru
      _
    // Predicated region
    $region18: #{tpu_custom_call.1} parent=1 // pred_check
      _
    $region19: #{tpu_custom_call.1} parent=1 // pred_check_branch
      %57 = sbr.rel (0) target = $region21
    $region20: #{tpu_custom_call.1} parent=1 // pred_region
      _
    $region21: #{tpu_custom_call.1} parent=1 // pred_fallthru
      _
    // Predicated region
    $region22: #{tpu_custom_call.1} parent=1 // pred_check
      _
    $region23: #{tpu_custom_call.1} parent=1 // pred_check_branch
      %59 = sbr.rel (0) target = $region25
    $region24: #{tpu_custom_call.1} parent=1 // pred_region
      %s61 = ssub.s32 8192, 8192
      %62 = vsyncadd [#allocation9], %s61
      %s63 = sshll.u32 [#allocation8], 4
      %s64 = int_to_ptr.vmem [resolvable:$true] %s63
      %69 = dma.hbm_to_vmem [thread:$0]  %s5, 8192, %s64, [#allocation9], 256, 256, 16
    $region25: #{tpu_custom_call.1} parent=1 // pred_fallthru
      _
    // Predicated region
    $region26: #{tpu_custom_call.1} parent=1 // pred_check
      _
    $region27: #{tpu_custom_call.1} parent=1 // pred_check_branch
      %71 = sbr.rel (0) target = $region29
    $region28: #{tpu_custom_call.1} parent=1 // pred_region
      _
    $region29: #{tpu_custom_call.1} parent=1 // pred_fallthru
      _
    // Predicated region
    $region30: #{tpu_custom_call.1} parent=1 // pred_check
      _
    $region31: #{tpu_custom_call.1} parent=1 // pred_check_branch
      %73 = sbr.rel (0) target = $region33
    $region32: #{tpu_custom_call.1} parent=1 // pred_region
      %s75 = ssub.s32 2048, 2048
      %76 = vsyncadd [#allocation9], %s75
      %s77 = sshll.u32 [#allocation10], 4
      %s78 = int_to_ptr.vmem [resolvable:$true] %s77
      %83 = dma.hbm_to_vmem [thread:$0]  %s7, 2048, %s78, [#allocation9], 64, 64, 4
    $region33: #{tpu_custom_call.1} parent=1 // pred_fallthru
      _
    // Predicated region
    $region34: #{tpu_custom_call.1} parent=1 // pred_check
      _
    $region35: #{tpu_custom_call.1} parent=1 // pred_check_branch
      %85 = sbr.rel (0) target = $region37
    $region36: #{tpu_custom_call.1} parent=1 // pred_region
      _
    $region37: #{tpu_custom_call.1} parent=1 // pred_fallthru
      _
    // Predicated region
    $region38: #{tpu_custom_call.1} parent=1 // pred_check
      _
    $region39: #{tpu_custom_call.1} parent=1 // pred_check_branch
      %87 = sbr.rel (0) target = $region41
    $region40: #{tpu_custom_call.1} parent=1 // pred_region
      %88 = dma.done [#allocation3], 128
    $region41: #{tpu_custom_call.1} parent=1 // pred_fallthru
      _
    // Predicated region
    $region42: #{tpu_custom_call.1} parent=1 // pred_check
      _
    $region43: #{tpu_custom_call.1} parent=1 // pred_check_branch
      %90 = sbr.rel (0) target = $region45
    $region44: #{tpu_custom_call.1} parent=1 // pred_region
      %91 = dma.done [#allocation6], 512
    $region45: #{tpu_custom_call.1} parent=1 // pred_fallthru
      _
    // Predicated region
    $region46: #{tpu_custom_call.1} parent=1 // pred_check
      _
    $region47: #{tpu_custom_call.1} parent=1 // pred_check_branch
      %93 = sbr.rel (0) target = $region49
    $region48: #{tpu_custom_call.1} parent=1 // pred_region
      %94 = dma.done [#allocation6], 768
    $region49: #{tpu_custom_call.1} parent=1 // pred_fallthru
      _
    // Predicated region
    $region50: #{tpu_custom_call.1} parent=1 // pred_check
      _
    $region51: #{tpu_custom_call.1} parent=1 // pred_check_branch
      %96 = sbr.rel (0) target = $region53
    $region52: #{tpu_custom_call.1} parent=1 // pred_region
      %97 = dma.done [#allocation9], 8192
    $region53: #{tpu_custom_call.1} parent=1 // pred_fallthru
      _
    // Predicated region
    $region54: #{tpu_custom_call.1} parent=1 // pred_check
      _
    $region55: #{tpu_custom_call.1} parent=1 // pred_check_branch
      %99 = sbr.rel (0) target = $region57
    $region56: #{tpu_custom_call.1} parent=1 // pred_region
      %100 = dma.done [#allocation9], 2048
    $region57: #{tpu_custom_call.1} parent=1 // pred_fallthru
      _
    %v102 = vld [vmem:[#allocation2] sm:$0xf]
    %v103 = vld [vmem:[#allocation2 + $0x4] sm:$0xf]
    %v104 = vld [vmem:[#allocation5] sm:$0xf]
    %v105 = vld [vmem:[#allocation5 + $0x4] sm:$0xf]
    %v106 = vld [vmem:[#allocation5 + $0x8] sm:$0xf]
    %v107 = vld [vmem:[#allocation5 + $0xc] sm:$0xf]
    %v110 = vunpack.c.l.b16 %v102
    %v111 = vunpack.c.l.b16 %v103
    %v112 = vpack.c.b16 %v111, %v110
    %v117 = vunpack.c.l.b16 %v104
    %v118 = vunpack.c.l.b16 %v105
    %v119 = vunpack.c.l.b16 %v106
    %v120 = vunpack.c.l.b16 %v107
    %v121 = vpack.c.b16 %v118, %v117
    %v122 = vpack.c.b16 %v120, %v119
    %vm125 = vcmask 261120
    %v127 = vsel %vm125, %v112, 0
    %129 = vmatprep.subr.bf16.mxu0 0
    %130 = vmatpush1.bf16.msra.mxu0 %v121
    %131 = vmatprep.subr.bf16.mxu0 0
    %132 = vmatpush1.bf16.msra.mxu0 %v122
    %133 = vmatprep.subr.bf16.mxu0 0
    %134 = vmatpush1.bf16.msra.mxu0 0
    %135 = vmatprep.subr.bf16.mxu0 0
    %136 = vmatpush1.bf16.msra.mxu0 0
    %137 = vmatprep.subr.bf16.mxu0 0
    %138 = vmatpush1.bf16.msra.mxu0 0
    %139 = vmatprep.subr.bf16.mxu0 0
    %140 = vmatpush1.bf16.msra.mxu0 0
    %141 = vmatprep.subr.bf16.mxu0 0
    %142 = vmatpush1.bf16.msra.mxu0 0
    %143 = vmatprep.subr.bf16.mxu0 0
    %144 = vmatpush1.bf16.msra.mxu0 0
    %145 = vmatprep.subr.bf16.mxu0 0
    %146 = vmatpush1.bf16.msra.mxu0 0
    %147 = vmatprep.subr.bf16.mxu0 0
    %148 = vmatpush1.bf16.msra.mxu0 0
    %149 = vmatprep.subr.bf16.mxu0 0
    %150 = vmatpush1.bf16.msra.mxu0 0
    %151 = vmatprep.subr.bf16.mxu0 0
    %152 = vmatpush1.bf16.msra.mxu0 0
    %153 = vmatprep.subr.bf16.mxu0 0
    %154 = vmatpush1.bf16.msra.mxu0 0
    %155 = vmatprep.subr.bf16.mxu0 0
    %156 = vmatpush1.bf16.msra.mxu0 0
    %157 = vmatprep.subr.bf16.mxu0 0
    %158 = vmatpush1.bf16.msra.mxu0 0
    %159 = vmatprep.subr.bf16.mxu0 0
    %160 = vmatpush1.bf16.msra.mxu0 0
    %161 = vmatprep.mubr.bf16.mxu0 0
    %162 = vmatmul.mubr.bf16.gmra.mrb[0].mxu0 %v127
    %v163 = vpop.f32.mrb[0].mxu0
    %v164 = vadd.f32 0.0, %v163
    %v165 = vpop.f32.mrb[0].mxu0
    %v166 = vpop.f32.mrb[0].mxu0
    %v167 = vadd.f32 0.0, %v166
    %v168 = vpop.f32.mrb[0].mxu0
    %169 = vdwg.mxu0
    %s170 = scalar_lea.vmem [#allocation5], 16
    %v171 = vld [vmem:[%s170] sm:$0xf]
    %v172 = vld [vmem:[%s170 + $0x4] sm:$0xf]
    %v173 = vld [vmem:[%s170 + $0x8] sm:$0xf]
    %v174 = vld [vmem:[%s170 + $0xc] sm:$0xf]
    %v179 = vunpack.c.l.b16 %v171
    %v180 = vunpack.c.l.b16 %v172
    %v181 = vunpack.c.l.b16 %v173
    %v182 = vunpack.c.l.b16 %v174
    %v183 = vpack.c.b16 %v180, %v179
    %v184 = vpack.c.b16 %v182, %v181
    %187 = vmatprep.subr.bf16.mxu0 0
    %188 = vmatpush1.bf16.msra.mxu0 %v183
    %189 = vmatprep.subr.bf16.mxu0 0
    %190 = vmatpush1.bf16.msra.mxu0 %v184
    %191 = vmatprep.subr.bf16.mxu0 0
    %192 = vmatpush1.bf16.msra.mxu0 0
    %193 = vmatprep.subr.bf16.mxu0 0
    %194 = vmatpush1.bf16.msra.mxu0 0
    %195 = vmatprep.subr.bf16.mxu0 0
    %196 = vmatpush1.bf16.msra.mxu0 0
    %197 = vmatprep.subr.bf16.mxu0 0
    %198 = vmatpush1.bf16.msra.mxu0 0
    %199 = vmatprep.subr.bf16.mxu0 0
    %200 = vmatpush1.bf16.msra.mxu0 0
    %201 = vmatprep.subr.bf16.mxu0 0
    %202 = vmatpush1.bf16.msra.mxu0 0
    %203 = vmatprep.subr.bf16.mxu0 0
    %204 = vmatpush1.bf16.msra.mxu0 0
    %205 = vmatprep.subr.bf16.mxu0 0
    %206 = vmatpush1.bf16.msra.mxu0 0
    %207 = vmatprep.subr.bf16.mxu0 0
    %208 = vmatpush1.bf16.msra.mxu0 0
    %209 = vmatprep.subr.bf16.mxu0 0
    %210 = vmatpush1.bf16.msra.mxu0 0
    %211 = vmatprep.subr.bf16.mxu0 0
    %212 = vmatpush1.bf16.msra.mxu0 0
    %213 = vmatprep.subr.bf16.mxu0 0
    %214 = vmatpush1.bf16.msra.mxu0 0
    %215 = vmatprep.subr.bf16.mxu0 0
    %216 = vmatpush1.bf16.msra.mxu0 0
    %217 = vmatprep.subr.bf16.mxu0 0
    %218 = vmatpush1.bf16.msra.mxu0 0
    %219 = vmatprep.mubr.bf16.mxu0 0
    %220 = vmatmul.mubr.bf16.gmra.mrb[0].mxu0 %v127
    %v221 = vpop.f32.mrb[0].mxu0
    %v222 = vadd.f32 0.0, %v221
    %v223 = vpop.f32.mrb[0].mxu0
    %v224 = vpop.f32.mrb[0].mxu0
    %v225 = vadd.f32 0.0, %v224
    %v226 = vpop.f32.mrb[0].mxu0
    %227 = vdwg.mxu0
    %v228 = vrot.slane %v222, 1
    %v229 = vrot.slane %v225, 1
    %v230 = vadd.f32 %v164, %v228
    %v231 = vadd.f32 %v167, %v229
    %v232 = vlaneseq
    %v233 = vshrl.u32 %v232, 7
    %vm234 = vcmp.lt.s32.totalorder %v233, 7
    %v235 = vsel %vm234, %v230, -inf
    %v236 = vsel %vm234, %v231, -inf
    %v237 = vrot.slane %v235, 4
    %v238 = vmax.f32 %v235, %v237
    %v239 = vrot.slane %v238, 2
    %v240 = vmax.f32 %v238, %v239
    %v241 = vrot.slane %v240, 1
    %v242 = vmax.f32 %v240, %v241
    %v243 = vrot.slane %v236, 4
    %v244 = vmax.f32 %v236, %v243
    %v245 = vrot.slane %v244, 2
    %v246 = vmax.f32 %v244, %v245
    %v247 = vrot.slane %v246, 1
    %v248 = vmax.f32 %v246, %v247
    %v249 = vld [vmem:[%s3] sm:$0x1]
    %v251 = vlaneseq
    %v252 = vshrl.u32 %v251, 7
    %v253 = vsub.s32 0, %v252
    %v254 = vrot.slane %v249, %v253
    %v256 = vadd.f32 %v242, %v254
    %v257 = vadd.f32 %v248, %v254
    %v258 = vmax.f32 %v256, 0.0
    %v259 = vmax.f32 %v257, 0.0
    %v260 = vld [vmem:[#allocation7] sm:$0xf]
    %v261 = vld [vmem:[#allocation7 + $0x4] sm:$0xf]
    %v262 = vld [vmem:[#allocation7 + $0x8] sm:$0xf]
    %v263 = vld [vmem:[#allocation7 + $0xc] sm:$0xf]
    %v268 = vunpack.c.l.b16 %v260
    %v269 = vunpack.c.l.b16 %v261
    %v270 = vunpack.c.l.b16 %v262
    %v271 = vunpack.c.l.b16 %v263
    %v272 = vpack.c.b16 %v269, %v268
    %v273 = vpack.c.b16 %v271, %v270
    %276 = vmatprep.subr.bf16.mxu0 0
    %277 = vmatpush1.bf16.msra.mxu0 %v272
    %278 = vmatprep.subr.bf16.mxu0 0
    %279 = vmatpush1.bf16.msra.mxu0 %v273
    %280 = vmatprep.subr.bf16.mxu0 0
    %281 = vmatpush1.bf16.msra.mxu0 0
    %282 = vmatprep.subr.bf16.mxu0 0
    %283 = vmatpush1.bf16.msra.mxu0 0
    %284 = vmatprep.subr.bf16.mxu0 0
    %285 = vmatpush1.bf16.msra.mxu0 0
    %286 = vmatprep.subr.bf16.mxu0 0
    %287 = vmatpush1.bf16.msra.mxu0 0
    %288 = vmatprep.subr.bf16.mxu0 0
    %289 = vmatpush1.bf16.msra.mxu0 0
    %290 = vmatprep.subr.bf16.mxu0 0
    %291 = vmatpush1.bf16.msra.mxu0 0
    %292 = vmatprep.subr.bf16.mxu0 0
    %293 = vmatpush1.bf16.msra.mxu0 0
    %294 = vmatprep.subr.bf16.mxu0 0
    %295 = vmatpush1.bf16.msra.mxu0 0
    %296 = vmatprep.subr.bf16.mxu0 0
    %297 = vmatpush1.bf16.msra.mxu0 0
    %298 = vmatprep.subr.bf16.mxu0 0
    %299 = vmatpush1.bf16.msra.mxu0 0
    %300 = vmatprep.subr.bf16.mxu0 0
    %301 = vmatpush1.bf16.msra.mxu0 0
    %302 = vmatprep.subr.bf16.mxu0 0
    %303 = vmatpush1.bf16.msra.mxu0 0
    %304 = vmatprep.subr.bf16.mxu0 0
    %305 = vmatpush1.bf16.msra.mxu0 0
    %306 = vmatprep.subr.bf16.mxu0 0
    %307 = vmatpush1.bf16.msra.mxu0 0
    %308 = vmatprep.mubr.bf16.mxu0 0
    %309 = vmatmul.mubr.bf16.gmra.mrb[0].mxu0 %v127
    %v310 = vpop.f32.mrb[0].mxu0
    %v311 = vadd.f32 0.0, %v310
    %v312 = vpop.f32.mrb[0].mxu0
    %v313 = vpop.f32.mrb[0].mxu0
    %v314 = vadd.f32 0.0, %v313
    %v315 = vpop.f32.mrb[0].mxu0
    %316 = vdwg.mxu0
    %s317 = scalar_lea.vmem [#allocation7], 16
    %v318 = vld [vmem:[%s317] sm:$0xf]
    %v319 = vld [vmem:[%s317 + $0x4] sm:$0xf]
    %v320 = vld [vmem:[%s317 + $0x8] sm:$0xf]
    %v321 = vld [vmem:[%s317 + $0xc] sm:$0xf]
    %v326 = vunpack.c.l.b16 %v318
    %v327 = vunpack.c.l.b16 %v319
    %v328 = vunpack.c.l.b16 %v320
    %v329 = vunpack.c.l.b16 %v321
    %v330 = vpack.c.b16 %v327, %v326
    %v331 = vpack.c.b16 %v329, %v328
    %334 = vmatprep.subr.bf16.mxu0 0
    %335 = vmatpush1.bf16.msra.mxu0 %v330
    %336 = vmatprep.subr.bf16.mxu0 0
    %337 = vmatpush1.bf16.msra.mxu0 %v331
    %338 = vmatprep.subr.bf16.mxu0 0
    %339 = vmatpush1.bf16.msra.mxu0 0
    %340 = vmatprep.subr.bf16.mxu0 0
    %341 = vmatpush1.bf16.msra.mxu0 0
    %342 = vmatprep.subr.bf16.mxu0 0
    %343 = vmatpush1.bf16.msra.mxu0 0
    %344 = vmatprep.subr.bf16.mxu0 0
    %345 = vmatpush1.bf16.msra.mxu0 0
    %346 = vmatprep.subr.bf16.mxu0 0
    %347 = vmatpush1.bf16.msra.mxu0 0
    %348 = vmatprep.subr.bf16.mxu0 0
    %349 = vmatpush1.bf16.msra.mxu0 0
    %350 = vmatprep.subr.bf16.mxu0 0
    %351 = vmatpush1.bf16.msra.mxu0 0
    %352 = vmatprep.subr.bf16.mxu0 0
    %353 = vmatpush1.bf16.msra.mxu0 0
    %354 = vmatprep.subr.bf16.mxu0 0
    %355 = vmatpush1.bf16.msra.mxu0 0
    %356 = vmatprep.subr.bf16.mxu0 0
    %357 = vmatpush1.bf16.msra.mxu0 0
    %358 = vmatprep.subr.bf16.mxu0 0
    %359 = vmatpush1.bf16.msra.mxu0 0
    %360 = vmatprep.subr.bf16.mxu0 0
    %361 = vmatpush1.bf16.msra.mxu0 0
    %362 = vmatprep.subr.bf16.mxu0 0
    %363 = vmatpush1.bf16.msra.mxu0 0
    %364 = vmatprep.subr.bf16.mxu0 0
    %365 = vmatpush1.bf16.msra.mxu0 0
    %366 = vmatprep.mubr.bf16.mxu0 0
    %367 = vmatmul.mubr.bf16.gmra.mrb[0].mxu0 %v127
    %v368 = vpop.f32.mrb[0].mxu0
    %v369 = vadd.f32 0.0, %v368
    %v370 = vpop.f32.mrb[0].mxu0
    %v371 = vpop.f32.mrb[0].mxu0
    %v372 = vadd.f32 0.0, %v371
    %v373 = vpop.f32.mrb[0].mxu0
    %374 = vdwg.mxu0
    %v375 = vrot.slane %v369, 1
    %v376 = vrot.slane %v372, 1
    %v377 = vadd.f32 %v311, %v375
    %v378 = vadd.f32 %v314, %v376
    %s379 = scalar_lea.vmem [#allocation7], 32
    %v380 = vld [vmem:[%s379] sm:$0xf]
    %v381 = vld [vmem:[%s379 + $0x4] sm:$0xf]
    %v382 = vld [vmem:[%s379 + $0x8] sm:$0xf]
    %v383 = vld [vmem:[%s379 + $0xc] sm:$0xf]
    %v388 = vunpack.c.l.b16 %v380
    %v389 = vunpack.c.l.b16 %v381
    %v390 = vunpack.c.l.b16 %v382
    %v391 = vunpack.c.l.b16 %v383
    %v392 = vpack.c.b16 %v389, %v388
    %v393 = vpack.c.b16 %v391, %v390
    %396 = vmatprep.subr.bf16.mxu0 0
    %397 = vmatpush1.bf16.msra.mxu0 %v392
    %398 = vmatprep.subr.bf16.mxu0 0
    %399 = vmatpush1.bf16.msra.mxu0 %v393
    %400 = vmatprep.subr.bf16.mxu0 0
    %401 = vmatpush1.bf16.msra.mxu0 0
    %402 = vmatprep.subr.bf16.mxu0 0
    %403 = vmatpush1.bf16.msra.mxu0 0
    %404 = vmatprep.subr.bf16.mxu0 0
    %405 = vmatpush1.bf16.msra.mxu0 0
    %406 = vmatprep.subr.bf16.mxu0 0
    %407 = vmatpush1.bf16.msra.mxu0 0
    %408 = vmatprep.subr.bf16.mxu0 0
    %409 = vmatpush1.bf16.msra.mxu0 0
    %410 = vmatprep.subr.bf16.mxu0 0
    %411 = vmatpush1.bf16.msra.mxu0 0
    %412 = vmatprep.subr.bf16.mxu0 0
    %413 = vmatpush1.bf16.msra.mxu0 0
    %414 = vmatprep.subr.bf16.mxu0 0
    %415 = vmatpush1.bf16.msra.mxu0 0
    %416 = vmatprep.subr.bf16.mxu0 0
    %417 = vmatpush1.bf16.msra.mxu0 0
    %418 = vmatprep.subr.bf16.mxu0 0
    %419 = vmatpush1.bf16.msra.mxu0 0
    %420 = vmatprep.subr.bf16.mxu0 0
    %421 = vmatpush1.bf16.msra.mxu0 0
    %422 = vmatprep.subr.bf16.mxu0 0
    %423 = vmatpush1.bf16.msra.mxu0 0
    %424 = vmatprep.subr.bf16.mxu0 0
    %425 = vmatpush1.bf16.msra.mxu0 0
    %426 = vmatprep.subr.bf16.mxu0 0
    %427 = vmatpush1.bf16.msra.mxu0 0
    %428 = vmatprep.mubr.bf16.mxu0 0
    %429 = vmatmul.mubr.bf16.gmra.mrb[0].mxu0 %v127
    %v430 = vpop.f32.mrb[0].mxu0
    %v431 = vadd.f32 0.0, %v430
    %v432 = vpop.f32.mrb[0].mxu0
    %v433 = vpop.f32.mrb[0].mxu0
    %v434 = vadd.f32 0.0, %v433
    %v435 = vpop.f32.mrb[0].mxu0
    %436 = vdwg.mxu0
    %v437 = vrot.slane %v431, 2
    %v438 = vrot.slane %v434, 2
    %v439 = vadd.f32 %v377, %v437
    %v440 = vadd.f32 %v378, %v438
    %vm441 = vcmp.lt.s32.totalorder %v233, 6
    %v442 = vsel %vm441, %v439, -inf
    %v443 = vsel %vm441, %v440, -inf
    %v444 = vrot.slane %v442, 4
    %v445 = vmax.f32 %v442, %v444
    %v446 = vrot.slane %v445, 2
    %v447 = vmax.f32 %v445, %v446
    %v448 = vrot.slane %v447, 1
    %v449 = vmax.f32 %v447, %v448
    %v450 = vrot.slane %v443, 4
    %v451 = vmax.f32 %v443, %v450
    %v452 = vrot.slane %v451, 2
    %v453 = vmax.f32 %v451, %v452
    %v454 = vrot.slane %v453, 1
    %v455 = vmax.f32 %v453, %v454
    %v456 = vld [vmem:[%s4] sm:$0x1]
    %v458 = vlaneseq
    %v459 = vshrl.u32 %v458, 7
    %v460 = vsub.s32 0, %v459
    %v461 = vrot.slane %v456, %v460
    %v463 = vadd.f32 %v449, %v461
    %v464 = vadd.f32 %v455, %v461
    %v465 = vmax.f32 %v463, 0.0
    %v466 = vmax.f32 %v464, 0.0
    %v469 = vrot.slane %v259, 7
    %vm470 = vcmask 1041409
    %v471 = vsel %vm470, %v469, %v258
    %v475 = vrot.slane %v466, 7
    %v476 = vsel %vm470, %v475, %v465
    %v478 = vld [vmem:[#allocation10] sm:$0xf]
    %v479 = vld [vmem:[#allocation10 + $0x4] sm:$0xf]
    %v480 = vld [vmem:[#allocation10 + $0x8] sm:$0xf]
    %v481 = vld [vmem:[#allocation10 + $0xc] sm:$0xf]
    %v482 = vld [vmem:[#allocation10 + $0x10] sm:$0xf]
    %v483 = vld [vmem:[#allocation10 + $0x14] sm:$0xf]
    %v484 = vld [vmem:[#allocation10 + $0x18] sm:$0xf]
    %v485 = vld [vmem:[#allocation10 + $0x1c] sm:$0xf]
    %v486 = vld [vmem:[#allocation10 + $0x20] sm:$0xf]
    %v487 = vld [vmem:[#allocation10 + $0x24] sm:$0xf]
    %v488 = vld [vmem:[#allocation10 + $0x28] sm:$0xf]
    %v489 = vld [vmem:[#allocation10 + $0x2c] sm:$0xf]
    %v490 = vld [vmem:[#allocation10 + $0x30] sm:$0xf]
    %v491 = vld [vmem:[#allocation10 + $0x34] sm:$0xf]
    %v492 = vld [vmem:[#allocation10 + $0x38] sm:$0xf]
    %v493 = vld [vmem:[#allocation10 + $0x3c] sm:$0xf]
    %v494 = vld [vmem:[#allocation10 + $0x40] sm:$0xf]
    %v495 = vld [vmem:[#allocation10 + $0x44] sm:$0xf]
    %v496 = vld [vmem:[#allocation10 + $0x48] sm:$0xf]
    %v497 = vld [vmem:[#allocation10 + $0x4c] sm:$0xf]
    %v498 = vld [vmem:[#allocation10 + $0x50] sm:$0xf]
    %v499 = vld [vmem:[#allocation10 + $0x54] sm:$0xf]
    %v500 = vld [vmem:[#allocation10 + $0x58] sm:$0xf]
    %v501 = vld [vmem:[#allocation10 + $0x5c] sm:$0xf]
    %v502 = vld [vmem:[#allocation10 + $0x60] sm:$0xf]
    %v503 = vld [vmem:[#allocation10 + $0x64] sm:$0xf]
    %v504 = vld [vmem:[#allocation10 + $0x68] sm:$0xf]
    %v505 = vld [vmem:[#allocation10 + $0x6c] sm:$0xf]
    %v506 = vld [vmem:[#allocation10 + $0x70] sm:$0xf]
    %v507 = vld [vmem:[#allocation10 + $0x74] sm:$0xf]
    %v508 = vld [vmem:[#allocation10 + $0x78] sm:$0xf]
    %v509 = vld [vmem:[#allocation10 + $0x7c] sm:$0xf]
    %v510 = vld [vmem:[%s8] sm:$0x1]
    %v511 = vld [vmem:[#allocation8] sm:$0xff]
    %v512 = vld [vmem:[#allocation8 + $0x8] sm:$0xff]
    %v513 = vld [vmem:[#allocation8 + $0x10] sm:$0xff]
    %v514 = vld [vmem:[#allocation8 + $0x18] sm:$0xff]
    %v515 = vld [vmem:[#allocation8 + $0x20] sm:$0xff]
    %v516 = vld [vmem:[#allocation8 + $0x28] sm:$0xff]
    %v517 = vld [vmem:[#allocation8 + $0x30] sm:$0xff]
    %v518 = vld [vmem:[#allocation8 + $0x38] sm:$0xff]
    %v519 = vld [vmem:[#allocation8 + $0x40] sm:$0xff]
    %v520 = vld [vmem:[#allocation8 + $0x48] sm:$0xff]
    %v521 = vld [vmem:[#allocation8 + $0x50] sm:$0xff]
    %v522 = vld [vmem:[#allocation8 + $0x58] sm:$0xff]
    %v523 = vld [vmem:[#allocation8 + $0x60] sm:$0xff]
    %v524 = vld [vmem:[#allocation8 + $0x68] sm:$0xff]
    %v525 = vld [vmem:[#allocation8 + $0x70] sm:$0xff]
    %v526 = vld [vmem:[#allocation8 + $0x78] sm:$0xff]
    %v527 = vld [vmem:[#allocation8 + $0x80] sm:$0xff]
    %v528 = vld [vmem:[#allocation8 + $0x88] sm:$0xff]
    %v529 = vld [vmem:[#allocation8 + $0x90] sm:$0xff]
    %v530 = vld [vmem:[#allocation8 + $0x98] sm:$0xff]
    %v531 = vld [vmem:[#allocation8 + $0xa0] sm:$0xff]
    %v532 = vld [vmem:[#allocation8 + $0xa8] sm:$0xff]
    %v533 = vld [vmem:[#allocation8 + $0xb0] sm:$0xff]
    %v534 = vld [vmem:[#allocation8 + $0xb8] sm:$0xff]
    %v535 = vld [vmem:[#allocation8 + $0xc0] sm:$0xff]
    %v536 = vld [vmem:[#allocation8 + $0xc8] sm:$0xff]
    %v537 = vld [vmem:[#allocation8 + $0xd0] sm:$0xff]
    %v538 = vld [vmem:[#allocation8 + $0xd8] sm:$0xff]
    %v539 = vld [vmem:[#allocation8 + $0xe0] sm:$0xff]
    %v540 = vld [vmem:[#allocation8 + $0xe8] sm:$0xff]
    %v541 = vld [vmem:[#allocation8 + $0xf0] sm:$0xff]
    %v542 = vld [vmem:[#allocation8 + $0xf8] sm:$0xff]
    %v543 = vld [vmem:[#allocation8 + $0x100] sm:$0xff]
    %v544 = vld [vmem:[#allocation8 + $0x108] sm:$0xff]
    %v545 = vld [vmem:[#allocation8 + $0x110] sm:$0xff]
    %v546 = vld [vmem:[#allocation8 + $0x118] sm:$0xff]
    %v547 = vld [vmem:[#allocation8 + $0x120] sm:$0xff]
    %v548 = vld [vmem:[#allocation8 + $0x128] sm:$0xff]
    %v549 = vld [vmem:[#allocation8 + $0x130] sm:$0xff]
    %v550 = vld [vmem:[#allocation8 + $0x138] sm:$0xff]
    %v551 = vld [vmem:[#allocation8 + $0x140] sm:$0xff]
    %v552 = vld [vmem:[#allocation8 + $0x148] sm:$0xff]
    %v553 = vld [vmem:[#allocation8 + $0x150] sm:$0xff]
    %v554 = vld [vmem:[#allocation8 + $0x158] sm:$0xff]
    %v555 = vld [vmem:[#allocation8 + $0x160] sm:$0xff]
    %v556 = vld [vmem:[#allocation8 + $0x168] sm:$0xff]
    %v557 = vld [vmem:[#allocation8 + $0x170] sm:$0xff]
    %v558 = vld [vmem:[#allocation8 + $0x178] sm:$0xff]
    %v559 = vld [vmem:[#allocation8 + $0x180] sm:$0xff]
    %v560 = vld [vmem:[#allocation8 + $0x188] sm:$0xff]
    %v561 = vld [vmem:[#allocation8 + $0x190] sm:$0xff]
    %v562 = vld [vmem:[#allocation8 + $0x198] sm:$0xff]
    %v563 = vld [vmem:[#allocation8 + $0x1a0] sm:$0xff]
    %v564 = vld [vmem:[#allocation8 + $0x1a8] sm:$0xff]
    %v565 = vld [vmem:[#allocation8 + $0x1b0] sm:$0xff]
    %v566 = vld [vmem:[#allocation8 + $0x1b8] sm:$0xff]
    %v567 = vld [vmem:[#allocation8 + $0x1c0] sm:$0xff]
    %v568 = vld [vmem:[#allocation8 + $0x1c8] sm:$0xff]
    %v569 = vld [vmem:[#allocation8 + $0x1d0] sm:$0xff]
    %v570 = vld [vmem:[#allocation8 + $0x1d8] sm:$0xff]
    %v571 = vld [vmem:[#allocation8 + $0x1e0] sm:$0xff]
    %v572 = vld [vmem:[#allocation8 + $0x1e8] sm:$0xff]
    %v573 = vld [vmem:[#allocation8 + $0x1f0] sm:$0xff]
    %v574 = vld [vmem:[#allocation8 + $0x1f8] sm:$0xff]
    %v575 = vld [vmem:[%s6] sm:$0xf]
    %v576 = vpack.c.bf16 %v471, %v471
    %v577 = vpack.c.bf16 %v476, %v476
    %v579 = vlaneseq
    %v580 = vshrl.u32 %v579, 7
    %v581 = vsub.s32 0, %v580
    %v582 = vrot.slane %v575, %v581
    %v583 = vlaneseq
    %v584 = vshrl.u32 %v583, 7
    %v585 = vsub.s32 1, %v584
    %v586 = vrot.slane %v575, %v585
    %v587 = vlaneseq
    %v588 = vshrl.u32 %v587, 7
    %v589 = vsub.s32 2, %v588
    %v590 = vrot.slane %v575, %v589
    %v591 = vlaneseq
    %v592 = vshrl.u32 %v591, 7
    %v593 = vsub.s32 3, %v592
    %v594 = vrot.slane %v575, %v593
    %v663 = vunpack.c.l.b16 %v511
    %v664 = vunpack.c.h.b16 %v511
    %v665 = vunpack.c.l.b16 %v512
    %v666 = vunpack.c.h.b16 %v512
    %v667 = vunpack.c.l.b16 %v513
    %v668 = vunpack.c.h.b16 %v513
    %v669 = vunpack.c.l.b16 %v514
    %v670 = vunpack.c.h.b16 %v514
    %v671 = vunpack.c.l.b16 %v515
    %v672 = vunpack.c.h.b16 %v515
    %v673 = vunpack.c.l.b16 %v516
    %v674 = vunpack.c.h.b16 %v516
    %v675 = vunpack.c.l.b16 %v517
    %v676 = vunpack.c.h.b16 %v517
    %v677 = vunpack.c.l.b16 %v518
    %v678 = vunpack.c.h.b16 %v518
    %v679 = vunpack.c.l.b16 %v519
    %v680 = vunpack.c.h.b16 %v519
    %v681 = vunpack.c.l.b16 %v520
    %v682 = vunpack.c.h.b16 %v520
    %v683 = vunpack.c.l.b16 %v521
    %v684 = vunpack.c.h.b16 %v521
    %v685 = vunpack.c.l.b16 %v522
    %v686 = vunpack.c.h.b16 %v522
    %v687 = vunpack.c.l.b16 %v523
    %v688 = vunpack.c.h.b16 %v523
    %v689 = vunpack.c.l.b16 %v524
    %v690 = vunpack.c.h.b16 %v524
    %v691 = vunpack.c.l.b16 %v525
    %v692 = vunpack.c.h.b16 %v525
    %v693 = vunpack.c.l.b16 %v526
    %v694 = vunpack.c.h.b16 %v526
    %v695 = vunpack.c.l.b16 %v527
    %v696 = vunpack.c.h.b16 %v527
    %v697 = vunpack.c.l.b16 %v528
    %v698 = vunpack.c.h.b16 %v528
    %v699 = vunpack.c.l.b16 %v529
    %v700 = vunpack.c.h.b16 %v529
    %v701 = vunpack.c.l.b16 %v530
    %v702 = vunpack.c.h.b16 %v530
    %v703 = vunpack.c.l.b16 %v531
    %v704 = vunpack.c.h.b16 %v531
    %v705 = vunpack.c.l.b16 %v532
    %v706 = vunpack.c.h.b16 %v532
    %v707 = vunpack.c.l.b16 %v533
    %v708 = vunpack.c.h.b16 %v533
    %v709 = vunpack.c.l.b16 %v534
    %v710 = vunpack.c.h.b16 %v534
    %v711 = vunpack.c.l.b16 %v535
    %v712 = vunpack.c.h.b16 %v535
    %v713 = vunpack.c.l.b16 %v536
    %v714 = vunpack.c.h.b16 %v536
    %v715 = vunpack.c.l.b16 %v537
    %v716 = vunpack.c.h.b16 %v537
    %v717 = vunpack.c.l.b16 %v538
    %v718 = vunpack.c.h.b16 %v538
    %v719 = vunpack.c.l.b16 %v539
    %v720 = vunpack.c.h.b16 %v539
    %v721 = vunpack.c.l.b16 %v540
    %v722 = vunpack.c.h.b16 %v540
    %v723 = vunpack.c.l.b16 %v541
    %v724 = vunpack.c.h.b16 %v541
    %v725 = vunpack.c.l.b16 %v542
    %v726 = vunpack.c.h.b16 %v542
    %v727 = vunpack.c.l.b16 %v543
    %v728 = vunpack.c.h.b16 %v543
    %v729 = vunpack.c.l.b16 %v544
    %v730 = vunpack.c.h.b16 %v544
    %v731 = vunpack.c.l.b16 %v545
    %v732 = vunpack.c.h.b16 %v545
    %v733 = vunpack.c.l.b16 %v546
    %v734 = vunpack.c.h.b16 %v546
    %v735 = vunpack.c.l.b16 %v547
    %v736 = vunpack.c.h.b16 %v547
    %v737 = vunpack.c.l.b16 %v548
    %v738 = vunpack.c.h.b16 %v548
    %v739 = vunpack.c.l.b16 %v549
    %v740 = vunpack.c.h.b16 %v549
    %v741 = vunpack.c.l.b16 %v550
    %v742 = vunpack.c.h.b16 %v550
    %v743 = vunpack.c.l.b16 %v551
    %v744 = vunpack.c.h.b16 %v551
    %v745 = vunpack.c.l.b16 %v552
    %v746 = vunpack.c.h.b16 %v552
    %v747 = vunpack.c.l.b16 %v553
    %v748 = vunpack.c.h.b16 %v553
    %v749 = vunpack.c.l.b16 %v554
    %v750 = vunpack.c.h.b16 %v554
    %v751 = vunpack.c.l.b16 %v555
    %v752 = vunpack.c.h.b16 %v555
    %v753 = vunpack.c.l.b16 %v556
    %v754 = vunpack.c.h.b16 %v556
    %v755 = vunpack.c.l.b16 %v557
    %v756 = vunpack.c.h.b16 %v557
    %v757 = vunpack.c.l.b16 %v558
    %v758 = vunpack.c.h.b16 %v558
    %v759 = vunpack.c.l.b16 %v559
    %v760 = vunpack.c.h.b16 %v559
    %v761 = vunpack.c.l.b16 %v560
    %v762 = vunpack.c.h.b16 %v560
    %v763 = vunpack.c.l.b16 %v561
    %v764 = vunpack.c.h.b16 %v561
    %v765 = vunpack.c.l.b16 %v562
    %v766 = vunpack.c.h.b16 %v562
    %v767 = vunpack.c.l.b16 %v563
    %v768 = vunpack.c.h.b16 %v563
    %v769 = vunpack.c.l.b16 %v564
    %v770 = vunpack.c.h.b16 %v564
    %v771 = vunpack.c.l.b16 %v565
    %v772 = vunpack.c.h.b16 %v565
    %v773 = vunpack.c.l.b16 %v566
    %v774 = vunpack.c.h.b16 %v566
    %v775 = vunpack.c.l.b16 %v567
    %v776 = vunpack.c.h.b16 %v567
    %v777 = vunpack.c.l.b16 %v568
    %v778 = vunpack.c.h.b16 %v568
    %v779 = vunpack.c.l.b16 %v569
    %v780 = vunpack.c.h.b16 %v569
    %v781 = vunpack.c.l.b16 %v570
    %v782 = vunpack.c.h.b16 %v570
    %v783 = vunpack.c.l.b16 %v571
    %v784 = vunpack.c.h.b16 %v571
    %v785 = vunpack.c.l.b16 %v572
    %v786 = vunpack.c.h.b16 %v572
    %v787 = vunpack.c.l.b16 %v573
    %v788 = vunpack.c.h.b16 %v573
    %v789 = vunpack.c.l.b16 %v574
    %v790 = vunpack.c.h.b16 %v574
    %v791 = vpack.c.b16 %v667, %v663
    %v792 = vpack.c.b16 %v668, %v664
    %v793 = vpack.c.b16 %v669, %v665
    %v794 = vpack.c.b16 %v670, %v666
    %v795 = vpack.c.b16 %v675, %v671
    %v796 = vpack.c.b16 %v676, %v672
    %v797 = vpack.c.b16 %v677, %v673
    %v798 = vpack.c.b16 %v678, %v674
    %v799 = vpack.c.b16 %v683, %v679
    %v800 = vpack.c.b16 %v684, %v680
    %v801 = vpack.c.b16 %v685, %v681
    %v802 = vpack.c.b16 %v686, %v682
    %v803 = vpack.c.b16 %v691, %v687
    %v804 = vpack.c.b16 %v692, %v688
    %v805 = vpack.c.b16 %v693, %v689
    %v806 = vpack.c.b16 %v694, %v690
    %v807 = vpack.c.b16 %v699, %v695
    %v808 = vpack.c.b16 %v700, %v696
    %v809 = vpack.c.b16 %v701, %v697
    %v810 = vpack.c.b16 %v702, %v698
    %v811 = vpack.c.b16 %v707, %v703
    %v812 = vpack.c.b16 %v708, %v704
    %v813 = vpack.c.b16 %v709, %v705
    %v814 = vpack.c.b16 %v710, %v706
    %v815 = vpack.c.b16 %v715, %v711
    %v816 = vpack.c.b16 %v716, %v712
    %v817 = vpack.c.b16 %v717, %v713
    %v818 = vpack.c.b16 %v718, %v714
    %v819 = vpack.c.b16 %v723, %v719
    %v820 = vpack.c.b16 %v724, %v720
    %v821 = vpack.c.b16 %v725, %v721
    %v822 = vpack.c.b16 %v726, %v722
    %v823 = vpack.c.b16 %v731, %v727
    %v824 = vpack.c.b16 %v732, %v728
    %v825 = vpack.c.b16 %v733, %v729
    %v826 = vpack.c.b16 %v734, %v730
    %v827 = vpack.c.b16 %v739, %v735
    %v828 = vpack.c.b16 %v740, %v736
    %v829 = vpack.c.b16 %v741, %v737
    %v830 = vpack.c.b16 %v742, %v738
    %v831 = vpack.c.b16 %v747, %v743
    %v832 = vpack.c.b16 %v748, %v744
    %v833 = vpack.c.b16 %v749, %v745
    %v834 = vpack.c.b16 %v750, %v746
    %v835 = vpack.c.b16 %v755, %v751
    %v836 = vpack.c.b16 %v756, %v752
    %v837 = vpack.c.b16 %v757, %v753
    %v838 = vpack.c.b16 %v758, %v754
    %v839 = vpack.c.b16 %v763, %v759
    %v840 = vpack.c.b16 %v764, %v760
    %v841 = vpack.c.b16 %v765, %v761
    %v842 = vpack.c.b16 %v766, %v762
    %v843 = vpack.c.b16 %v771, %v767
    %v844 = vpack.c.b16 %v772, %v768
    %v845 = vpack.c.b16 %v773, %v769
    %v846 = vpack.c.b16 %v774, %v770
    %v847 = vpack.c.b16 %v779, %v775
    %v848 = vpack.c.b16 %v780, %v776
    %v849 = vpack.c.b16 %v781, %v777
    %v850 = vpack.c.b16 %v782, %v778
    %v851 = vpack.c.b16 %v787, %v783
    %v852 = vpack.c.b16 %v788, %v784
    %v853 = vpack.c.b16 %v789, %v785
    %v854 = vpack.c.b16 %v790, %v786
    %919 = vmatprep.subr.bf16.mxu0 %v792
    %920 = vmatpush1.bf16.msra.mxu0 %v791
    %921 = vmatprep.subr.bf16.mxu0 %v796
    %922 = vmatpush1.bf16.msra.mxu0 %v795
    %923 = vmatprep.subr.bf16.mxu0 %v800
    %924 = vmatpush1.bf16.msra.mxu0 %v799
    %925 = vmatprep.subr.bf16.mxu0 %v804
    %926 = vmatpush1.bf16.msra.mxu0 %v803
    %927 = vmatprep.subr.bf16.mxu0 %v808
    %928 = vmatpush1.bf16.msra.mxu0 %v807
    %929 = vmatprep.subr.bf16.mxu0 %v812
    %930 = vmatpush1.bf16.msra.mxu0 %v811
    %931 = vmatprep.subr.bf16.mxu0 %v816
    %932 = vmatpush1.bf16.msra.mxu0 %v815
    %933 = vmatprep.subr.bf16.mxu0 %v820
    %934 = vmatpush1.bf16.msra.mxu0 %v819
    %935 = vmatprep.subr.bf16.mxu0 %v824
    %936 = vmatpush1.bf16.msra.mxu0 %v823
    %937 = vmatprep.subr.bf16.mxu0 %v828
    %938 = vmatpush1.bf16.msra.mxu0 %v827
    %939 = vmatprep.subr.bf16.mxu0 %v832
    %940 = vmatpush1.bf16.msra.mxu0 %v831
    %941 = vmatprep.subr.bf16.mxu0 %v836
    %942 = vmatpush1.bf16.msra.mxu0 %v835
    %943 = vmatprep.subr.bf16.mxu0 %v840
    %944 = vmatpush1.bf16.msra.mxu0 %v839
    %945 = vmatprep.subr.bf16.mxu0 %v844
    %946 = vmatpush1.bf16.msra.mxu0 %v843
    %947 = vmatprep.subr.bf16.mxu0 %v848
    %948 = vmatpush1.bf16.msra.mxu0 %v847
    %949 = vmatprep.subr.bf16.mxu0 %v852
    %950 = vmatpush1.bf16.msra.mxu0 %v851
    %951 = vmatprep.mubr.bf16.mxu0 %v577
    %952 = vmatmul.mubr.bf16.gmra.mrb[0].mxu0 %v576
    %v953 = vpop.f32.mrb[0].mxu0
    %v954 = vadd.f32 %v582, %v953
    %v955 = vpop.f32.mrb[0].mxu0
    %v956 = vadd.f32 %v586, %v955
    %v957 = vpop.f32.mrb[0].mxu0
    %v958 = vpop.f32.mrb[0].mxu0
    %959 = vdwg.mxu0
    %960 = vmatprep.subr.bf16.mxu0 %v794
    %961 = vmatpush1.bf16.msra.mxu0 %v793
    %962 = vmatprep.subr.bf16.mxu0 %v798
    %963 = vmatpush1.bf16.msra.mxu0 %v797
    %964 = vmatprep.subr.bf16.mxu0 %v802
    %965 = vmatpush1.bf16.msra.mxu0 %v801
    %966 = vmatprep.subr.bf16.mxu0 %v806
    %967 = vmatpush1.bf16.msra.mxu0 %v805
    %968 = vmatprep.subr.bf16.mxu0 %v810
    %969 = vmatpush1.bf16.msra.mxu0 %v809
    %970 = vmatprep.subr.bf16.mxu0 %v814
    %971 = vmatpush1.bf16.msra.mxu0 %v813
    %972 = vmatprep.subr.bf16.mxu0 %v818
    %973 = vmatpush1.bf16.msra.mxu0 %v817
    %974 = vmatprep.subr.bf16.mxu0 %v822
    %975 = vmatpush1.bf16.msra.mxu0 %v821
    %976 = vmatprep.subr.bf16.mxu0 %v826
    %977 = vmatpush1.bf16.msra.mxu0 %v825
    %978 = vmatprep.subr.bf16.mxu0 %v830
    %979 = vmatpush1.bf16.msra.mxu0 %v829
    %980 = vmatprep.subr.bf16.mxu0 %v834
    %981 = vmatpush1.bf16.msra.mxu0 %v833
    %982 = vmatprep.subr.bf16.mxu0 %v838
    %983 = vmatpush1.bf16.msra.mxu0 %v837
    %984 = vmatprep.subr.bf16.mxu0 %v842
    %985 = vmatpush1.bf16.msra.mxu0 %v841
    %986 = vmatprep.subr.bf16.mxu0 %v846
    %987 = vmatpush1.bf16.msra.mxu0 %v845
    %988 = vmatprep.subr.bf16.mxu0 %v850
    %989 = vmatpush1.bf16.msra.mxu0 %v849
    %990 = vmatprep.subr.bf16.mxu0 %v854
    %991 = vmatpush1.bf16.msra.mxu0 %v853
    %992 = vmatprep.mubr.bf16.mxu0 %v577
    %993 = vmatmul.mubr.bf16.gmra.mrb[0].mxu0 %v576
    %v994 = vpop.f32.mrb[0].mxu0
    %v995 = vadd.f32 %v590, %v994
    %v996 = vpop.f32.mrb[0].mxu0
    %v997 = vadd.f32 %v594, %v996
    %v998 = vpop.f32.mrb[0].mxu0
    %v999 = vpop.f32.mrb[0].mxu0
    %1000 = vdwg.mxu0
    %v1001 = vmax.f32 %v954, 0.0
    %v1002 = vmax.f32 %v956, 0.0
    %v1003 = vxor.u32 %v995, 2147483648
    %v1004 = vxor.u32 %v997, 2147483648
    %v1005 = vmul.f32 %v1003, 1.442695
    %v1006 = vpow.pop %v1005
    %v1007 = vmul.f32 %v1004, 1.442695
    %v1008 = vpow.pop %v1007
    %v1009 = vadd.f32 %v1006, 1.0
    %v1010 = vadd.f32 %v1008, 1.0
    %v1011 = vrcp.pop %v1009
    %v1012 = vmul.f32 1.0, %v1011
    %v1013 = vrcp.pop %v1010
    %v1014 = vmul.f32 1.0, %v1013
    %v1015 = vmul.f32 %v1012, %v471
    %v1016 = vmul.f32 %v1014, %v476
    %v1017 = vsub.f32 1.0, %v1012
    %v1018 = vsub.f32 1.0, %v1014
    %v1019 = vmul.f32 %v1017, %v1001
    %v1020 = vmul.f32 %v1018, %v1002
    %v1021 = vadd.f32 %v1015, %v1019
    %v1022 = vadd.f32 %v1016, %v1020
    %v1023 = vpack.c.bf16 %v1021, %v1021
    %v1024 = vpack.c.bf16 %v1022, %v1022
    %v1026 = vlaneseq
    %v1027 = vshrl.u32 %v1026, 7
    %v1028 = vsub.s32 0, %v1027
    %v1029 = vrot.slane %v510, %v1028
    %v1063 = vunpack.c.l.b16 %v478
    %v1064 = vunpack.c.l.b16 %v479
    %v1065 = vunpack.c.l.b16 %v480
    %v1066 = vunpack.c.l.b16 %v481
    %v1067 = vunpack.c.l.b16 %v482
    %v1068 = vunpack.c.l.b16 %v483
    %v1069 = vunpack.c.l.b16 %v484
    %v1070 = vunpack.c.l.b16 %v485
    %v1071 = vunpack.c.l.b16 %v486
    %v1072 = vunpack.c.l.b16 %v487
    %v1073 = vunpack.c.l.b16 %v488
    %v1074 = vunpack.c.l.b16 %v489
    %v1075 = vunpack.c.l.b16 %v490
    %v1076 = vunpack.c.l.b16 %v491
    %v1077 = vunpack.c.l.b16 %v492
    %v1078 = vunpack.c.l.b16 %v493
    %v1079 = vunpack.c.l.b16 %v494
    %v1080 = vunpack.c.l.b16 %v495
    %v1081 = vunpack.c.l.b16 %v496
    %v1082 = vunpack.c.l.b16 %v497
    %v1083 = vunpack.c.l.b16 %v498
    %v1084 = vunpack.c.l.b16 %v499
    %v1085 = vunpack.c.l.b16 %v500
    %v1086 = vunpack.c.l.b16 %v501
    %v1087 = vunpack.c.l.b16 %v502
    %v1088 = vunpack.c.l.b16 %v503
    %v1089 = vunpack.c.l.b16 %v504
    %v1090 = vunpack.c.l.b16 %v505
    %v1091 = vunpack.c.l.b16 %v506
    %v1092 = vunpack.c.l.b16 %v507
    %v1093 = vunpack.c.l.b16 %v508
    %v1094 = vunpack.c.l.b16 %v509
    %v1095 = vpack.c.b16 %v1064, %v1063
    %v1096 = vpack.c.b16 %v1066, %v1065
    %v1097 = vpack.c.b16 %v1068, %v1067
    %v1098 = vpack.c.b16 %v1070, %v1069
    %v1099 = vpack.c.b16 %v1072, %v1071
    %v1100 = vpack.c.b16 %v1074, %v1073
    %v1101 = vpack.c.b16 %v1076, %v1075
    %v1102 = vpack.c.b16 %v1078, %v1077
    %v1103 = vpack.c.b16 %v1080, %v1079
    %v1104 = vpack.c.b16 %v1082, %v1081
    %v1105 = vpack.c.b16 %v1084, %v1083
    %v1106 = vpack.c.b16 %v1086, %v1085
    %v1107 = vpack.c.b16 %v1088, %v1087
    %v1108 = vpack.c.b16 %v1090, %v1089
    %v1109 = vpack.c.b16 %v1092, %v1091
    %v1110 = vpack.c.b16 %v1094, %v1093
    %1127 = vmatprep.subr.bf16.mxu0 0
    %1128 = vmatpush1.bf16.msra.mxu0 %v1095
    %1129 = vmatprep.subr.bf16.mxu0 0
    %1130 = vmatpush1.bf16.msra.mxu0 %v1096
    %1131 = vmatprep.subr.bf16.mxu0 0
    %1132 = vmatpush1.bf16.msra.mxu0 %v1097
    %1133 = vmatprep.subr.bf16.mxu0 0
    %1134 = vmatpush1.bf16.msra.mxu0 %v1098
    %1135 = vmatprep.subr.bf16.mxu0 0
    %1136 = vmatpush1.bf16.msra.mxu0 %v1099
    %1137 = vmatprep.subr.bf16.mxu0 0
    %1138 = vmatpush1.bf16.msra.mxu0 %v1100
    %1139 = vmatprep.subr.bf16.mxu0 0
    %1140 = vmatpush1.bf16.msra.mxu0 %v1101
    %1141 = vmatprep.subr.bf16.mxu0 0
    %1142 = vmatpush1.bf16.msra.mxu0 %v1102
    %1143 = vmatprep.subr.bf16.mxu0 0
    %1144 = vmatpush1.bf16.msra.mxu0 %v1103
    %1145 = vmatprep.subr.bf16.mxu0 0
    %1146 = vmatpush1.bf16.msra.mxu0 %v1104
    %1147 = vmatprep.subr.bf16.mxu0 0
    %1148 = vmatpush1.bf16.msra.mxu0 %v1105
    %1149 = vmatprep.subr.bf16.mxu0 0
    %1150 = vmatpush1.bf16.msra.mxu0 %v1106
    %1151 = vmatprep.subr.bf16.mxu0 0
    %1152 = vmatpush1.bf16.msra.mxu0 %v1107
    %1153 = vmatprep.subr.bf16.mxu0 0
    %1154 = vmatpush1.bf16.msra.mxu0 %v1108
    %1155 = vmatprep.subr.bf16.mxu0 0
    %1156 = vmatpush1.bf16.msra.mxu0 %v1109
    %1157 = vmatprep.subr.bf16.mxu0 0
    %1158 = vmatpush1.bf16.msra.mxu0 %v1110
    %1159 = vmatprep.mubr.bf16.mxu0 %v1024
    %1160 = vmatmul.mubr.bf16.gmra.mrb[0].mxu0 %v1023
    %v1161 = vpop.f32.mrb[0].mxu0
    %v1162 = vadd.f32 %v1029, %v1161
    %v1163 = vpop.f32.mrb[0].mxu0
    %v1164 = vpop.f32.mrb[0].mxu0
    %v1165 = vpop.f32.mrb[0].mxu0
    %1166 = vdwg.mxu0
    %1167 = vst [vmem:[#allocation11] sm:$0x3] %v1162
    // Predicated region
    $region58: #{tpu_custom_call.1} parent=1 // pred_check
      _
    $region59: #{tpu_custom_call.1} parent=1 // pred_check_branch
      %1169 = sbr.rel (0) target = $region61
    $region60: #{tpu_custom_call.1} parent=1 // pred_region
      %s1171 = ssub.s32 32, 32
      %1172 = vsyncadd [#allocation4], %s1171
      %s1174 = sshll.u32 [#allocation11], 4
      %s1175 = int_to_ptr.vmem [resolvable:$true] %s1174
      %1177 = dma.vmem_to_hbm [thread:$0]  %s1175, 32, %s9, [#allocation4]
    $region61: #{tpu_custom_call.1} parent=1 // pred_fallthru
      _
    // Predicated region
    $region62: #{tpu_custom_call.1} parent=1 // pred_check
      _
    $region63: #{tpu_custom_call.1} parent=1 // pred_check_branch
      %1179 = sbr.rel (0) target = $region65
    $region64: #{tpu_custom_call.1} parent=1 // pred_region
      %1180 = dma.done [#allocation4], 32
    $region65: #{tpu_custom_call.1} parent=1 // pred_fallthru
      _
    %1181 = vsyncpa [#allocation3], 1
    %1182 = vsyncpa [#allocation6], 1
    %1183 = vsyncpa [#allocation9], 1
    %1184 = vsyncpa [#allocation4], 1

// kernel: tpu_custom_call.1
$region0: #{tpu_custom_call.1}
  #allocation0 [shape = 'u32[]', space=smem, size = 0x4, offset = 0x4, fixed_abs, tag = 'smem constant byte address 0x4 - core index']
  #allocation1 [shape = 'u32[144,128]{1,0:T(1,128)}', space=vmem, size = 0x12000, scoped, tag = 'internal scratch']
  %s0 = inlined_call_operand.hbm [shape: bf16[2,8,32], index: 0, kind: input, shape index: {}]
  %s1 = inlined_call_operand.hbm [shape: bf16[2,32,128], index: 1, kind: input, shape index: {}]
  %s2 = inlined_call_operand.hbm [shape: bf16[3,32,128], index: 2, kind: input, shape index: {}]
  %s3 = inlined_call_operand.vmem [shape: f32[1,128], index: 3, kind: input, shape index: {}]
  %s4 = inlined_call_operand.vmem [shape: f32[1,128], index: 4, kind: input, shape index: {}]
  %s5 = inlined_call_operand.hbm [shape: bf16[256,512], index: 5, kind: input, shape index: {}]
  %s6 = inlined_call_operand.vmem [shape: f32[1,512], index: 6, kind: input, shape index: {}]
  %s7 = inlined_call_operand.hbm [shape: bf16[256,128], index: 7, kind: input, shape index: {}]
  %s8 = inlined_call_operand.vmem [shape: f32[1,128], index: 8, kind: input, shape index: {}]
  %s9 = inlined_call_operand.hbm [shape: f32[2,128], index: 9, kind: output, shape index: {}]
  %s10 = sld [smem:[#allocation0]]
  $region66: #{tpu_custom_call.1} parent=0
    _
  %s12 = ssub.s32 1, %s10
  %s13 = scalar_select 0, %s12, %s10
  $region1: #{tpu_custom_call.1} parent=0
    #allocation2 [shape = 'u8[4096]{0}', space=vmem, size = 0x1000, scoped, tag = 'input window, operand 0, single buffered']
    #allocation3 [shape = 's32[1]{0}', space=sflag, size = 0x4, scoped, tag = 'scoped memory for tpu_custom_call.1']
    #allocation4 [shape = 's32[1]{0}', space=sflag, size = 0x4, scoped, tag = 'scoped memory for tpu_custom_call.1']
    #allocation5 [shape = 'u8[16384]{0}', space=vmem, size = 0x4000, scoped, tag = 'input window, operand 1, single buffered']
    #allocation6 [shape = 's32[1]{0}', space=sflag, size = 0x4, scoped, tag = 'scoped memory for tpu_custom_call.1']
    #allocation7 [shape = 'u8[24576]{0}', space=vmem, size = 0x6000, scoped, tag = 'input window, operand 2, single buffered']
    #allocation8 [shape = 'u8[262144]{0}', space=vmem, size = 0x40000, scoped, tag = 'input window, operand 5, single buffered']
    #allocation9 [shape = 's32[1]{0}', space=sflag, size = 0x4, scoped, tag = 'scoped memory for tpu_custom_call.1']
    #allocation10 [shape = 'u8[65536]{0}', space=vmem, size = 0x10000, scoped, tag = 'input window, operand 7, single buffered']
    #allocation11 [shape = 'u8[1024]{0}', space=vmem, size = 0x400, scoped, tag = 'output window, operand 0, single buffered']
    %14 = vsyncpa [#allocation3], 0
    %15 = vsyncpa [#allocation6], 0
    %16 = vsyncpa [#allocation9], 0
    %17 = vsyncpa [#allocation4], 0
    // Predicated region
    $region2: #{tpu_custom_call.1} parent=1 // pred_check
      _
    $region3: #{tpu_custom_call.1} parent=1 // pred_check_branch
      %19 = sbr.rel (0) target = $region5
    $region4: #{tpu_custom_call.1} parent=1 // pred_region
      %s21 = ssub.s32 128, 128
      %22 = vsyncadd [#allocation3], %s21
      %s23 = sshll.u32 [#allocation2], 4
      %s24 = int_to_ptr.vmem [resolvable:$true] %s23
      %29 = dma.hbm_to_vmem [thread:$0]  %s0, 128, %s24, [#allocation3], 64, 64, 4
    $region5: #{tpu_custom_call.1} parent=1 // pred_fallthru
      _
    // Predicated region
    $region6: #{tpu_custom_call.1} parent=1 // pred_check
      _
    $region7: #{tpu_custom_call.1} parent=1 // pred_check_branch
      %31 = sbr.rel (0) target = $region9
    $region8: #{tpu_custom_call.1} parent=1 // pred_region
      %s33 = ssub.s32 512, 512
      %34 = vsyncadd [#allocation6], %s33
      %s35 = sshll.u32 [#allocation5], 4
      %s36 = int_to_ptr.vmem [resolvable:$true] %s35
      %41 = dma.hbm_to_vmem [thread:$0]  %s1, 512, %s36, [#allocation6], 64, 64, 4
    $region9: #{tpu_custom_call.1} parent=1 // pred_fallthru
      _
    // Predicated region
    $region10: #{tpu_custom_call.1} parent=1 // pred_check
      _
    $region11: #{tpu_custom_call.1} parent=1 // pred_check_branch
      %43 = sbr.rel (0) target = $region13
    $region12: #{tpu_custom_call.1} parent=1 // pred_region
      %s45 = ssub.s32 768, 768
      %46 = vsyncadd [#allocation6], %s45
      %s47 = sshll.u32 [#allocation7], 4
      %s48 = int_to_ptr.vmem [resolvable:$true] %s47
      %53 = dma.hbm_to_vmem [thread:$0]  %s2, 768, %s48, [#allocation6], 64, 64, 4
    $region13: #{tpu_custom_call.1} parent=1 // pred_fallthru
      _
    // Predicated region
    $region14: #{tpu_custom_call.1} parent=1 // pred_check
      _
    $region15: #{tpu_custom_call.1} parent=1 // pred_check_branch
      %55 = sbr.rel (0) target = $region17
    $region16: #{tpu_custom_call.1} parent=1 // pred_region
      _
    $region17: #{tpu_custom_call.1} parent=1 // pred_fallthru
      _
    // Predicated region
    $region18: #{tpu_custom_call.1} parent=1 // pred_check
      _
    $region19: #{tpu_custom_call.1} parent=1 // pred_check_branch
      %57 = sbr.rel (0) target = $region21
    $region20: #{tpu_custom_call.1} parent=1 // pred_region
      _
    $region21: #{tpu_custom_call.1} parent=1 // pred_fallthru
      _
    // Predicated region
    $region22: #{tpu_custom_call.1} parent=1 // pred_check
      _
    $region23: #{tpu_custom_call.1} parent=1 // pred_check_branch
      %59 = sbr.rel (0) target = $region25
    $region24: #{tpu_custom_call.1} parent=1 // pred_region
      %s61 = ssub.s32 8192, 8192
      %62 = vsyncadd [#allocation9], %s61
      %s63 = sshll.u32 [#allocation8], 4
      %s64 = int_to_ptr.vmem [resolvable:$true] %s63
      %69 = dma.hbm_to_vmem [thread:$0]  %s5, 8192, %s64, [#allocation9], 256, 256, 16
    $region25: #{tpu_custom_call.1} parent=1 // pred_fallthru
      _
    // Predicated region
    $region26: #{tpu_custom_call.1} parent=1 // pred_check
      _
    $region27: #{tpu_custom_call.1} parent=1 // pred_check_branch
      %71 = sbr.rel (0) target = $region29
    $region28: #{tpu_custom_call.1} parent=1 // pred_region
      _
    $region29: #{tpu_custom_call.1} parent=1 // pred_fallthru
      _
    // Predicated region
    $region30: #{tpu_custom_call.1} parent=1 // pred_check
      _
    $region31: #{tpu_custom_call.1} parent=1 // pred_check_branch
      %73 = sbr.rel (0) target = $region33
    $region32: #{tpu_custom_call.1} parent=1 // pred_region
      %s75 = ssub.s32 2048, 2048
      %76 = vsyncadd [#allocation9], %s75
      %s77 = sshll.u32 [#allocation10], 4
      %s78 = int_to_ptr.vmem [resolvable:$true] %s77
      %83 = dma.hbm_to_vmem [thread:$0]  %s7, 2048, %s78, [#allocation9], 64, 64, 4
    $region33: #{tpu_custom_call.1} parent=1 // pred_fallthru
      _
    // Predicated region
    $region34: #{tpu_custom_call.1} parent=1 // pred_check
      _
    $region35: #{tpu_custom_call.1} parent=1 // pred_check_branch
      %85 = sbr.rel (0) target = $region37
    $region36: #{tpu_custom_call.1} parent=1 // pred_region
      _
    $region37: #{tpu_custom_call.1} parent=1 // pred_fallthru
      _
    // Predicated region
    $region38: #{tpu_custom_call.1} parent=1 // pred_check
      _
    $region39: #{tpu_custom_call.1} parent=1 // pred_check_branch
      %87 = sbr.rel (0) target = $region41
    $region40: #{tpu_custom_call.1} parent=1 // pred_region
      %88 = dma.done [#allocation3], 128
    $region41: #{tpu_custom_call.1} parent=1 // pred_fallthru
      _
    // Predicated region
    $region42: #{tpu_custom_call.1} parent=1 // pred_check
      _
    $region43: #{tpu_custom_call.1} parent=1 // pred_check_branch
      %90 = sbr.rel (0) target = $region45
    $region44: #{tpu_custom_call.1} parent=1 // pred_region
      %91 = dma.done [#allocation6], 512
    $region45: #{tpu_custom_call.1} parent=1 // pred_fallthru
      _
    // Predicated region
    $region46: #{tpu_custom_call.1} parent=1 // pred_check
      _
    $region47: #{tpu_custom_call.1} parent=1 // pred_check_branch
      %93 = sbr.rel (0) target = $region49
    $region48: #{tpu_custom_call.1} parent=1 // pred_region
      %94 = dma.done [#allocation6], 768
    $region49: #{tpu_custom_call.1} parent=1 // pred_fallthru
      _
    // Predicated region
    $region50: #{tpu_custom_call.1} parent=1 // pred_check
      _
    $region51: #{tpu_custom_call.1} parent=1 // pred_check_branch
      %96 = sbr.rel (0) target = $region53
    $region52: #{tpu_custom_call.1} parent=1 // pred_region
      %97 = dma.done [#allocation9], 8192
    $region53: #{tpu_custom_call.1} parent=1 // pred_fallthru
      _
    // Predicated region
    $region54: #{tpu_custom_call.1} parent=1 // pred_check
      _
    $region55: #{tpu_custom_call.1} parent=1 // pred_check_branch
      %99 = sbr.rel (0) target = $region57
    $region56: #{tpu_custom_call.1} parent=1 // pred_region
      %100 = dma.done [#allocation9], 2048
    $region57: #{tpu_custom_call.1} parent=1 // pred_fallthru
      _
    %v102 = vld [vmem:[#allocation2] sm:$0xf]
    %v103 = vld [vmem:[#allocation2 + $0x4] sm:$0xf]
    %v104 = vld [vmem:[#allocation5] sm:$0xf]
    %v105 = vld [vmem:[#allocation5 + $0x4] sm:$0xf]
    %v106 = vld [vmem:[#allocation5 + $0x8] sm:$0xf]
    %v107 = vld [vmem:[#allocation5 + $0xc] sm:$0xf]
    %v110 = vunpack.c.l.b16 %v102
    %v111 = vunpack.c.l.b16 %v103
    %v112 = vpack.c.b16 %v111, %v110
    %v117 = vunpack.c.l.b16 %v104
    %v118 = vunpack.c.l.b16 %v105
    %v119 = vunpack.c.l.b16 %v106
    %v120 = vunpack.c.l.b16 %v107
    %v121 = vpack.c.b16 %v118, %v117
    %v122 = vpack.c.b16 %v120, %v119
    %vm125 = vcmask 261120
    %v127 = vsel %vm125, %v112, 0
    %129 = vmatprep.subr.bf16.mxu0 0
    %130 = vmatpush1.bf16.msra.mxu0 %v121
    %131 = vmatprep.subr.bf16.mxu0 0
    %132 = vmatpush1.bf16.msra.mxu0 %v122
    %133 = vmatprep.subr.bf16.mxu0 0
    %134 = vmatpush1.bf16.msra.mxu0 0
    %135 = vmatprep.subr.bf16.mxu0 0
    %136 = vmatpush1.bf16.msra.mxu0 0
    %137 = vmatprep.subr.bf16.mxu0 0
    %138 = vmatpush1.bf16.msra.mxu0 0
    %139 = vmatprep.subr.bf16.mxu0 0
    %140 = vmatpush1.bf16.msra.mxu0 0
    %141 = vmatprep.subr.bf16.mxu0 0
    %142 = vmatpush1.bf16.msra.mxu0 0
    %143 = vmatprep.subr.bf16.mxu0 0
    %144 = vmatpush1.bf16.msra.mxu0 0
    %145 = vmatprep.subr.bf16.mxu0 0
    %146 = vmatpush1.bf16.msra.mxu0 0
    %147 = vmatprep.subr.bf16.mxu0 0
    %148 = vmatpush1.bf16.msra.mxu0 0
    %149 = vmatprep.subr.bf16.mxu0 0
    %150 = vmatpush1.bf16.msra.mxu0 0
    %151 = vmatprep.subr.bf16.mxu0 0
    %152 = vmatpush1.bf16.msra.mxu0 0
    %153 = vmatprep.subr.bf16.mxu0 0
    %154 = vmatpush1.bf16.msra.mxu0 0
    %155 = vmatprep.subr.bf16.mxu0 0
    %156 = vmatpush1.bf16.msra.mxu0 0
    %157 = vmatprep.subr.bf16.mxu0 0
    %158 = vmatpush1.bf16.msra.mxu0 0
    %159 = vmatprep.subr.bf16.mxu0 0
    %160 = vmatpush1.bf16.msra.mxu0 0
    %161 = vmatprep.mubr.bf16.mxu0 0
    %162 = vmatmul.mubr.bf16.gmra.mrb[0].mxu0 %v127
    %v163 = vpop.f32.mrb[0].mxu0
    %v164 = vadd.f32 0.0, %v163
    %v165 = vpop.f32.mrb[0].mxu0
    %v166 = vpop.f32.mrb[0].mxu0
    %v167 = vadd.f32 0.0, %v166
    %v168 = vpop.f32.mrb[0].mxu0
    %169 = vdwg.mxu0
    %s170 = scalar_lea.vmem [#allocation5], 16
    %v171 = vld [vmem:[%s170] sm:$0xf]
    %v172 = vld [vmem:[%s170 + $0x4] sm:$0xf]
    %v173 = vld [vmem:[%s170 + $0x8] sm:$0xf]
    %v174 = vld [vmem:[%s170 + $0xc] sm:$0xf]
    %v179 = vunpack.c.l.b16 %v171
    %v180 = vunpack.c.l.b16 %v172
    %v181 = vunpack.c.l.b16 %v173
    %v182 = vunpack.c.l.b16 %v174
    %v183 = vpack.c.b16 %v180, %v179
    %v184 = vpack.c.b16 %v182, %v181
    %187 = vmatprep.subr.bf16.mxu0 0
    %188 = vmatpush1.bf16.msra.mxu0 %v183
    %189 = vmatprep.subr.bf16.mxu0 0
    %190 = vmatpush1.bf16.msra.mxu0 %v184
    %191 = vmatprep.subr.bf16.mxu0 0
    %192 = vmatpush1.bf16.msra.mxu0 0
    %193 = vmatprep.subr.bf16.mxu0 0
    %194 = vmatpush1.bf16.msra.mxu0 0
    %195 = vmatprep.subr.bf16.mxu0 0
    %196 = vmatpush1.bf16.msra.mxu0 0
    %197 = vmatprep.subr.bf16.mxu0 0
    %198 = vmatpush1.bf16.msra.mxu0 0
    %199 = vmatprep.subr.bf16.mxu0 0
    %200 = vmatpush1.bf16.msra.mxu0 0
    %201 = vmatprep.subr.bf16.mxu0 0
    %202 = vmatpush1.bf16.msra.mxu0 0
    %203 = vmatprep.subr.bf16.mxu0 0
    %204 = vmatpush1.bf16.msra.mxu0 0
    %205 = vmatprep.subr.bf16.mxu0 0
    %206 = vmatpush1.bf16.msra.mxu0 0
    %207 = vmatprep.subr.bf16.mxu0 0
    %208 = vmatpush1.bf16.msra.mxu0 0
    %209 = vmatprep.subr.bf16.mxu0 0
    %210 = vmatpush1.bf16.msra.mxu0 0
    %211 = vmatprep.subr.bf16.mxu0 0
    %212 = vmatpush1.bf16.msra.mxu0 0
    %213 = vmatprep.subr.bf16.mxu0 0
    %214 = vmatpush1.bf16.msra.mxu0 0
    %215 = vmatprep.subr.bf16.mxu0 0
    %216 = vmatpush1.bf16.msra.mxu0 0
    %217 = vmatprep.subr.bf16.mxu0 0
    %218 = vmatpush1.bf16.msra.mxu0 0
    %219 = vmatprep.mubr.bf16.mxu0 0
    %220 = vmatmul.mubr.bf16.gmra.mrb[0].mxu0 %v127
    %v221 = vpop.f32.mrb[0].mxu0
    %v222 = vadd.f32 0.0, %v221
    %v223 = vpop.f32.mrb[0].mxu0
    %v224 = vpop.f32.mrb[0].mxu0
    %v225 = vadd.f32 0.0, %v224
    %v226 = vpop.f32.mrb[0].mxu0
    %227 = vdwg.mxu0
    %v228 = vrot.slane %v222, 1
    %v229 = vrot.slane %v225, 1
    %v230 = vadd.f32 %v164, %v228
    %v231 = vadd.f32 %v167, %v229
    %v232 = vlaneseq
    %v233 = vshrl.u32 %v232, 7
    %vm234 = vcmp.lt.s32.totalorder %v233, 7
    %v235 = vsel %vm234, %v230, -inf
    %v236 = vsel %vm234, %v231, -inf
    %v237 = vrot.slane %v235, 4
    %v238 = vmax.f32 %v235, %v237
    %v239 = vrot.slane %v238, 2
    %v240 = vmax.f32 %v238, %v239
    %v241 = vrot.slane %v240, 1
    %v242 = vmax.f32 %v240, %v241
    %v243 = vrot.slane %v236, 4
    %v244 = vmax.f32 %v236, %v243
    %v245 = vrot.slane %v244, 2
    %v246 = vmax.f32 %v244, %v245
    %v247 = vrot.slane %v246, 1
    %v248 = vmax.f32 %v246, %v247
    %v249 = vld [vmem:[%s3] sm:$0x1]
    %v251 = vlaneseq
    %v252 = vshrl.u32 %v251, 7
    %v253 = vsub.s32 0, %v252
    %v254 = vrot.slane %v249, %v253
    %v256 = vadd.f32 %v242, %v254
    %v257 = vadd.f32 %v248, %v254
    %v258 = vmax.f32 %v256, 0.0
    %v259 = vmax.f32 %v257, 0.0
    %v260 = vld [vmem:[#allocation7] sm:$0xf]
    %v261 = vld [vmem:[#allocation7 + $0x4] sm:$0xf]
    %v262 = vld [vmem:[#allocation7 + $0x8] sm:$0xf]
    %v263 = vld [vmem:[#allocation7 + $0xc] sm:$0xf]
    %v268 = vunpack.c.l.b16 %v260
    %v269 = vunpack.c.l.b16 %v261
    %v270 = vunpack.c.l.b16 %v262
    %v271 = vunpack.c.l.b16 %v263
    %v272 = vpack.c.b16 %v269, %v268
    %v273 = vpack.c.b16 %v271, %v270
    %276 = vmatprep.subr.bf16.mxu0 0
    %277 = vmatpush1.bf16.msra.mxu0 %v272
    %278 = vmatprep.subr.bf16.mxu0 0
    %279 = vmatpush1.bf16.msra.mxu0 %v273
    %280 = vmatprep.subr.bf16.mxu0 0
    %281 = vmatpush1.bf16.msra.mxu0 0
    %282 = vmatprep.subr.bf16.mxu0 0
    %283 = vmatpush1.bf16.msra.mxu0 0
    %284 = vmatprep.subr.bf16.mxu0 0
    %285 = vmatpush1.bf16.msra.mxu0 0
    %286 = vmatprep.subr.bf16.mxu0 0
    %287 = vmatpush1.bf16.msra.mxu0 0
    %288 = vmatprep.subr.bf16.mxu0 0
    %289 = vmatpush1.bf16.msra.mxu0 0
    %290 = vmatprep.subr.bf16.mxu0 0
    %291 = vmatpush1.bf16.msra.mxu0 0
    %292 = vmatprep.subr.bf16.mxu0 0
    %293 = vmatpush1.bf16.msra.mxu0 0
    %294 = vmatprep.subr.bf16.mxu0 0
    %295 = vmatpush1.bf16.msra.mxu0 0
    %296 = vmatprep.subr.bf16.mxu0 0
    %297 = vmatpush1.bf16.msra.mxu0 0
    %298 = vmatprep.subr.bf16.mxu0 0
    %299 = vmatpush1.bf16.msra.mxu0 0
    %300 = vmatprep.subr.bf16.mxu0 0
    %301 = vmatpush1.bf16.msra.mxu0 0
    %302 = vmatprep.subr.bf16.mxu0 0
    %303 = vmatpush1.bf16.msra.mxu0 0
    %304 = vmatprep.subr.bf16.mxu0 0
    %305 = vmatpush1.bf16.msra.mxu0 0
    %306 = vmatprep.subr.bf16.mxu0 0
    %307 = vmatpush1.bf16.msra.mxu0 0
    %308 = vmatprep.mubr.bf16.mxu0 0
    %309 = vmatmul.mubr.bf16.gmra.mrb[0].mxu0 %v127
    %v310 = vpop.f32.mrb[0].mxu0
    %v311 = vadd.f32 0.0, %v310
    %v312 = vpop.f32.mrb[0].mxu0
    %v313 = vpop.f32.mrb[0].mxu0
    %v314 = vadd.f32 0.0, %v313
    %v315 = vpop.f32.mrb[0].mxu0
    %316 = vdwg.mxu0
    %s317 = scalar_lea.vmem [#allocation7], 16
    %v318 = vld [vmem:[%s317] sm:$0xf]
    %v319 = vld [vmem:[%s317 + $0x4] sm:$0xf]
    %v320 = vld [vmem:[%s317 + $0x8] sm:$0xf]
    %v321 = vld [vmem:[%s317 + $0xc] sm:$0xf]
    %v326 = vunpack.c.l.b16 %v318
    %v327 = vunpack.c.l.b16 %v319
    %v328 = vunpack.c.l.b16 %v320
    %v329 = vunpack.c.l.b16 %v321
    %v330 = vpack.c.b16 %v327, %v326
    %v331 = vpack.c.b16 %v329, %v328
    %334 = vmatprep.subr.bf16.mxu0 0
    %335 = vmatpush1.bf16.msra.mxu0 %v330
    %336 = vmatprep.subr.bf16.mxu0 0
    %337 = vmatpush1.bf16.msra.mxu0 %v331
    %338 = vmatprep.subr.bf16.mxu0 0
    %339 = vmatpush1.bf16.msra.mxu0 0
    %340 = vmatprep.subr.bf16.mxu0 0
    %341 = vmatpush1.bf16.msra.mxu0 0
    %342 = vmatprep.subr.bf16.mxu0 0
    %343 = vmatpush1.bf16.msra.mxu0 0
    %344 = vmatprep.subr.bf16.mxu0 0
    %345 = vmatpush1.bf16.msra.mxu0 0
    %346 = vmatprep.subr.bf16.mxu0 0
    %347 = vmatpush1.bf16.msra.mxu0 0
    %348 = vmatprep.subr.bf16.mxu0 0
    %349 = vmatpush1.bf16.msra.mxu0 0
    %350 = vmatprep.subr.bf16.mxu0 0
    %351 = vmatpush1.bf16.msra.mxu0 0
    %352 = vmatprep.subr.bf16.mxu0 0
    %353 = vmatpush1.bf16.msra.mxu0 0
    %354 = vmatprep.subr.bf16.mxu0 0
    %355 = vmatpush1.bf16.msra.mxu0 0
    %356 = vmatprep.subr.bf16.mxu0 0
    %357 = vmatpush1.bf16.msra.mxu0 0
    %358 = vmatprep.subr.bf16.mxu0 0
    %359 = vmatpush1.bf16.msra.mxu0 0
    %360 = vmatprep.subr.bf16.mxu0 0
    %361 = vmatpush1.bf16.msra.mxu0 0
    %362 = vmatprep.subr.bf16.mxu0 0
    %363 = vmatpush1.bf16.msra.mxu0 0
    %364 = vmatprep.subr.bf16.mxu0 0
    %365 = vmatpush1.bf16.msra.mxu0 0
    %366 = vmatprep.mubr.bf16.mxu0 0
    %367 = vmatmul.mubr.bf16.gmra.mrb[0].mxu0 %v127
    %v368 = vpop.f32.mrb[0].mxu0
    %v369 = vadd.f32 0.0, %v368
    %v370 = vpop.f32.mrb[0].mxu0
    %v371 = vpop.f32.mrb[0].mxu0
    %v372 = vadd.f32 0.0, %v371
    %v373 = vpop.f32.mrb[0].mxu0
    %374 = vdwg.mxu0
    %v375 = vrot.slane %v369, 1
    %v376 = vrot.slane %v372, 1
    %v377 = vadd.f32 %v311, %v375
    %v378 = vadd.f32 %v314, %v376
    %s379 = scalar_lea.vmem [#allocation7], 32
    %v380 = vld [vmem:[%s379] sm:$0xf]
    %v381 = vld [vmem:[%s379 + $0x4] sm:$0xf]
    %v382 = vld [vmem:[%s379 + $0x8] sm:$0xf]
    %v383 = vld [vmem:[%s379 + $0xc] sm:$0xf]
    %v388 = vunpack.c.l.b16 %v380
    %v389 = vunpack.c.l.b16 %v381
    %v390 = vunpack.c.l.b16 %v382
    %v391 = vunpack.c.l.b16 %v383
    %v392 = vpack.c.b16 %v389, %v388
    %v393 = vpack.c.b16 %v391, %v390
    %396 = vmatprep.subr.bf16.mxu0 0
    %397 = vmatpush1.bf16.msra.mxu0 %v392
    %398 = vmatprep.subr.bf16.mxu0 0
    %399 = vmatpush1.bf16.msra.mxu0 %v393
    %400 = vmatprep.subr.bf16.mxu0 0
    %401 = vmatpush1.bf16.msra.mxu0 0
    %402 = vmatprep.subr.bf16.mxu0 0
    %403 = vmatpush1.bf16.msra.mxu0 0
    %404 = vmatprep.subr.bf16.mxu0 0
    %405 = vmatpush1.bf16.msra.mxu0 0
    %406 = vmatprep.subr.bf16.mxu0 0
    %407 = vmatpush1.bf16.msra.mxu0 0
    %408 = vmatprep.subr.bf16.mxu0 0
    %409 = vmatpush1.bf16.msra.mxu0 0
    %410 = vmatprep.subr.bf16.mxu0 0
    %411 = vmatpush1.bf16.msra.mxu0 0
    %412 = vmatprep.subr.bf16.mxu0 0
    %413 = vmatpush1.bf16.msra.mxu0 0
    %414 = vmatprep.subr.bf16.mxu0 0
    %415 = vmatpush1.bf16.msra.mxu0 0
    %416 = vmatprep.subr.bf16.mxu0 0
    %417 = vmatpush1.bf16.msra.mxu0 0
    %418 = vmatprep.subr.bf16.mxu0 0
    %419 = vmatpush1.bf16.msra.mxu0 0
    %420 = vmatprep.subr.bf16.mxu0 0
    %421 = vmatpush1.bf16.msra.mxu0 0
    %422 = vmatprep.subr.bf16.mxu0 0
    %423 = vmatpush1.bf16.msra.mxu0 0
    %424 = vmatprep.subr.bf16.mxu0 0
    %425 = vmatpush1.bf16.msra.mxu0 0
    %426 = vmatprep.subr.bf16.mxu0 0
    %427 = vmatpush1.bf16.msra.mxu0 0
    %428 = vmatprep.mubr.bf16.mxu0 0
    %429 = vmatmul.mubr.bf16.gmra.mrb[0].mxu0 %v127
    %v430 = vpop.f32.mrb[0].mxu0
    %v431 = vadd.f32 0.0, %v430
    %v432 = vpop.f32.mrb[0].mxu0
    %v433 = vpop.f32.mrb[0].mxu0
    %v434 = vadd.f32 0.0, %v433
    %v435 = vpop.f32.mrb[0].mxu0
    %436 = vdwg.mxu0
    %v437 = vrot.slane %v431, 2
    %v438 = vrot.slane %v434, 2
    %v439 = vadd.f32 %v377, %v437
    %v440 = vadd.f32 %v378, %v438
    %vm441 = vcmp.lt.s32.totalorder %v233, 6
    %v442 = vsel %vm441, %v439, -inf
    %v443 = vsel %vm441, %v440, -inf
    %v444 = vrot.slane %v442, 4
    %v445 = vmax.f32 %v442, %v444
    %v446 = vrot.slane %v445, 2
    %v447 = vmax.f32 %v445, %v446
    %v448 = vrot.slane %v447, 1
    %v449 = vmax.f32 %v447, %v448
    %v450 = vrot.slane %v443, 4
    %v451 = vmax.f32 %v443, %v450
    %v452 = vrot.slane %v451, 2
    %v453 = vmax.f32 %v451, %v452
    %v454 = vrot.slane %v453, 1
    %v455 = vmax.f32 %v453, %v454
    %v456 = vld [vmem:[%s4] sm:$0x1]
    %v458 = vlaneseq
    %v459 = vshrl.u32 %v458, 7
    %v460 = vsub.s32 0, %v459
    %v461 = vrot.slane %v456, %v460
    %v463 = vadd.f32 %v449, %v461
    %v464 = vadd.f32 %v455, %v461
    %v465 = vmax.f32 %v463, 0.0
    %v466 = vmax.f32 %v464, 0.0
    %v469 = vrot.slane %v259, 7
    %vm470 = vcmask 1041409
    %v471 = vsel %vm470, %v469, %v258
    %v475 = vrot.slane %v466, 7
    %v476 = vsel %vm470, %v475, %v465
    %v478 = vld [vmem:[#allocation10] sm:$0xf]
    %v479 = vld [vmem:[#allocation10 + $0x4] sm:$0xf]
    %v480 = vld [vmem:[#allocation10 + $0x8] sm:$0xf]
    %v481 = vld [vmem:[#allocation10 + $0xc] sm:$0xf]
    %v482 = vld [vmem:[#allocation10 + $0x10] sm:$0xf]
    %v483 = vld [vmem:[#allocation10 + $0x14] sm:$0xf]
    %v484 = vld [vmem:[#allocation10 + $0x18] sm:$0xf]
    %v485 = vld [vmem:[#allocation10 + $0x1c] sm:$0xf]
    %v486 = vld [vmem:[#allocation10 + $0x20] sm:$0xf]
    %v487 = vld [vmem:[#allocation10 + $0x24] sm:$0xf]
    %v488 = vld [vmem:[#allocation10 + $0x28] sm:$0xf]
    %v489 = vld [vmem:[#allocation10 + $0x2c] sm:$0xf]
    %v490 = vld [vmem:[#allocation10 + $0x30] sm:$0xf]
    %v491 = vld [vmem:[#allocation10 + $0x34] sm:$0xf]
    %v492 = vld [vmem:[#allocation10 + $0x38] sm:$0xf]
    %v493 = vld [vmem:[#allocation10 + $0x3c] sm:$0xf]
    %v494 = vld [vmem:[#allocation10 + $0x40] sm:$0xf]
    %v495 = vld [vmem:[#allocation10 + $0x44] sm:$0xf]
    %v496 = vld [vmem:[#allocation10 + $0x48] sm:$0xf]
    %v497 = vld [vmem:[#allocation10 + $0x4c] sm:$0xf]
    %v498 = vld [vmem:[#allocation10 + $0x50] sm:$0xf]
    %v499 = vld [vmem:[#allocation10 + $0x54] sm:$0xf]
    %v500 = vld [vmem:[#allocation10 + $0x58] sm:$0xf]
    %v501 = vld [vmem:[#allocation10 + $0x5c] sm:$0xf]
    %v502 = vld [vmem:[#allocation10 + $0x60] sm:$0xf]
    %v503 = vld [vmem:[#allocation10 + $0x64] sm:$0xf]
    %v504 = vld [vmem:[#allocation10 + $0x68] sm:$0xf]
    %v505 = vld [vmem:[#allocation10 + $0x6c] sm:$0xf]
    %v506 = vld [vmem:[#allocation10 + $0x70] sm:$0xf]
    %v507 = vld [vmem:[#allocation10 + $0x74] sm:$0xf]
    %v508 = vld [vmem:[#allocation10 + $0x78] sm:$0xf]
    %v509 = vld [vmem:[#allocation10 + $0x7c] sm:$0xf]
    %v510 = vld [vmem:[%s8] sm:$0x1]
    %v511 = vld [vmem:[#allocation8] sm:$0xff]
    %v512 = vld [vmem:[#allocation8 + $0x8] sm:$0xff]
    %v513 = vld [vmem:[#allocation8 + $0x10] sm:$0xff]
    %v514 = vld [vmem:[#allocation8 + $0x18] sm:$0xff]
    %v515 = vld [vmem:[#allocation8 + $0x20] sm:$0xff]
    %v516 = vld [vmem:[#allocation8 + $0x28] sm:$0xff]
    %v517 = vld [vmem:[#allocation8 + $0x30] sm:$0xff]
    %v518 = vld [vmem:[#allocation8 + $0x38] sm:$0xff]
    %v519 = vld [vmem:[#allocation8 + $0x40] sm:$0xff]
    %v520 = vld [vmem:[#allocation8 + $0x48] sm:$0xff]
    %v521 = vld [vmem:[#allocation8 + $0x50] sm:$0xff]
    %v522 = vld [vmem:[#allocation8 + $0x58] sm:$0xff]
    %v523 = vld [vmem:[#allocation8 + $0x60] sm:$0xff]
    %v524 = vld [vmem:[#allocation8 + $0x68] sm:$0xff]
    %v525 = vld [vmem:[#allocation8 + $0x70] sm:$0xff]
    %v526 = vld [vmem:[#allocation8 + $0x78] sm:$0xff]
    %v527 = vld [vmem:[#allocation8 + $0x80] sm:$0xff]
    %v528 = vld [vmem:[#allocation8 + $0x88] sm:$0xff]
    %v529 = vld [vmem:[#allocation8 + $0x90] sm:$0xff]
    %v530 = vld [vmem:[#allocation8 + $0x98] sm:$0xff]
    %v531 = vld [vmem:[#allocation8 + $0xa0] sm:$0xff]
    %v532 = vld [vmem:[#allocation8 + $0xa8] sm:$0xff]
    %v533 = vld [vmem:[#allocation8 + $0xb0] sm:$0xff]
    %v534 = vld [vmem:[#allocation8 + $0xb8] sm:$0xff]
    %v535 = vld [vmem:[#allocation8 + $0xc0] sm:$0xff]
    %v536 = vld [vmem:[#allocation8 + $0xc8] sm:$0xff]
    %v537 = vld [vmem:[#allocation8 + $0xd0] sm:$0xff]
    %v538 = vld [vmem:[#allocation8 + $0xd8] sm:$0xff]
    %v539 = vld [vmem:[#allocation8 + $0xe0] sm:$0xff]
    %v540 = vld [vmem:[#allocation8 + $0xe8] sm:$0xff]
    %v541 = vld [vmem:[#allocation8 + $0xf0] sm:$0xff]
    %v542 = vld [vmem:[#allocation8 + $0xf8] sm:$0xff]
    %v543 = vld [vmem:[#allocation8 + $0x100] sm:$0xff]
    %v544 = vld [vmem:[#allocation8 + $0x108] sm:$0xff]
    %v545 = vld [vmem:[#allocation8 + $0x110] sm:$0xff]
    %v546 = vld [vmem:[#allocation8 + $0x118] sm:$0xff]
    %v547 = vld [vmem:[#allocation8 + $0x120] sm:$0xff]
    %v548 = vld [vmem:[#allocation8 + $0x128] sm:$0xff]
    %v549 = vld [vmem:[#allocation8 + $0x130] sm:$0xff]
    %v550 = vld [vmem:[#allocation8 + $0x138] sm:$0xff]
    %v551 = vld [vmem:[#allocation8 + $0x140] sm:$0xff]
    %v552 = vld [vmem:[#allocation8 + $0x148] sm:$0xff]
    %v553 = vld [vmem:[#allocation8 + $0x150] sm:$0xff]
    %v554 = vld [vmem:[#allocation8 + $0x158] sm:$0xff]
    %v555 = vld [vmem:[#allocation8 + $0x160] sm:$0xff]
    %v556 = vld [vmem:[#allocation8 + $0x168] sm:$0xff]
    %v557 = vld [vmem:[#allocation8 + $0x170] sm:$0xff]
    %v558 = vld [vmem:[#allocation8 + $0x178] sm:$0xff]
    %v559 = vld [vmem:[#allocation8 + $0x180] sm:$0xff]
    %v560 = vld [vmem:[#allocation8 + $0x188] sm:$0xff]
    %v561 = vld [vmem:[#allocation8 + $0x190] sm:$0xff]
    %v562 = vld [vmem:[#allocation8 + $0x198] sm:$0xff]
    %v563 = vld [vmem:[#allocation8 + $0x1a0] sm:$0xff]
    %v564 = vld [vmem:[#allocation8 + $0x1a8] sm:$0xff]
    %v565 = vld [vmem:[#allocation8 + $0x1b0] sm:$0xff]
    %v566 = vld [vmem:[#allocation8 + $0x1b8] sm:$0xff]
    %v567 = vld [vmem:[#allocation8 + $0x1c0] sm:$0xff]
    %v568 = vld [vmem:[#allocation8 + $0x1c8] sm:$0xff]
    %v569 = vld [vmem:[#allocation8 + $0x1d0] sm:$0xff]
    %v570 = vld [vmem:[#allocation8 + $0x1d8] sm:$0xff]
    %v571 = vld [vmem:[#allocation8 + $0x1e0] sm:$0xff]
    %v572 = vld [vmem:[#allocation8 + $0x1e8] sm:$0xff]
    %v573 = vld [vmem:[#allocation8 + $0x1f0] sm:$0xff]
    %v574 = vld [vmem:[#allocation8 + $0x1f8] sm:$0xff]
    %v575 = vld [vmem:[%s6] sm:$0xf]
    %v576 = vpack.c.bf16 %v471, %v471
    %v577 = vpack.c.bf16 %v476, %v476
    %v579 = vlaneseq
    %v580 = vshrl.u32 %v579, 7
    %v581 = vsub.s32 0, %v580
    %v582 = vrot.slane %v575, %v581
    %v583 = vlaneseq
    %v584 = vshrl.u32 %v583, 7
    %v585 = vsub.s32 1, %v584
    %v586 = vrot.slane %v575, %v585
    %v587 = vlaneseq
    %v588 = vshrl.u32 %v587, 7
    %v589 = vsub.s32 2, %v588
    %v590 = vrot.slane %v575, %v589
    %v591 = vlaneseq
    %v592 = vshrl.u32 %v591, 7
    %v593 = vsub.s32 3, %v592
    %v594 = vrot.slane %v575, %v593
    %v663 = vunpack.c.l.b16 %v511
    %v664 = vunpack.c.h.b16 %v511
    %v665 = vunpack.c.l.b16 %v512
    %v666 = vunpack.c.h.b16 %v512
    %v667 = vunpack.c.l.b16 %v513
    %v668 = vunpack.c.h.b16 %v513
    %v669 = vunpack.c.l.b16 %v514
    %v670 = vunpack.c.h.b16 %v514
    %v671 = vunpack.c.l.b16 %v515
    %v672 = vunpack.c.h.b16 %v515
    %v673 = vunpack.c.l.b16 %v516
    %v674 = vunpack.c.h.b16 %v516
    %v675 = vunpack.c.l.b16 %v517
    %v676 = vunpack.c.h.b16 %v517
    %v677 = vunpack.c.l.b16 %v518
    %v678 = vunpack.c.h.b16 %v518
    %v679 = vunpack.c.l.b16 %v519
    %v680 = vunpack.c.h.b16 %v519
    %v681 = vunpack.c.l.b16 %v520
    %v682 = vunpack.c.h.b16 %v520
    %v683 = vunpack.c.l.b16 %v521
    %v684 = vunpack.c.h.b16 %v521
    %v685 = vunpack.c.l.b16 %v522
    %v686 = vunpack.c.h.b16 %v522
    %v687 = vunpack.c.l.b16 %v523
    %v688 = vunpack.c.h.b16 %v523
    %v689 = vunpack.c.l.b16 %v524
    %v690 = vunpack.c.h.b16 %v524
    %v691 = vunpack.c.l.b16 %v525
    %v692 = vunpack.c.h.b16 %v525
    %v693 = vunpack.c.l.b16 %v526
    %v694 = vunpack.c.h.b16 %v526
    %v695 = vunpack.c.l.b16 %v527
    %v696 = vunpack.c.h.b16 %v527
    %v697 = vunpack.c.l.b16 %v528
    %v698 = vunpack.c.h.b16 %v528
    %v699 = vunpack.c.l.b16 %v529
    %v700 = vunpack.c.h.b16 %v529
    %v701 = vunpack.c.l.b16 %v530
    %v702 = vunpack.c.h.b16 %v530
    %v703 = vunpack.c.l.b16 %v531
    %v704 = vunpack.c.h.b16 %v531
    %v705 = vunpack.c.l.b16 %v532
    %v706 = vunpack.c.h.b16 %v532
    %v707 = vunpack.c.l.b16 %v533
    %v708 = vunpack.c.h.b16 %v533
    %v709 = vunpack.c.l.b16 %v534
    %v710 = vunpack.c.h.b16 %v534
    %v711 = vunpack.c.l.b16 %v535
    %v712 = vunpack.c.h.b16 %v535
    %v713 = vunpack.c.l.b16 %v536
    %v714 = vunpack.c.h.b16 %v536
    %v715 = vunpack.c.l.b16 %v537
    %v716 = vunpack.c.h.b16 %v537
    %v717 = vunpack.c.l.b16 %v538
    %v718 = vunpack.c.h.b16 %v538
    %v719 = vunpack.c.l.b16 %v539
    %v720 = vunpack.c.h.b16 %v539
    %v721 = vunpack.c.l.b16 %v540
    %v722 = vunpack.c.h.b16 %v540
    %v723 = vunpack.c.l.b16 %v541
    %v724 = vunpack.c.h.b16 %v541
    %v725 = vunpack.c.l.b16 %v542
    %v726 = vunpack.c.h.b16 %v542
    %v727 = vunpack.c.l.b16 %v543
    %v728 = vunpack.c.h.b16 %v543
    %v729 = vunpack.c.l.b16 %v544
    %v730 = vunpack.c.h.b16 %v544
    %v731 = vunpack.c.l.b16 %v545
    %v732 = vunpack.c.h.b16 %v545
    %v733 = vunpack.c.l.b16 %v546
    %v734 = vunpack.c.h.b16 %v546
    %v735 = vunpack.c.l.b16 %v547
    %v736 = vunpack.c.h.b16 %v547
    %v737 = vunpack.c.l.b16 %v548
    %v738 = vunpack.c.h.b16 %v548
    %v739 = vunpack.c.l.b16 %v549
    %v740 = vunpack.c.h.b16 %v549
    %v741 = vunpack.c.l.b16 %v550
    %v742 = vunpack.c.h.b16 %v550
    %v743 = vunpack.c.l.b16 %v551
    %v744 = vunpack.c.h.b16 %v551
    %v745 = vunpack.c.l.b16 %v552
    %v746 = vunpack.c.h.b16 %v552
    %v747 = vunpack.c.l.b16 %v553
    %v748 = vunpack.c.h.b16 %v553
    %v749 = vunpack.c.l.b16 %v554
    %v750 = vunpack.c.h.b16 %v554
    %v751 = vunpack.c.l.b16 %v555
    %v752 = vunpack.c.h.b16 %v555
    %v753 = vunpack.c.l.b16 %v556
    %v754 = vunpack.c.h.b16 %v556
    %v755 = vunpack.c.l.b16 %v557
    %v756 = vunpack.c.h.b16 %v557
    %v757 = vunpack.c.l.b16 %v558
    %v758 = vunpack.c.h.b16 %v558
    %v759 = vunpack.c.l.b16 %v559
    %v760 = vunpack.c.h.b16 %v559
    %v761 = vunpack.c.l.b16 %v560
    %v762 = vunpack.c.h.b16 %v560
    %v763 = vunpack.c.l.b16 %v561
    %v764 = vunpack.c.h.b16 %v561
    %v765 = vunpack.c.l.b16 %v562
    %v766 = vunpack.c.h.b16 %v562
    %v767 = vunpack.c.l.b16 %v563
    %v768 = vunpack.c.h.b16 %v563
    %v769 = vunpack.c.l.b16 %v564
    %v770 = vunpack.c.h.b16 %v564
    %v771 = vunpack.c.l.b16 %v565
    %v772 = vunpack.c.h.b16 %v565
    %v773 = vunpack.c.l.b16 %v566
    %v774 = vunpack.c.h.b16 %v566
    %v775 = vunpack.c.l.b16 %v567
    %v776 = vunpack.c.h.b16 %v567
    %v777 = vunpack.c.l.b16 %v568
    %v778 = vunpack.c.h.b16 %v568
    %v779 = vunpack.c.l.b16 %v569
    %v780 = vunpack.c.h.b16 %v569
    %v781 = vunpack.c.l.b16 %v570
    %v782 = vunpack.c.h.b16 %v570
    %v783 = vunpack.c.l.b16 %v571
    %v784 = vunpack.c.h.b16 %v571
    %v785 = vunpack.c.l.b16 %v572
    %v786 = vunpack.c.h.b16 %v572
    %v787 = vunpack.c.l.b16 %v573
    %v788 = vunpack.c.h.b16 %v573
    %v789 = vunpack.c.l.b16 %v574
    %v790 = vunpack.c.h.b16 %v574
    %v791 = vpack.c.b16 %v667, %v663
    %v792 = vpack.c.b16 %v668, %v664
    %v793 = vpack.c.b16 %v669, %v665
    %v794 = vpack.c.b16 %v670, %v666
    %v795 = vpack.c.b16 %v675, %v671
    %v796 = vpack.c.b16 %v676, %v672
    %v797 = vpack.c.b16 %v677, %v673
    %v798 = vpack.c.b16 %v678, %v674
    %v799 = vpack.c.b16 %v683, %v679
    %v800 = vpack.c.b16 %v684, %v680
    %v801 = vpack.c.b16 %v685, %v681
    %v802 = vpack.c.b16 %v686, %v682
    %v803 = vpack.c.b16 %v691, %v687
    %v804 = vpack.c.b16 %v692, %v688
    %v805 = vpack.c.b16 %v693, %v689
    %v806 = vpack.c.b16 %v694, %v690
    %v807 = vpack.c.b16 %v699, %v695
    %v808 = vpack.c.b16 %v700, %v696
    %v809 = vpack.c.b16 %v701, %v697
    %v810 = vpack.c.b16 %v702, %v698
    %v811 = vpack.c.b16 %v707, %v703
    %v812 = vpack.c.b16 %v708, %v704
    %v813 = vpack.c.b16 %v709, %v705
    %v814 = vpack.c.b16 %v710, %v706
    %v815 = vpack.c.b16 %v715, %v711
    %v816 = vpack.c.b16 %v716, %v712
    %v817 = vpack.c.b16 %v717, %v713
    %v818 = vpack.c.b16 %v718, %v714
    %v819 = vpack.c.b16 %v723, %v719
    %v820 = vpack.c.b16 %v724, %v720
    %v821 = vpack.c.b16 %v725, %v721
    %v822 = vpack.c.b16 %v726, %v722
    %v823 = vpack.c.b16 %v731, %v727
    %v824 = vpack.c.b16 %v732, %v728
    %v825 = vpack.c.b16 %v733, %v729
    %v826 = vpack.c.b16 %v734, %v730
    %v827 = vpack.c.b16 %v739, %v735
    %v828 = vpack.c.b16 %v740, %v736
    %v829 = vpack.c.b16 %v741, %v737
    %v830 = vpack.c.b16 %v742, %v738
    %v831 = vpack.c.b16 %v747, %v743
    %v832 = vpack.c.b16 %v748, %v744
    %v833 = vpack.c.b16 %v749, %v745
    %v834 = vpack.c.b16 %v750, %v746
    %v835 = vpack.c.b16 %v755, %v751
    %v836 = vpack.c.b16 %v756, %v752
    %v837 = vpack.c.b16 %v757, %v753
    %v838 = vpack.c.b16 %v758, %v754
    %v839 = vpack.c.b16 %v763, %v759
    %v840 = vpack.c.b16 %v764, %v760
    %v841 = vpack.c.b16 %v765, %v761
    %v842 = vpack.c.b16 %v766, %v762
    %v843 = vpack.c.b16 %v771, %v767
    %v844 = vpack.c.b16 %v772, %v768
    %v845 = vpack.c.b16 %v773, %v769
    %v846 = vpack.c.b16 %v774, %v770
    %v847 = vpack.c.b16 %v779, %v775
    %v848 = vpack.c.b16 %v780, %v776
    %v849 = vpack.c.b16 %v781, %v777
    %v850 = vpack.c.b16 %v782, %v778
    %v851 = vpack.c.b16 %v787, %v783
    %v852 = vpack.c.b16 %v788, %v784
    %v853 = vpack.c.b16 %v789, %v785
    %v854 = vpack.c.b16 %v790, %v786
    %919 = vmatprep.subr.bf16.mxu0 %v792
    %920 = vmatpush1.bf16.msra.mxu0 %v791
    %921 = vmatprep.subr.bf16.mxu0 %v796
    %922 = vmatpush1.bf16.msra.mxu0 %v795
    %923 = vmatprep.subr.bf16.mxu0 %v800
    %924 = vmatpush1.bf16.msra.mxu0 %v799
    %925 = vmatprep.subr.bf16.mxu0 %v804
    %926 = vmatpush1.bf16.msra.mxu0 %v803
    %927 = vmatprep.subr.bf16.mxu0 %v808
    %928 = vmatpush1.bf16.msra.mxu0 %v807
    %929 = vmatprep.subr.bf16.mxu0 %v812
    %930 = vmatpush1.bf16.msra.mxu0 %v811
    %931 = vmatprep.subr.bf16.mxu0 %v816
    %932 = vmatpush1.bf16.msra.mxu0 %v815
    %933 = vmatprep.subr.bf16.mxu0 %v820
    %934 = vmatpush1.bf16.msra.mxu0 %v819
    %935 = vmatprep.subr.bf16.mxu0 %v824
    %936 = vmatpush1.bf16.msra.mxu0 %v823
    %937 = vmatprep.subr.bf16.mxu0 %v828
    %938 = vmatpush1.bf16.msra.mxu0 %v827
    %939 = vmatprep.subr.bf16.mxu0 %v832
    %940 = vmatpush1.bf16.msra.mxu0 %v831
    %941 = vmatprep.subr.bf16.mxu0 %v836
    %942 = vmatpush1.bf16.msra.mxu0 %v835
    %943 = vmatprep.subr.bf16.mxu0 %v840
    %944 = vmatpush1.bf16.msra.mxu0 %v839
    %945 = vmatprep.subr.bf16.mxu0 %v844
    %946 = vmatpush1.bf16.msra.mxu0 %v843
    %947 = vmatprep.subr.bf16.mxu0 %v848
    %948 = vmatpush1.bf16.msra.mxu0 %v847
    %949 = vmatprep.subr.bf16.mxu0 %v852
    %950 = vmatpush1.bf16.msra.mxu0 %v851
    %951 = vmatprep.mubr.bf16.mxu0 %v577
    %952 = vmatmul.mubr.bf16.gmra.mrb[0].mxu0 %v576
    %v953 = vpop.f32.mrb[0].mxu0
    %v954 = vadd.f32 %v582, %v953
    %v955 = vpop.f32.mrb[0].mxu0
    %v956 = vadd.f32 %v586, %v955
    %v957 = vpop.f32.mrb[0].mxu0
    %v958 = vpop.f32.mrb[0].mxu0
    %959 = vdwg.mxu0
    %960 = vmatprep.subr.bf16.mxu0 %v794
    %961 = vmatpush1.bf16.msra.mxu0 %v793
    %962 = vmatprep.subr.bf16.mxu0 %v798
    %963 = vmatpush1.bf16.msra.mxu0 %v797
    %964 = vmatprep.subr.bf16.mxu0 %v802
    %965 = vmatpush1.bf16.msra.mxu0 %v801
    %966 = vmatprep.subr.bf16.mxu0 %v806
    %967 = vmatpush1.bf16.msra.mxu0 %v805
    %968 = vmatprep.subr.bf16.mxu0 %v810
    %969 = vmatpush1.bf16.msra.mxu0 %v809
    %970 = vmatprep.subr.bf16.mxu0 %v814
    %971 = vmatpush1.bf16.msra.mxu0 %v813
    %972 = vmatprep.subr.bf16.mxu0 %v818
    %973 = vmatpush1.bf16.msra.mxu0 %v817
    %974 = vmatprep.subr.bf16.mxu0 %v822
    %975 = vmatpush1.bf16.msra.mxu0 %v821
    %976 = vmatprep.subr.bf16.mxu0 %v826
    %977 = vmatpush1.bf16.msra.mxu0 %v825
    %978 = vmatprep.subr.bf16.mxu0 %v830
    %979 = vmatpush1.bf16.msra.mxu0 %v829
    %980 = vmatprep.subr.bf16.mxu0 %v834
    %981 = vmatpush1.bf16.msra.mxu0 %v833
    %982 = vmatprep.subr.bf16.mxu0 %v838
    %983 = vmatpush1.bf16.msra.mxu0 %v837
    %984 = vmatprep.subr.bf16.mxu0 %v842
    %985 = vmatpush1.bf16.msra.mxu0 %v841
    %986 = vmatprep.subr.bf16.mxu0 %v846
    %987 = vmatpush1.bf16.msra.mxu0 %v845
    %988 = vmatprep.subr.bf16.mxu0 %v850
    %989 = vmatpush1.bf16.msra.mxu0 %v849
    %990 = vmatprep.subr.bf16.mxu0 %v854
    %991 = vmatpush1.bf16.msra.mxu0 %v853
    %992 = vmatprep.mubr.bf16.mxu0 %v577
    %993 = vmatmul.mubr.bf16.gmra.mrb[0].mxu0 %v576
    %v994 = vpop.f32.mrb[0].mxu0
    %v995 = vadd.f32 %v590, %v994
    %v996 = vpop.f32.mrb[0].mxu0
    %v997 = vadd.f32 %v594, %v996
    %v998 = vpop.f32.mrb[0].mxu0
    %v999 = vpop.f32.mrb[0].mxu0
    %1000 = vdwg.mxu0
    %v1001 = vmax.f32 %v954, 0.0
    %v1002 = vmax.f32 %v956, 0.0
    %v1003 = vxor.u32 %v995, 2147483648
    %v1004 = vxor.u32 %v997, 2147483648
    %v1005 = vmul.f32 %v1003, 1.442695
    %v1006 = vpow.pop %v1005
    %v1007 = vmul.f32 %v1004, 1.442695
    %v1008 = vpow.pop %v1007
    %v1009 = vadd.f32 %v1006, 1.0
    %v1010 = vadd.f32 %v1008, 1.0
    %v1011 = vrcp.pop %v1009
    %v1012 = vmul.f32 1.0, %v1011
    %v1013 = vrcp.pop %v1010
    %v1014 = vmul.f32 1.0, %v1013
    %v1015 = vmul.f32 %v1012, %v471
    %v1016 = vmul.f32 %v1014, %v476
    %v1017 = vsub.f32 1.0, %v1012
    %v1018 = vsub.f32 1.0, %v1014
    %v1019 = vmul.f32 %v1017, %v1001
    %v1020 = vmul.f32 %v1018, %v1002
    %v1021 = vadd.f32 %v1015, %v1019
    %v1022 = vadd.f32 %v1016, %v1020
    %v1023 = vpack.c.bf16 %v1021, %v1021
    %v1024 = vpack.c.bf16 %v1022, %v1022
    %v1026 = vlaneseq
    %v1027 = vshrl.u32 %v1026, 7
    %v1028 = vsub.s32 0, %v1027
    %v1029 = vrot.slane %v510, %v1028
    %v1063 = vunpack.c.l.b16 %v478
    %v1064 = vunpack.c.l.b16 %v479
    %v1065 = vunpack.c.l.b16 %v480
    %v1066 = vunpack.c.l.b16 %v481
    %v1067 = vunpack.c.l.b16 %v482
    %v1068 = vunpack.c.l.b16 %v483
    %v1069 = vunpack.c.l.b16 %v484
    %v1070 = vunpack.c.l.b16 %v485
    %v1071 = vunpack.c.l.b16 %v486
    %v1072 = vunpack.c.l.b16 %v487
    %v1073 = vunpack.c.l.b16 %v488
    %v1074 = vunpack.c.l.b16 %v489
    %v1075 = vunpack.c.l.b16 %v490
    %v1076 = vunpack.c.l.b16 %v491
    %v1077 = vunpack.c.l.b16 %v492
    %v1078 = vunpack.c.l.b16 %v493
    %v1079 = vunpack.c.l.b16 %v494
    %v1080 = vunpack.c.l.b16 %v495
    %v1081 = vunpack.c.l.b16 %v496
    %v1082 = vunpack.c.l.b16 %v497
    %v1083 = vunpack.c.l.b16 %v498
    %v1084 = vunpack.c.l.b16 %v499
    %v1085 = vunpack.c.l.b16 %v500
    %v1086 = vunpack.c.l.b16 %v501
    %v1087 = vunpack.c.l.b16 %v502
    %v1088 = vunpack.c.l.b16 %v503
    %v1089 = vunpack.c.l.b16 %v504
    %v1090 = vunpack.c.l.b16 %v505
    %v1091 = vunpack.c.l.b16 %v506
    %v1092 = vunpack.c.l.b16 %v507
    %v1093 = vunpack.c.l.b16 %v508
    %v1094 = vunpack.c.l.b16 %v509
    %v1095 = vpack.c.b16 %v1064, %v1063
    %v1096 = vpack.c.b16 %v1066, %v1065
    %v1097 = vpack.c.b16 %v1068, %v1067
    %v1098 = vpack.c.b16 %v1070, %v1069
    %v1099 = vpack.c.b16 %v1072, %v1071
    %v1100 = vpack.c.b16 %v1074, %v1073
    %v1101 = vpack.c.b16 %v1076, %v1075
    %v1102 = vpack.c.b16 %v1078, %v1077
    %v1103 = vpack.c.b16 %v1080, %v1079
    %v1104 = vpack.c.b16 %v1082, %v1081
    %v1105 = vpack.c.b16 %v1084, %v1083
    %v1106 = vpack.c.b16 %v1086, %v1085
    %v1107 = vpack.c.b16 %v1088, %v1087
    %v1108 = vpack.c.b16 %v1090, %v1089
    %v1109 = vpack.c.b16 %v1092, %v1091
    %v1110 = vpack.c.b16 %v1094, %v1093
    %1127 = vmatprep.subr.bf16.mxu0 0
    %1128 = vmatpush1.bf16.msra.mxu0 %v1095
    %1129 = vmatprep.subr.bf16.mxu0 0
    %1130 = vmatpush1.bf16.msra.mxu0 %v1096
    %1131 = vmatprep.subr.bf16.mxu0 0
    %1132 = vmatpush1.bf16.msra.mxu0 %v1097
    %1133 = vmatprep.subr.bf16.mxu0 0
    %1134 = vmatpush1.bf16.msra.mxu0 %v1098
    %1135 = vmatprep.subr.bf16.mxu0 0
    %1136 = vmatpush1.bf16.msra.mxu0 %v1099
    %1137 = vmatprep.subr.bf16.mxu0 0
    %1138 = vmatpush1.bf16.msra.mxu0 %v1100
    %1139 = vmatprep.subr.bf16.mxu0 0
    %1140 = vmatpush1.bf16.msra.mxu0 %v1101
    %1141 = vmatprep.subr.bf16.mxu0 0
    %1142 = vmatpush1.bf16.msra.mxu0 %v1102
    %1143 = vmatprep.subr.bf16.mxu0 0
    %1144 = vmatpush1.bf16.msra.mxu0 %v1103
    %1145 = vmatprep.subr.bf16.mxu0 0
    %1146 = vmatpush1.bf16.msra.mxu0 %v1104
    %1147 = vmatprep.subr.bf16.mxu0 0
    %1148 = vmatpush1.bf16.msra.mxu0 %v1105
    %1149 = vmatprep.subr.bf16.mxu0 0
    %1150 = vmatpush1.bf16.msra.mxu0 %v1106
    %1151 = vmatprep.subr.bf16.mxu0 0
    %1152 = vmatpush1.bf16.msra.mxu0 %v1107
    %1153 = vmatprep.subr.bf16.mxu0 0
    %1154 = vmatpush1.bf16.msra.mxu0 %v1108
    %1155 = vmatprep.subr.bf16.mxu0 0
    %1156 = vmatpush1.bf16.msra.mxu0 %v1109
    %1157 = vmatprep.subr.bf16.mxu0 0
    %1158 = vmatpush1.bf16.msra.mxu0 %v1110
    %1159 = vmatprep.mubr.bf16.mxu0 %v1024
    %1160 = vmatmul.mubr.bf16.gmra.mrb[0].mxu0 %v1023
    %v1161 = vpop.f32.mrb[0].mxu0
    %v1162 = vadd.f32 %v1029, %v1161
    %v1163 = vpop.f32.mrb[0].mxu0
    %v1164 = vpop.f32.mrb[0].mxu0
    %v1165 = vpop.f32.mrb[0].mxu0
    %1166 = vdwg.mxu0
    %1167 = vst [vmem:[#allocation11] sm:$0x3] %v1162
    // Predicated region
    $region58: #{tpu_custom_call.1} parent=1 // pred_check
      _
    $region59: #{tpu_custom_call.1} parent=1 // pred_check_branch
      %1169 = sbr.rel (0) target = $region61
    $region60: #{tpu_custom_call.1} parent=1 // pred_region
      %s1171 = ssub.s32 32, 32
      %1172 = vsyncadd [#allocation4], %s1171
      %s1174 = sshll.u32 [#allocation11], 4
      %s1175 = int_to_ptr.vmem [resolvable:$true] %s1174
      %1177 = dma.vmem_to_hbm [thread:$0]  %s1175, 32, %s9, [#allocation4]
    $region61: #{tpu_custom_call.1} parent=1 // pred_fallthru
      _
    // Predicated region
    $region62: #{tpu_custom_call.1} parent=1 // pred_check
      _
    $region63: #{tpu_custom_call.1} parent=1 // pred_check_branch
      %1179 = sbr.rel (0) target = $region65
    $region64: #{tpu_custom_call.1} parent=1 // pred_region
      %1180 = dma.done [#allocation4], 32
    $region65: #{tpu_custom_call.1} parent=1 // pred_fallthru
      _
    %1181 = vsyncpa [#allocation3], 1
    %1182 = vsyncpa [#allocation6], 1
    %1183 = vsyncpa [#allocation9], 1
    %1184 = vsyncpa [#allocation4], 1

// kernel: tpu_custom_call.1
$region0: #{tpu_custom_call.1}
  #allocation0 [shape = 'u32[]', space=smem, size = 0x4, offset = 0x4, fixed_abs, tag = 'smem constant byte address 0x4 - core index']
  #allocation1 [shape = 'u32[144,128]{1,0:T(1,128)}', space=vmem, size = 0x12000, scoped, tag = 'internal scratch']
  %s0 = inlined_call_operand.hbm [shape: bf16[2,8,32], index: 0, kind: input, shape index: {}]
  %s1 = inlined_call_operand.hbm [shape: bf16[2,32,128], index: 1, kind: input, shape index: {}]
  %s2 = inlined_call_operand.hbm [shape: bf16[3,32,128], index: 2, kind: input, shape index: {}]
  %s3 = inlined_call_operand.vmem [shape: f32[1,128], index: 3, kind: input, shape index: {}]
  %s4 = inlined_call_operand.vmem [shape: f32[1,128], index: 4, kind: input, shape index: {}]
  %s5 = inlined_call_operand.hbm [shape: bf16[256,512], index: 5, kind: input, shape index: {}]
  %s6 = inlined_call_operand.vmem [shape: f32[1,512], index: 6, kind: input, shape index: {}]
  %s7 = inlined_call_operand.hbm [shape: bf16[256,128], index: 7, kind: input, shape index: {}]
  %s8 = inlined_call_operand.vmem [shape: f32[1,128], index: 8, kind: input, shape index: {}]
  %s9 = inlined_call_operand.hbm [shape: f32[2,128], index: 9, kind: output, shape index: {}]
  %s10 = sld [smem:[#allocation0]]
  $region66: #{tpu_custom_call.1} parent=0
    _
  %s12 = ssub.s32 1, %s10
  %s13 = scalar_select 0, %s12, %s10
  $region1: #{tpu_custom_call.1} parent=0
    #allocation2 [shape = 'u8[4096]{0}', space=vmem, size = 0x1000, scoped, tag = 'input window, operand 0, single buffered']
    #allocation3 [shape = 's32[1]{0}', space=sflag, size = 0x4, scoped, tag = 'scoped memory for tpu_custom_call.1']
    #allocation4 [shape = 's32[1]{0}', space=sflag, size = 0x4, scoped, tag = 'scoped memory for tpu_custom_call.1']
    #allocation5 [shape = 'u8[16384]{0}', space=vmem, size = 0x4000, scoped, tag = 'input window, operand 1, single buffered']
    #allocation6 [shape = 's32[1]{0}', space=sflag, size = 0x4, scoped, tag = 'scoped memory for tpu_custom_call.1']
    #allocation7 [shape = 'u8[24576]{0}', space=vmem, size = 0x6000, scoped, tag = 'input window, operand 2, single buffered']
    #allocation8 [shape = 'u8[262144]{0}', space=vmem, size = 0x40000, scoped, tag = 'input window, operand 5, single buffered']
    #allocation9 [shape = 's32[1]{0}', space=sflag, size = 0x4, scoped, tag = 'scoped memory for tpu_custom_call.1']
    #allocation10 [shape = 'u8[65536]{0}', space=vmem, size = 0x10000, scoped, tag = 'input window, operand 7, single buffered']
    #allocation11 [shape = 'u8[1024]{0}', space=vmem, size = 0x400, scoped, tag = 'output window, operand 0, single buffered']
    %14 = vsyncpa [#allocation3], 0
    %15 = vsyncpa [#allocation6], 0
    %16 = vsyncpa [#allocation9], 0
    %17 = vsyncpa [#allocation4], 0
    // Predicated region
    $region2: #{tpu_custom_call.1} parent=1 // pred_check
      _
    $region3: #{tpu_custom_call.1} parent=1 // pred_check_branch
      %19 = sbr.rel (0) target = $region5
    $region4: #{tpu_custom_call.1} parent=1 // pred_region
      %s21 = ssub.s32 128, 128
      %22 = vsyncadd [#allocation3], %s21
      %s23 = sshll.u32 [#allocation2], 4
      %s24 = int_to_ptr.vmem [resolvable:$true] %s23
      %29 = dma.hbm_to_vmem [thread:$0]  %s0, 128, %s24, [#allocation3], 64, 64, 4
    $region5: #{tpu_custom_call.1} parent=1 // pred_fallthru
      _
    // Predicated region
    $region6: #{tpu_custom_call.1} parent=1 // pred_check
      _
    $region7: #{tpu_custom_call.1} parent=1 // pred_check_branch
      %31 = sbr.rel (0) target = $region9
    $region8: #{tpu_custom_call.1} parent=1 // pred_region
      %s33 = ssub.s32 512, 512
      %34 = vsyncadd [#allocation6], %s33
      %s35 = sshll.u32 [#allocation5], 4
      %s36 = int_to_ptr.vmem [resolvable:$true] %s35
      %41 = dma.hbm_to_vmem [thread:$0]  %s1, 512, %s36, [#allocation6], 64, 64, 4
    $region9: #{tpu_custom_call.1} parent=1 // pred_fallthru
      _
    // Predicated region
    $region10: #{tpu_custom_call.1} parent=1 // pred_check
      _
    $region11: #{tpu_custom_call.1} parent=1 // pred_check_branch
      %43 = sbr.rel (0) target = $region13
    $region12: #{tpu_custom_call.1} parent=1 // pred_region
      %s45 = ssub.s32 768, 768
      %46 = vsyncadd [#allocation6], %s45
      %s47 = sshll.u32 [#allocation7], 4
      %s48 = int_to_ptr.vmem [resolvable:$true] %s47
      %53 = dma.hbm_to_vmem [thread:$0]  %s2, 768, %s48, [#allocation6], 64, 64, 4
    $region13: #{tpu_custom_call.1} parent=1 // pred_fallthru
      _
    // Predicated region
    $region14: #{tpu_custom_call.1} parent=1 // pred_check
      _
    $region15: #{tpu_custom_call.1} parent=1 // pred_check_branch
      %55 = sbr.rel (0) target = $region17
    $region16: #{tpu_custom_call.1} parent=1 // pred_region
      _
    $region17: #{tpu_custom_call.1} parent=1 // pred_fallthru
      _
    // Predicated region
    $region18: #{tpu_custom_call.1} parent=1 // pred_check
      _
    $region19: #{tpu_custom_call.1} parent=1 // pred_check_branch
      %57 = sbr.rel (0) target = $region21
    $region20: #{tpu_custom_call.1} parent=1 // pred_region
      _
    $region21: #{tpu_custom_call.1} parent=1 // pred_fallthru
      _
    // Predicated region
    $region22: #{tpu_custom_call.1} parent=1 // pred_check
      _
    $region23: #{tpu_custom_call.1} parent=1 // pred_check_branch
      %59 = sbr.rel (0) target = $region25
    $region24: #{tpu_custom_call.1} parent=1 // pred_region
      %s61 = ssub.s32 8192, 8192
      %62 = vsyncadd [#allocation9], %s61
      %s63 = sshll.u32 [#allocation8], 4
      %s64 = int_to_ptr.vmem [resolvable:$true] %s63
      %69 = dma.hbm_to_vmem [thread:$0]  %s5, 8192, %s64, [#allocation9], 256, 256, 16
    $region25: #{tpu_custom_call.1} parent=1 // pred_fallthru
      _
    // Predicated region
    $region26: #{tpu_custom_call.1} parent=1 // pred_check
      _
    $region27: #{tpu_custom_call.1} parent=1 // pred_check_branch
      %71 = sbr.rel (0) target = $region29
    $region28: #{tpu_custom_call.1} parent=1 // pred_region
      _
    $region29: #{tpu_custom_call.1} parent=1 // pred_fallthru
      _
    // Predicated region
    $region30: #{tpu_custom_call.1} parent=1 // pred_check
      _
    $region31: #{tpu_custom_call.1} parent=1 // pred_check_branch
      %73 = sbr.rel (0) target = $region33
    $region32: #{tpu_custom_call.1} parent=1 // pred_region
      %s75 = ssub.s32 2048, 2048
      %76 = vsyncadd [#allocation9], %s75
      %s77 = sshll.u32 [#allocation10], 4
      %s78 = int_to_ptr.vmem [resolvable:$true] %s77
      %83 = dma.hbm_to_vmem [thread:$0]  %s7, 2048, %s78, [#allocation9], 64, 64, 4
    $region33: #{tpu_custom_call.1} parent=1 // pred_fallthru
      _
    // Predicated region
    $region34: #{tpu_custom_call.1} parent=1 // pred_check
      _
    $region35: #{tpu_custom_call.1} parent=1 // pred_check_branch
      %85 = sbr.rel (0) target = $region37
    $region36: #{tpu_custom_call.1} parent=1 // pred_region
      _
    $region37: #{tpu_custom_call.1} parent=1 // pred_fallthru
      _
    // Predicated region
    $region38: #{tpu_custom_call.1} parent=1 // pred_check
      _
    $region39: #{tpu_custom_call.1} parent=1 // pred_check_branch
      %87 = sbr.rel (0) target = $region41
    $region40: #{tpu_custom_call.1} parent=1 // pred_region
      %88 = dma.done [#allocation3], 128
    $region41: #{tpu_custom_call.1} parent=1 // pred_fallthru
      _
    // Predicated region
    $region42: #{tpu_custom_call.1} parent=1 // pred_check
      _
    $region43: #{tpu_custom_call.1} parent=1 // pred_check_branch
      %90 = sbr.rel (0) target = $region45
    $region44: #{tpu_custom_call.1} parent=1 // pred_region
      %91 = dma.done [#allocation6], 512
    $region45: #{tpu_custom_call.1} parent=1 // pred_fallthru
      _
    // Predicated region
    $region46: #{tpu_custom_call.1} parent=1 // pred_check
      _
    $region47: #{tpu_custom_call.1} parent=1 // pred_check_branch
      %93 = sbr.rel (0) target = $region49
    $region48: #{tpu_custom_call.1} parent=1 // pred_region
      %94 = dma.done [#allocation6], 768
    $region49: #{tpu_custom_call.1} parent=1 // pred_fallthru
      _
    // Predicated region
    $region50: #{tpu_custom_call.1} parent=1 // pred_check
      _
    $region51: #{tpu_custom_call.1} parent=1 // pred_check_branch
      %96 = sbr.rel (0) target = $region53
    $region52: #{tpu_custom_call.1} parent=1 // pred_region
      %97 = dma.done [#allocation9], 8192
    $region53: #{tpu_custom_call.1} parent=1 // pred_fallthru
      _
    // Predicated region
    $region54: #{tpu_custom_call.1} parent=1 // pred_check
      _
    $region55: #{tpu_custom_call.1} parent=1 // pred_check_branch
      %99 = sbr.rel (0) target = $region57
    $region56: #{tpu_custom_call.1} parent=1 // pred_region
      %100 = dma.done [#allocation9], 2048
    $region57: #{tpu_custom_call.1} parent=1 // pred_fallthru
      _
    %v102 = vld [vmem:[#allocation2] sm:$0xf]
    %v103 = vld [vmem:[#allocation2 + $0x4] sm:$0xf]
    %v104 = vld [vmem:[#allocation5] sm:$0xf]
    %v105 = vld [vmem:[#allocation5 + $0x4] sm:$0xf]
    %v106 = vld [vmem:[#allocation5 + $0x8] sm:$0xf]
    %v107 = vld [vmem:[#allocation5 + $0xc] sm:$0xf]
    %v110 = vunpack.c.l.b16 %v102
    %v111 = vunpack.c.l.b16 %v103
    %v112 = vpack.c.b16 %v111, %v110
    %v117 = vunpack.c.l.b16 %v104
    %v118 = vunpack.c.l.b16 %v105
    %v119 = vunpack.c.l.b16 %v106
    %v120 = vunpack.c.l.b16 %v107
    %v121 = vpack.c.b16 %v118, %v117
    %v122 = vpack.c.b16 %v120, %v119
    %vm125 = vcmask 261120
    %v127 = vsel %vm125, %v112, 0
    %129 = vmatprep.subr.bf16.mxu0 0
    %130 = vmatpush1.bf16.msra.mxu0 %v121
    %131 = vmatprep.subr.bf16.mxu0 0
    %132 = vmatpush1.bf16.msra.mxu0 %v122
    %133 = vmatprep.subr.bf16.mxu0 0
    %134 = vmatpush1.bf16.msra.mxu0 0
    %135 = vmatprep.subr.bf16.mxu0 0
    %136 = vmatpush1.bf16.msra.mxu0 0
    %137 = vmatprep.subr.bf16.mxu0 0
    %138 = vmatpush1.bf16.msra.mxu0 0
    %139 = vmatprep.subr.bf16.mxu0 0
    %140 = vmatpush1.bf16.msra.mxu0 0
    %141 = vmatprep.subr.bf16.mxu0 0
    %142 = vmatpush1.bf16.msra.mxu0 0
    %143 = vmatprep.subr.bf16.mxu0 0
    %144 = vmatpush1.bf16.msra.mxu0 0
    %145 = vmatprep.subr.bf16.mxu0 0
    %146 = vmatpush1.bf16.msra.mxu0 0
    %147 = vmatprep.subr.bf16.mxu0 0
    %148 = vmatpush1.bf16.msra.mxu0 0
    %149 = vmatprep.subr.bf16.mxu0 0
    %150 = vmatpush1.bf16.msra.mxu0 0
    %151 = vmatprep.subr.bf16.mxu0 0
    %152 = vmatpush1.bf16.msra.mxu0 0
    %153 = vmatprep.subr.bf16.mxu0 0
    %154 = vmatpush1.bf16.msra.mxu0 0
    %155 = vmatprep.subr.bf16.mxu0 0
    %156 = vmatpush1.bf16.msra.mxu0 0
    %157 = vmatprep.subr.bf16.mxu0 0
    %158 = vmatpush1.bf16.msra.mxu0 0
    %159 = vmatprep.subr.bf16.mxu0 0
    %160 = vmatpush1.bf16.msra.mxu0 0
    %161 = vmatprep.mubr.bf16.mxu0 0
    %162 = vmatmul.mubr.bf16.gmra.mrb[0].mxu0 %v127
    %v163 = vpop.f32.mrb[0].mxu0
    %v164 = vadd.f32 0.0, %v163
    %v165 = vpop.f32.mrb[0].mxu0
    %v166 = vpop.f32.mrb[0].mxu0
    %v167 = vadd.f32 0.0, %v166
    %v168 = vpop.f32.mrb[0].mxu0
    %169 = vdwg.mxu0
    %s170 = scalar_lea.vmem [#allocation5], 16
    %v171 = vld [vmem:[%s170] sm:$0xf]
    %v172 = vld [vmem:[%s170 + $0x4] sm:$0xf]
    %v173 = vld [vmem:[%s170 + $0x8] sm:$0xf]
    %v174 = vld [vmem:[%s170 + $0xc] sm:$0xf]
    %v179 = vunpack.c.l.b16 %v171
    %v180 = vunpack.c.l.b16 %v172
    %v181 = vunpack.c.l.b16 %v173
    %v182 = vunpack.c.l.b16 %v174
    %v183 = vpack.c.b16 %v180, %v179
    %v184 = vpack.c.b16 %v182, %v181
    %187 = vmatprep.subr.bf16.mxu0 0
    %188 = vmatpush1.bf16.msra.mxu0 %v183
    %189 = vmatprep.subr.bf16.mxu0 0
    %190 = vmatpush1.bf16.msra.mxu0 %v184
    %191 = vmatprep.subr.bf16.mxu0 0
    %192 = vmatpush1.bf16.msra.mxu0 0
    %193 = vmatprep.subr.bf16.mxu0 0
    %194 = vmatpush1.bf16.msra.mxu0 0
    %195 = vmatprep.subr.bf16.mxu0 0
    %196 = vmatpush1.bf16.msra.mxu0 0
    %197 = vmatprep.subr.bf16.mxu0 0
    %198 = vmatpush1.bf16.msra.mxu0 0
    %199 = vmatprep.subr.bf16.mxu0 0
    %200 = vmatpush1.bf16.msra.mxu0 0
    %201 = vmatprep.subr.bf16.mxu0 0
    %202 = vmatpush1.bf16.msra.mxu0 0
    %203 = vmatprep.subr.bf16.mxu0 0
    %204 = vmatpush1.bf16.msra.mxu0 0
    %205 = vmatprep.subr.bf16.mxu0 0
    %206 = vmatpush1.bf16.msra.mxu0 0
    %207 = vmatprep.subr.bf16.mxu0 0
    %208 = vmatpush1.bf16.msra.mxu0 0
    %209 = vmatprep.subr.bf16.mxu0 0
    %210 = vmatpush1.bf16.msra.mxu0 0
    %211 = vmatprep.subr.bf16.mxu0 0
    %212 = vmatpush1.bf16.msra.mxu0 0
    %213 = vmatprep.subr.bf16.mxu0 0
    %214 = vmatpush1.bf16.msra.mxu0 0
    %215 = vmatprep.subr.bf16.mxu0 0
    %216 = vmatpush1.bf16.msra.mxu0 0
    %217 = vmatprep.subr.bf16.mxu0 0
    %218 = vmatpush1.bf16.msra.mxu0 0
    %219 = vmatprep.mubr.bf16.mxu0 0
    %220 = vmatmul.mubr.bf16.gmra.mrb[0].mxu0 %v127
    %v221 = vpop.f32.mrb[0].mxu0
    %v222 = vadd.f32 0.0, %v221
    %v223 = vpop.f32.mrb[0].mxu0
    %v224 = vpop.f32.mrb[0].mxu0
    %v225 = vadd.f32 0.0, %v224
    %v226 = vpop.f32.mrb[0].mxu0
    %227 = vdwg.mxu0
    %v230 = vrot.slane %v222, 1
    %v231 = vrot.slane %v225, 1
    %v234 = vadd.f32 %v164, %v230
    %v235 = vadd.f32 %v167, %v231
    %vm236 = vcmask 1046528
    %v237 = vsel %vm236, %v234, -inf
    %v238 = vrot.slane %v237, 4
    %v239 = vmax.f32 %v237, %v238
    %v240 = vrot.slane %v239, 2
    %v241 = vmax.f32 %v239, %v240
    %v242 = vrot.slane %v241, 1
    %v243 = vmax.f32 %v241, %v242
    %v244 = vsel %vm236, %v235, -inf
    %v245 = vrot.slane %v244, 4
    %v246 = vmax.f32 %v244, %v245
    %v247 = vrot.slane %v246, 2
    %v248 = vmax.f32 %v246, %v247
    %v249 = vrot.slane %v248, 1
    %v250 = vmax.f32 %v248, %v249
    %v251 = vld [vmem:[%s3] sm:$0x1]
    %v253 = vlaneseq
    %v254 = vshrl.u32 %v253, 7
    %v255 = vsub.s32 0, %v254
    %v256 = vrot.slane %v251, %v255
    %v258 = vadd.f32 %v243, %v256
    %v259 = vadd.f32 %v250, %v256
    %v260 = vmax.f32 %v258, 0.0
    %v261 = vmax.f32 %v259, 0.0
    %v262 = vld [vmem:[#allocation7] sm:$0xf]
    %v263 = vld [vmem:[#allocation7 + $0x4] sm:$0xf]
    %v264 = vld [vmem:[#allocation7 + $0x8] sm:$0xf]
    %v265 = vld [vmem:[#allocation7 + $0xc] sm:$0xf]
    %v270 = vunpack.c.l.b16 %v262
    %v271 = vunpack.c.l.b16 %v263
    %v272 = vunpack.c.l.b16 %v264
    %v273 = vunpack.c.l.b16 %v265
    %v274 = vpack.c.b16 %v271, %v270
    %v275 = vpack.c.b16 %v273, %v272
    %278 = vmatprep.subr.bf16.mxu0 0
    %279 = vmatpush1.bf16.msra.mxu0 %v274
    %280 = vmatprep.subr.bf16.mxu0 0
    %281 = vmatpush1.bf16.msra.mxu0 %v275
    %282 = vmatprep.subr.bf16.mxu0 0
    %283 = vmatpush1.bf16.msra.mxu0 0
    %284 = vmatprep.subr.bf16.mxu0 0
    %285 = vmatpush1.bf16.msra.mxu0 0
    %286 = vmatprep.subr.bf16.mxu0 0
    %287 = vmatpush1.bf16.msra.mxu0 0
    %288 = vmatprep.subr.bf16.mxu0 0
    %289 = vmatpush1.bf16.msra.mxu0 0
    %290 = vmatprep.subr.bf16.mxu0 0
    %291 = vmatpush1.bf16.msra.mxu0 0
    %292 = vmatprep.subr.bf16.mxu0 0
    %293 = vmatpush1.bf16.msra.mxu0 0
    %294 = vmatprep.subr.bf16.mxu0 0
    %295 = vmatpush1.bf16.msra.mxu0 0
    %296 = vmatprep.subr.bf16.mxu0 0
    %297 = vmatpush1.bf16.msra.mxu0 0
    %298 = vmatprep.subr.bf16.mxu0 0
    %299 = vmatpush1.bf16.msra.mxu0 0
    %300 = vmatprep.subr.bf16.mxu0 0
    %301 = vmatpush1.bf16.msra.mxu0 0
    %302 = vmatprep.subr.bf16.mxu0 0
    %303 = vmatpush1.bf16.msra.mxu0 0
    %304 = vmatprep.subr.bf16.mxu0 0
    %305 = vmatpush1.bf16.msra.mxu0 0
    %306 = vmatprep.subr.bf16.mxu0 0
    %307 = vmatpush1.bf16.msra.mxu0 0
    %308 = vmatprep.subr.bf16.mxu0 0
    %309 = vmatpush1.bf16.msra.mxu0 0
    %310 = vmatprep.mubr.bf16.mxu0 0
    %311 = vmatmul.mubr.bf16.gmra.mrb[0].mxu0 %v127
    %v312 = vpop.f32.mrb[0].mxu0
    %v313 = vadd.f32 0.0, %v312
    %v314 = vpop.f32.mrb[0].mxu0
    %v315 = vpop.f32.mrb[0].mxu0
    %v316 = vadd.f32 0.0, %v315
    %v317 = vpop.f32.mrb[0].mxu0
    %318 = vdwg.mxu0
    %s319 = scalar_lea.vmem [#allocation7], 16
    %v320 = vld [vmem:[%s319] sm:$0xf]
    %v321 = vld [vmem:[%s319 + $0x4] sm:$0xf]
    %v322 = vld [vmem:[%s319 + $0x8] sm:$0xf]
    %v323 = vld [vmem:[%s319 + $0xc] sm:$0xf]
    %v328 = vunpack.c.l.b16 %v320
    %v329 = vunpack.c.l.b16 %v321
    %v330 = vunpack.c.l.b16 %v322
    %v331 = vunpack.c.l.b16 %v323
    %v332 = vpack.c.b16 %v329, %v328
    %v333 = vpack.c.b16 %v331, %v330
    %336 = vmatprep.subr.bf16.mxu0 0
    %337 = vmatpush1.bf16.msra.mxu0 %v332
    %338 = vmatprep.subr.bf16.mxu0 0
    %339 = vmatpush1.bf16.msra.mxu0 %v333
    %340 = vmatprep.subr.bf16.mxu0 0
    %341 = vmatpush1.bf16.msra.mxu0 0
    %342 = vmatprep.subr.bf16.mxu0 0
    %343 = vmatpush1.bf16.msra.mxu0 0
    %344 = vmatprep.subr.bf16.mxu0 0
    %345 = vmatpush1.bf16.msra.mxu0 0
    %346 = vmatprep.subr.bf16.mxu0 0
    %347 = vmatpush1.bf16.msra.mxu0 0
    %348 = vmatprep.subr.bf16.mxu0 0
    %349 = vmatpush1.bf16.msra.mxu0 0
    %350 = vmatprep.subr.bf16.mxu0 0
    %351 = vmatpush1.bf16.msra.mxu0 0
    %352 = vmatprep.subr.bf16.mxu0 0
    %353 = vmatpush1.bf16.msra.mxu0 0
    %354 = vmatprep.subr.bf16.mxu0 0
    %355 = vmatpush1.bf16.msra.mxu0 0
    %356 = vmatprep.subr.bf16.mxu0 0
    %357 = vmatpush1.bf16.msra.mxu0 0
    %358 = vmatprep.subr.bf16.mxu0 0
    %359 = vmatpush1.bf16.msra.mxu0 0
    %360 = vmatprep.subr.bf16.mxu0 0
    %361 = vmatpush1.bf16.msra.mxu0 0
    %362 = vmatprep.subr.bf16.mxu0 0
    %363 = vmatpush1.bf16.msra.mxu0 0
    %364 = vmatprep.subr.bf16.mxu0 0
    %365 = vmatpush1.bf16.msra.mxu0 0
    %366 = vmatprep.subr.bf16.mxu0 0
    %367 = vmatpush1.bf16.msra.mxu0 0
    %368 = vmatprep.mubr.bf16.mxu0 0
    %369 = vmatmul.mubr.bf16.gmra.mrb[0].mxu0 %v127
    %v370 = vpop.f32.mrb[0].mxu0
    %v371 = vadd.f32 0.0, %v370
    %v372 = vpop.f32.mrb[0].mxu0
    %v373 = vpop.f32.mrb[0].mxu0
    %v374 = vadd.f32 0.0, %v373
    %v375 = vpop.f32.mrb[0].mxu0
    %376 = vdwg.mxu0
    %v379 = vrot.slane %v371, 1
    %v380 = vrot.slane %v374, 1
    %v383 = vadd.f32 %v313, %v379
    %v384 = vadd.f32 %v316, %v380
    %s385 = scalar_lea.vmem [#allocation7], 32
    %v386 = vld [vmem:[%s385] sm:$0xf]
    %v387 = vld [vmem:[%s385 + $0x4] sm:$0xf]
    %v388 = vld [vmem:[%s385 + $0x8] sm:$0xf]
    %v389 = vld [vmem:[%s385 + $0xc] sm:$0xf]
    %v394 = vunpack.c.l.b16 %v386
    %v395 = vunpack.c.l.b16 %v387
    %v396 = vunpack.c.l.b16 %v388
    %v397 = vunpack.c.l.b16 %v389
    %v398 = vpack.c.b16 %v395, %v394
    %v399 = vpack.c.b16 %v397, %v396
    %402 = vmatprep.subr.bf16.mxu0 0
    %403 = vmatpush1.bf16.msra.mxu0 %v398
    %404 = vmatprep.subr.bf16.mxu0 0
    %405 = vmatpush1.bf16.msra.mxu0 %v399
    %406 = vmatprep.subr.bf16.mxu0 0
    %407 = vmatpush1.bf16.msra.mxu0 0
    %408 = vmatprep.subr.bf16.mxu0 0
    %409 = vmatpush1.bf16.msra.mxu0 0
    %410 = vmatprep.subr.bf16.mxu0 0
    %411 = vmatpush1.bf16.msra.mxu0 0
    %412 = vmatprep.subr.bf16.mxu0 0
    %413 = vmatpush1.bf16.msra.mxu0 0
    %414 = vmatprep.subr.bf16.mxu0 0
    %415 = vmatpush1.bf16.msra.mxu0 0
    %416 = vmatprep.subr.bf16.mxu0 0
    %417 = vmatpush1.bf16.msra.mxu0 0
    %418 = vmatprep.subr.bf16.mxu0 0
    %419 = vmatpush1.bf16.msra.mxu0 0
    %420 = vmatprep.subr.bf16.mxu0 0
    %421 = vmatpush1.bf16.msra.mxu0 0
    %422 = vmatprep.subr.bf16.mxu0 0
    %423 = vmatpush1.bf16.msra.mxu0 0
    %424 = vmatprep.subr.bf16.mxu0 0
    %425 = vmatpush1.bf16.msra.mxu0 0
    %426 = vmatprep.subr.bf16.mxu0 0
    %427 = vmatpush1.bf16.msra.mxu0 0
    %428 = vmatprep.subr.bf16.mxu0 0
    %429 = vmatpush1.bf16.msra.mxu0 0
    %430 = vmatprep.subr.bf16.mxu0 0
    %431 = vmatpush1.bf16.msra.mxu0 0
    %432 = vmatprep.subr.bf16.mxu0 0
    %433 = vmatpush1.bf16.msra.mxu0 0
    %434 = vmatprep.mubr.bf16.mxu0 0
    %435 = vmatmul.mubr.bf16.gmra.mrb[0].mxu0 %v127
    %v436 = vpop.f32.mrb[0].mxu0
    %v437 = vadd.f32 0.0, %v436
    %v438 = vpop.f32.mrb[0].mxu0
    %v439 = vpop.f32.mrb[0].mxu0
    %v440 = vadd.f32 0.0, %v439
    %v441 = vpop.f32.mrb[0].mxu0
    %442 = vdwg.mxu0
    %v445 = vrot.slane %v437, 2
    %v446 = vrot.slane %v440, 2
    %v449 = vadd.f32 %v383, %v445
    %v450 = vadd.f32 %v384, %v446
    %vm451 = vcmask 1045504
    %v452 = vsel %vm451, %v449, -inf
    %v453 = vrot.slane %v452, 4
    %v454 = vmax.f32 %v452, %v453
    %v455 = vrot.slane %v454, 2
    %v456 = vmax.f32 %v454, %v455
    %v457 = vrot.slane %v456, 1
    %v458 = vmax.f32 %v456, %v457
    %v459 = vsel %vm451, %v450, -inf
    %v460 = vrot.slane %v459, 4
    %v461 = vmax.f32 %v459, %v460
    %v462 = vrot.slane %v461, 2
    %v463 = vmax.f32 %v461, %v462
    %v464 = vrot.slane %v463, 1
    %v465 = vmax.f32 %v463, %v464
    %v466 = vld [vmem:[%s4] sm:$0x1]
    %v468 = vlaneseq
    %v469 = vshrl.u32 %v468, 7
    %v470 = vsub.s32 0, %v469
    %v471 = vrot.slane %v466, %v470
    %v473 = vadd.f32 %v458, %v471
    %v474 = vadd.f32 %v465, %v471
    %v475 = vmax.f32 %v473, 0.0
    %v476 = vmax.f32 %v474, 0.0
    %v479 = vrot.slane %v261, 7
    %vm480 = vcmask 1041409
    %v481 = vsel %vm480, %v479, %v260
    %v485 = vrot.slane %v476, 7
    %v486 = vsel %vm480, %v485, %v475
    %v488 = vld [vmem:[#allocation10] sm:$0xf]
    %v489 = vld [vmem:[#allocation10 + $0x4] sm:$0xf]
    %v490 = vld [vmem:[#allocation10 + $0x8] sm:$0xf]
    %v491 = vld [vmem:[#allocation10 + $0xc] sm:$0xf]
    %v492 = vld [vmem:[#allocation10 + $0x10] sm:$0xf]
    %v493 = vld [vmem:[#allocation10 + $0x14] sm:$0xf]
    %v494 = vld [vmem:[#allocation10 + $0x18] sm:$0xf]
    %v495 = vld [vmem:[#allocation10 + $0x1c] sm:$0xf]
    %v496 = vld [vmem:[#allocation10 + $0x20] sm:$0xf]
    %v497 = vld [vmem:[#allocation10 + $0x24] sm:$0xf]
    %v498 = vld [vmem:[#allocation10 + $0x28] sm:$0xf]
    %v499 = vld [vmem:[#allocation10 + $0x2c] sm:$0xf]
    %v500 = vld [vmem:[#allocation10 + $0x30] sm:$0xf]
    %v501 = vld [vmem:[#allocation10 + $0x34] sm:$0xf]
    %v502 = vld [vmem:[#allocation10 + $0x38] sm:$0xf]
    %v503 = vld [vmem:[#allocation10 + $0x3c] sm:$0xf]
    %v504 = vld [vmem:[#allocation10 + $0x40] sm:$0xf]
    %v505 = vld [vmem:[#allocation10 + $0x44] sm:$0xf]
    %v506 = vld [vmem:[#allocation10 + $0x48] sm:$0xf]
    %v507 = vld [vmem:[#allocation10 + $0x4c] sm:$0xf]
    %v508 = vld [vmem:[#allocation10 + $0x50] sm:$0xf]
    %v509 = vld [vmem:[#allocation10 + $0x54] sm:$0xf]
    %v510 = vld [vmem:[#allocation10 + $0x58] sm:$0xf]
    %v511 = vld [vmem:[#allocation10 + $0x5c] sm:$0xf]
    %v512 = vld [vmem:[#allocation10 + $0x60] sm:$0xf]
    %v513 = vld [vmem:[#allocation10 + $0x64] sm:$0xf]
    %v514 = vld [vmem:[#allocation10 + $0x68] sm:$0xf]
    %v515 = vld [vmem:[#allocation10 + $0x6c] sm:$0xf]
    %v516 = vld [vmem:[#allocation10 + $0x70] sm:$0xf]
    %v517 = vld [vmem:[#allocation10 + $0x74] sm:$0xf]
    %v518 = vld [vmem:[#allocation10 + $0x78] sm:$0xf]
    %v519 = vld [vmem:[#allocation10 + $0x7c] sm:$0xf]
    %v520 = vld [vmem:[%s8] sm:$0x1]
    %v521 = vld [vmem:[#allocation8] sm:$0xff]
    %v522 = vld [vmem:[#allocation8 + $0x8] sm:$0xff]
    %v523 = vld [vmem:[#allocation8 + $0x10] sm:$0xff]
    %v524 = vld [vmem:[#allocation8 + $0x18] sm:$0xff]
    %v525 = vld [vmem:[#allocation8 + $0x20] sm:$0xff]
    %v526 = vld [vmem:[#allocation8 + $0x28] sm:$0xff]
    %v527 = vld [vmem:[#allocation8 + $0x30] sm:$0xff]
    %v528 = vld [vmem:[#allocation8 + $0x38] sm:$0xff]
    %v529 = vld [vmem:[#allocation8 + $0x40] sm:$0xff]
    %v530 = vld [vmem:[#allocation8 + $0x48] sm:$0xff]
    %v531 = vld [vmem:[#allocation8 + $0x50] sm:$0xff]
    %v532 = vld [vmem:[#allocation8 + $0x58] sm:$0xff]
    %v533 = vld [vmem:[#allocation8 + $0x60] sm:$0xff]
    %v534 = vld [vmem:[#allocation8 + $0x68] sm:$0xff]
    %v535 = vld [vmem:[#allocation8 + $0x70] sm:$0xff]
    %v536 = vld [vmem:[#allocation8 + $0x78] sm:$0xff]
    %v537 = vld [vmem:[#allocation8 + $0x80] sm:$0xff]
    %v538 = vld [vmem:[#allocation8 + $0x88] sm:$0xff]
    %v539 = vld [vmem:[#allocation8 + $0x90] sm:$0xff]
    %v540 = vld [vmem:[#allocation8 + $0x98] sm:$0xff]
    %v541 = vld [vmem:[#allocation8 + $0xa0] sm:$0xff]
    %v542 = vld [vmem:[#allocation8 + $0xa8] sm:$0xff]
    %v543 = vld [vmem:[#allocation8 + $0xb0] sm:$0xff]
    %v544 = vld [vmem:[#allocation8 + $0xb8] sm:$0xff]
    %v545 = vld [vmem:[#allocation8 + $0xc0] sm:$0xff]
    %v546 = vld [vmem:[#allocation8 + $0xc8] sm:$0xff]
    %v547 = vld [vmem:[#allocation8 + $0xd0] sm:$0xff]
    %v548 = vld [vmem:[#allocation8 + $0xd8] sm:$0xff]
    %v549 = vld [vmem:[#allocation8 + $0xe0] sm:$0xff]
    %v550 = vld [vmem:[#allocation8 + $0xe8] sm:$0xff]
    %v551 = vld [vmem:[#allocation8 + $0xf0] sm:$0xff]
    %v552 = vld [vmem:[#allocation8 + $0xf8] sm:$0xff]
    %v553 = vld [vmem:[#allocation8 + $0x100] sm:$0xff]
    %v554 = vld [vmem:[#allocation8 + $0x108] sm:$0xff]
    %v555 = vld [vmem:[#allocation8 + $0x110] sm:$0xff]
    %v556 = vld [vmem:[#allocation8 + $0x118] sm:$0xff]
    %v557 = vld [vmem:[#allocation8 + $0x120] sm:$0xff]
    %v558 = vld [vmem:[#allocation8 + $0x128] sm:$0xff]
    %v559 = vld [vmem:[#allocation8 + $0x130] sm:$0xff]
    %v560 = vld [vmem:[#allocation8 + $0x138] sm:$0xff]
    %v561 = vld [vmem:[#allocation8 + $0x140] sm:$0xff]
    %v562 = vld [vmem:[#allocation8 + $0x148] sm:$0xff]
    %v563 = vld [vmem:[#allocation8 + $0x150] sm:$0xff]
    %v564 = vld [vmem:[#allocation8 + $0x158] sm:$0xff]
    %v565 = vld [vmem:[#allocation8 + $0x160] sm:$0xff]
    %v566 = vld [vmem:[#allocation8 + $0x168] sm:$0xff]
    %v567 = vld [vmem:[#allocation8 + $0x170] sm:$0xff]
    %v568 = vld [vmem:[#allocation8 + $0x178] sm:$0xff]
    %v569 = vld [vmem:[#allocation8 + $0x180] sm:$0xff]
    %v570 = vld [vmem:[#allocation8 + $0x188] sm:$0xff]
    %v571 = vld [vmem:[#allocation8 + $0x190] sm:$0xff]
    %v572 = vld [vmem:[#allocation8 + $0x198] sm:$0xff]
    %v573 = vld [vmem:[#allocation8 + $0x1a0] sm:$0xff]
    %v574 = vld [vmem:[#allocation8 + $0x1a8] sm:$0xff]
    %v575 = vld [vmem:[#allocation8 + $0x1b0] sm:$0xff]
    %v576 = vld [vmem:[#allocation8 + $0x1b8] sm:$0xff]
    %v577 = vld [vmem:[#allocation8 + $0x1c0] sm:$0xff]
    %v578 = vld [vmem:[#allocation8 + $0x1c8] sm:$0xff]
    %v579 = vld [vmem:[#allocation8 + $0x1d0] sm:$0xff]
    %v580 = vld [vmem:[#allocation8 + $0x1d8] sm:$0xff]
    %v581 = vld [vmem:[#allocation8 + $0x1e0] sm:$0xff]
    %v582 = vld [vmem:[#allocation8 + $0x1e8] sm:$0xff]
    %v583 = vld [vmem:[#allocation8 + $0x1f0] sm:$0xff]
    %v584 = vld [vmem:[#allocation8 + $0x1f8] sm:$0xff]
    %v585 = vld [vmem:[%s6] sm:$0xf]
    %v586 = vpack.c.bf16 %v481, %v481
    %v587 = vpack.c.bf16 %v486, %v486
    %v589 = vlaneseq
    %v590 = vshrl.u32 %v589, 7
    %v591 = vsub.s32 0, %v590
    %v592 = vrot.slane %v585, %v591
    %v593 = vlaneseq
    %v594 = vshrl.u32 %v593, 7
    %v595 = vsub.s32 1, %v594
    %v596 = vrot.slane %v585, %v595
    %v597 = vlaneseq
    %v598 = vshrl.u32 %v597, 7
    %v599 = vsub.s32 2, %v598
    %v600 = vrot.slane %v585, %v599
    %v601 = vlaneseq
    %v602 = vshrl.u32 %v601, 7
    %v603 = vsub.s32 3, %v602
    %v604 = vrot.slane %v585, %v603
    %v673 = vunpack.c.l.b16 %v521
    %v674 = vunpack.c.h.b16 %v521
    %v675 = vunpack.c.l.b16 %v522
    %v676 = vunpack.c.h.b16 %v522
    %v677 = vunpack.c.l.b16 %v523
    %v678 = vunpack.c.h.b16 %v523
    %v679 = vunpack.c.l.b16 %v524
    %v680 = vunpack.c.h.b16 %v524
    %v681 = vunpack.c.l.b16 %v525
    %v682 = vunpack.c.h.b16 %v525
    %v683 = vunpack.c.l.b16 %v526
    %v684 = vunpack.c.h.b16 %v526
    %v685 = vunpack.c.l.b16 %v527
    %v686 = vunpack.c.h.b16 %v527
    %v687 = vunpack.c.l.b16 %v528
    %v688 = vunpack.c.h.b16 %v528
    %v689 = vunpack.c.l.b16 %v529
    %v690 = vunpack.c.h.b16 %v529
    %v691 = vunpack.c.l.b16 %v530
    %v692 = vunpack.c.h.b16 %v530
    %v693 = vunpack.c.l.b16 %v531
    %v694 = vunpack.c.h.b16 %v531
    %v695 = vunpack.c.l.b16 %v532
    %v696 = vunpack.c.h.b16 %v532
    %v697 = vunpack.c.l.b16 %v533
    %v698 = vunpack.c.h.b16 %v533
    %v699 = vunpack.c.l.b16 %v534
    %v700 = vunpack.c.h.b16 %v534
    %v701 = vunpack.c.l.b16 %v535
    %v702 = vunpack.c.h.b16 %v535
    %v703 = vunpack.c.l.b16 %v536
    %v704 = vunpack.c.h.b16 %v536
    %v705 = vunpack.c.l.b16 %v537
    %v706 = vunpack.c.h.b16 %v537
    %v707 = vunpack.c.l.b16 %v538
    %v708 = vunpack.c.h.b16 %v538
    %v709 = vunpack.c.l.b16 %v539
    %v710 = vunpack.c.h.b16 %v539
    %v711 = vunpack.c.l.b16 %v540
    %v712 = vunpack.c.h.b16 %v540
    %v713 = vunpack.c.l.b16 %v541
    %v714 = vunpack.c.h.b16 %v541
    %v715 = vunpack.c.l.b16 %v542
    %v716 = vunpack.c.h.b16 %v542
    %v717 = vunpack.c.l.b16 %v543
    %v718 = vunpack.c.h.b16 %v543
    %v719 = vunpack.c.l.b16 %v544
    %v720 = vunpack.c.h.b16 %v544
    %v721 = vunpack.c.l.b16 %v545
    %v722 = vunpack.c.h.b16 %v545
    %v723 = vunpack.c.l.b16 %v546
    %v724 = vunpack.c.h.b16 %v546
    %v725 = vunpack.c.l.b16 %v547
    %v726 = vunpack.c.h.b16 %v547
    %v727 = vunpack.c.l.b16 %v548
    %v728 = vunpack.c.h.b16 %v548
    %v729 = vunpack.c.l.b16 %v549
    %v730 = vunpack.c.h.b16 %v549
    %v731 = vunpack.c.l.b16 %v550
    %v732 = vunpack.c.h.b16 %v550
    %v733 = vunpack.c.l.b16 %v551
    %v734 = vunpack.c.h.b16 %v551
    %v735 = vunpack.c.l.b16 %v552
    %v736 = vunpack.c.h.b16 %v552
    %v737 = vunpack.c.l.b16 %v553
    %v738 = vunpack.c.h.b16 %v553
    %v739 = vunpack.c.l.b16 %v554
    %v740 = vunpack.c.h.b16 %v554
    %v741 = vunpack.c.l.b16 %v555
    %v742 = vunpack.c.h.b16 %v555
    %v743 = vunpack.c.l.b16 %v556
    %v744 = vunpack.c.h.b16 %v556
    %v745 = vunpack.c.l.b16 %v557
    %v746 = vunpack.c.h.b16 %v557
    %v747 = vunpack.c.l.b16 %v558
    %v748 = vunpack.c.h.b16 %v558
    %v749 = vunpack.c.l.b16 %v559
    %v750 = vunpack.c.h.b16 %v559
    %v751 = vunpack.c.l.b16 %v560
    %v752 = vunpack.c.h.b16 %v560
    %v753 = vunpack.c.l.b16 %v561
    %v754 = vunpack.c.h.b16 %v561
    %v755 = vunpack.c.l.b16 %v562
    %v756 = vunpack.c.h.b16 %v562
    %v757 = vunpack.c.l.b16 %v563
    %v758 = vunpack.c.h.b16 %v563
    %v759 = vunpack.c.l.b16 %v564
    %v760 = vunpack.c.h.b16 %v564
    %v761 = vunpack.c.l.b16 %v565
    %v762 = vunpack.c.h.b16 %v565
    %v763 = vunpack.c.l.b16 %v566
    %v764 = vunpack.c.h.b16 %v566
    %v765 = vunpack.c.l.b16 %v567
    %v766 = vunpack.c.h.b16 %v567
    %v767 = vunpack.c.l.b16 %v568
    %v768 = vunpack.c.h.b16 %v568
    %v769 = vunpack.c.l.b16 %v569
    %v770 = vunpack.c.h.b16 %v569
    %v771 = vunpack.c.l.b16 %v570
    %v772 = vunpack.c.h.b16 %v570
    %v773 = vunpack.c.l.b16 %v571
    %v774 = vunpack.c.h.b16 %v571
    %v775 = vunpack.c.l.b16 %v572
    %v776 = vunpack.c.h.b16 %v572
    %v777 = vunpack.c.l.b16 %v573
    %v778 = vunpack.c.h.b16 %v573
    %v779 = vunpack.c.l.b16 %v574
    %v780 = vunpack.c.h.b16 %v574
    %v781 = vunpack.c.l.b16 %v575
    %v782 = vunpack.c.h.b16 %v575
    %v783 = vunpack.c.l.b16 %v576
    %v784 = vunpack.c.h.b16 %v576
    %v785 = vunpack.c.l.b16 %v577
    %v786 = vunpack.c.h.b16 %v577
    %v787 = vunpack.c.l.b16 %v578
    %v788 = vunpack.c.h.b16 %v578
    %v789 = vunpack.c.l.b16 %v579
    %v790 = vunpack.c.h.b16 %v579
    %v791 = vunpack.c.l.b16 %v580
    %v792 = vunpack.c.h.b16 %v580
    %v793 = vunpack.c.l.b16 %v581
    %v794 = vunpack.c.h.b16 %v581
    %v795 = vunpack.c.l.b16 %v582
    %v796 = vunpack.c.h.b16 %v582
    %v797 = vunpack.c.l.b16 %v583
    %v798 = vunpack.c.h.b16 %v583
    %v799 = vunpack.c.l.b16 %v584
    %v800 = vunpack.c.h.b16 %v584
    %v801 = vpack.c.b16 %v677, %v673
    %v802 = vpack.c.b16 %v678, %v674
    %v803 = vpack.c.b16 %v679, %v675
    %v804 = vpack.c.b16 %v680, %v676
    %v805 = vpack.c.b16 %v685, %v681
    %v806 = vpack.c.b16 %v686, %v682
    %v807 = vpack.c.b16 %v687, %v683
    %v808 = vpack.c.b16 %v688, %v684
    %v809 = vpack.c.b16 %v693, %v689
    %v810 = vpack.c.b16 %v694, %v690
    %v811 = vpack.c.b16 %v695, %v691
    %v812 = vpack.c.b16 %v696, %v692
    %v813 = vpack.c.b16 %v701, %v697
    %v814 = vpack.c.b16 %v702, %v698
    %v815 = vpack.c.b16 %v703, %v699
    %v816 = vpack.c.b16 %v704, %v700
    %v817 = vpack.c.b16 %v709, %v705
    %v818 = vpack.c.b16 %v710, %v706
    %v819 = vpack.c.b16 %v711, %v707
    %v820 = vpack.c.b16 %v712, %v708
    %v821 = vpack.c.b16 %v717, %v713
    %v822 = vpack.c.b16 %v718, %v714
    %v823 = vpack.c.b16 %v719, %v715
    %v824 = vpack.c.b16 %v720, %v716
    %v825 = vpack.c.b16 %v725, %v721
    %v826 = vpack.c.b16 %v726, %v722
    %v827 = vpack.c.b16 %v727, %v723
    %v828 = vpack.c.b16 %v728, %v724
    %v829 = vpack.c.b16 %v733, %v729
    %v830 = vpack.c.b16 %v734, %v730
    %v831 = vpack.c.b16 %v735, %v731
    %v832 = vpack.c.b16 %v736, %v732
    %v833 = vpack.c.b16 %v741, %v737
    %v834 = vpack.c.b16 %v742, %v738
    %v835 = vpack.c.b16 %v743, %v739
    %v836 = vpack.c.b16 %v744, %v740
    %v837 = vpack.c.b16 %v749, %v745
    %v838 = vpack.c.b16 %v750, %v746
    %v839 = vpack.c.b16 %v751, %v747
    %v840 = vpack.c.b16 %v752, %v748
    %v841 = vpack.c.b16 %v757, %v753
    %v842 = vpack.c.b16 %v758, %v754
    %v843 = vpack.c.b16 %v759, %v755
    %v844 = vpack.c.b16 %v760, %v756
    %v845 = vpack.c.b16 %v765, %v761
    %v846 = vpack.c.b16 %v766, %v762
    %v847 = vpack.c.b16 %v767, %v763
    %v848 = vpack.c.b16 %v768, %v764
    %v849 = vpack.c.b16 %v773, %v769
    %v850 = vpack.c.b16 %v774, %v770
    %v851 = vpack.c.b16 %v775, %v771
    %v852 = vpack.c.b16 %v776, %v772
    %v853 = vpack.c.b16 %v781, %v777
    %v854 = vpack.c.b16 %v782, %v778
    %v855 = vpack.c.b16 %v783, %v779
    %v856 = vpack.c.b16 %v784, %v780
    %v857 = vpack.c.b16 %v789, %v785
    %v858 = vpack.c.b16 %v790, %v786
    %v859 = vpack.c.b16 %v791, %v787
    %v860 = vpack.c.b16 %v792, %v788
    %v861 = vpack.c.b16 %v797, %v793
    %v862 = vpack.c.b16 %v798, %v794
    %v863 = vpack.c.b16 %v799, %v795
    %v864 = vpack.c.b16 %v800, %v796
    %929 = vmatprep.subr.bf16.mxu0 %v802
    %930 = vmatpush1.bf16.msra.mxu0 %v801
    %931 = vmatprep.subr.bf16.mxu0 %v806
    %932 = vmatpush1.bf16.msra.mxu0 %v805
    %933 = vmatprep.subr.bf16.mxu0 %v810
    %934 = vmatpush1.bf16.msra.mxu0 %v809
    %935 = vmatprep.subr.bf16.mxu0 %v814
    %936 = vmatpush1.bf16.msra.mxu0 %v813
    %937 = vmatprep.subr.bf16.mxu0 %v818
    %938 = vmatpush1.bf16.msra.mxu0 %v817
    %939 = vmatprep.subr.bf16.mxu0 %v822
    %940 = vmatpush1.bf16.msra.mxu0 %v821
    %941 = vmatprep.subr.bf16.mxu0 %v826
    %942 = vmatpush1.bf16.msra.mxu0 %v825
    %943 = vmatprep.subr.bf16.mxu0 %v830
    %944 = vmatpush1.bf16.msra.mxu0 %v829
    %945 = vmatprep.subr.bf16.mxu0 %v834
    %946 = vmatpush1.bf16.msra.mxu0 %v833
    %947 = vmatprep.subr.bf16.mxu0 %v838
    %948 = vmatpush1.bf16.msra.mxu0 %v837
    %949 = vmatprep.subr.bf16.mxu0 %v842
    %950 = vmatpush1.bf16.msra.mxu0 %v841
    %951 = vmatprep.subr.bf16.mxu0 %v846
    %952 = vmatpush1.bf16.msra.mxu0 %v845
    %953 = vmatprep.subr.bf16.mxu0 %v850
    %954 = vmatpush1.bf16.msra.mxu0 %v849
    %955 = vmatprep.subr.bf16.mxu0 %v854
    %956 = vmatpush1.bf16.msra.mxu0 %v853
    %957 = vmatprep.subr.bf16.mxu0 %v858
    %958 = vmatpush1.bf16.msra.mxu0 %v857
    %959 = vmatprep.subr.bf16.mxu0 %v862
    %960 = vmatpush1.bf16.msra.mxu0 %v861
    %961 = vmatprep.mubr.bf16.mxu0 %v587
    %962 = vmatmul.mubr.bf16.gmra.mrb[0].mxu0 %v586
    %v963 = vpop.f32.mrb[0].mxu0
    %v964 = vadd.f32 %v592, %v963
    %v965 = vpop.f32.mrb[0].mxu0
    %v966 = vadd.f32 %v596, %v965
    %v967 = vpop.f32.mrb[0].mxu0
    %v968 = vpop.f32.mrb[0].mxu0
    %969 = vdwg.mxu0
    %970 = vmatprep.subr.bf16.mxu0 %v804
    %971 = vmatpush1.bf16.msra.mxu0 %v803
    %972 = vmatprep.subr.bf16.mxu0 %v808
    %973 = vmatpush1.bf16.msra.mxu0 %v807
    %974 = vmatprep.subr.bf16.mxu0 %v812
    %975 = vmatpush1.bf16.msra.mxu0 %v811
    %976 = vmatprep.subr.bf16.mxu0 %v816
    %977 = vmatpush1.bf16.msra.mxu0 %v815
    %978 = vmatprep.subr.bf16.mxu0 %v820
    %979 = vmatpush1.bf16.msra.mxu0 %v819
    %980 = vmatprep.subr.bf16.mxu0 %v824
    %981 = vmatpush1.bf16.msra.mxu0 %v823
    %982 = vmatprep.subr.bf16.mxu0 %v828
    %983 = vmatpush1.bf16.msra.mxu0 %v827
    %984 = vmatprep.subr.bf16.mxu0 %v832
    %985 = vmatpush1.bf16.msra.mxu0 %v831
    %986 = vmatprep.subr.bf16.mxu0 %v836
    %987 = vmatpush1.bf16.msra.mxu0 %v835
    %988 = vmatprep.subr.bf16.mxu0 %v840
    %989 = vmatpush1.bf16.msra.mxu0 %v839
    %990 = vmatprep.subr.bf16.mxu0 %v844
    %991 = vmatpush1.bf16.msra.mxu0 %v843
    %992 = vmatprep.subr.bf16.mxu0 %v848
    %993 = vmatpush1.bf16.msra.mxu0 %v847
    %994 = vmatprep.subr.bf16.mxu0 %v852
    %995 = vmatpush1.bf16.msra.mxu0 %v851
    %996 = vmatprep.subr.bf16.mxu0 %v856
    %997 = vmatpush1.bf16.msra.mxu0 %v855
    %998 = vmatprep.subr.bf16.mxu0 %v860
    %999 = vmatpush1.bf16.msra.mxu0 %v859
    %1000 = vmatprep.subr.bf16.mxu0 %v864
    %1001 = vmatpush1.bf16.msra.mxu0 %v863
    %1002 = vmatprep.mubr.bf16.mxu0 %v587
    %1003 = vmatmul.mubr.bf16.gmra.mrb[0].mxu0 %v586
    %v1004 = vpop.f32.mrb[0].mxu0
    %v1005 = vadd.f32 %v600, %v1004
    %v1006 = vpop.f32.mrb[0].mxu0
    %v1007 = vadd.f32 %v604, %v1006
    %v1008 = vpop.f32.mrb[0].mxu0
    %v1009 = vpop.f32.mrb[0].mxu0
    %1010 = vdwg.mxu0
    %v1011 = vmax.f32 %v964, 0.0
    %v1012 = vmax.f32 %v966, 0.0
    %v1013 = vxor.u32 %v1005, 2147483648
    %v1014 = vxor.u32 %v1007, 2147483648
    %v1015 = vmul.f32 %v1013, 1.442695
    %v1016 = vpow.pop %v1015
    %v1017 = vmul.f32 %v1014, 1.442695
    %v1018 = vpow.pop %v1017
    %v1019 = vadd.f32 %v1016, 1.0
    %v1020 = vadd.f32 %v1018, 1.0
    %v1021 = vrcp.pop %v1019
    %v1022 = vmul.f32 1.0, %v1021
    %v1023 = vrcp.pop %v1020
    %v1024 = vmul.f32 1.0, %v1023
    %v1025 = vmul.f32 %v1022, %v481
    %v1026 = vmul.f32 %v1024, %v486
    %v1027 = vsub.f32 1.0, %v1022
    %v1028 = vsub.f32 1.0, %v1024
    %v1029 = vmul.f32 %v1027, %v1011
    %v1030 = vmul.f32 %v1028, %v1012
    %v1031 = vadd.f32 %v1025, %v1029
    %v1032 = vadd.f32 %v1026, %v1030
    %v1033 = vpack.c.bf16 %v1031, %v1031
    %v1034 = vpack.c.bf16 %v1032, %v1032
    %v1036 = vlaneseq
    %v1037 = vshrl.u32 %v1036, 7
    %v1038 = vsub.s32 0, %v1037
    %v1039 = vrot.slane %v520, %v1038
    %v1073 = vunpack.c.l.b16 %v488
    %v1074 = vunpack.c.l.b16 %v489
    %v1075 = vunpack.c.l.b16 %v490
    %v1076 = vunpack.c.l.b16 %v491
    %v1077 = vunpack.c.l.b16 %v492
    %v1078 = vunpack.c.l.b16 %v493
    %v1079 = vunpack.c.l.b16 %v494
    %v1080 = vunpack.c.l.b16 %v495
    %v1081 = vunpack.c.l.b16 %v496
    %v1082 = vunpack.c.l.b16 %v497
    %v1083 = vunpack.c.l.b16 %v498
    %v1084 = vunpack.c.l.b16 %v499
    %v1085 = vunpack.c.l.b16 %v500
    %v1086 = vunpack.c.l.b16 %v501
    %v1087 = vunpack.c.l.b16 %v502
    %v1088 = vunpack.c.l.b16 %v503
    %v1089 = vunpack.c.l.b16 %v504
    %v1090 = vunpack.c.l.b16 %v505
    %v1091 = vunpack.c.l.b16 %v506
    %v1092 = vunpack.c.l.b16 %v507
    %v1093 = vunpack.c.l.b16 %v508
    %v1094 = vunpack.c.l.b16 %v509
    %v1095 = vunpack.c.l.b16 %v510
    %v1096 = vunpack.c.l.b16 %v511
    %v1097 = vunpack.c.l.b16 %v512
    %v1098 = vunpack.c.l.b16 %v513
    %v1099 = vunpack.c.l.b16 %v514
    %v1100 = vunpack.c.l.b16 %v515
    %v1101 = vunpack.c.l.b16 %v516
    %v1102 = vunpack.c.l.b16 %v517
    %v1103 = vunpack.c.l.b16 %v518
    %v1104 = vunpack.c.l.b16 %v519
    %v1105 = vpack.c.b16 %v1074, %v1073
    %v1106 = vpack.c.b16 %v1076, %v1075
    %v1107 = vpack.c.b16 %v1078, %v1077
    %v1108 = vpack.c.b16 %v1080, %v1079
    %v1109 = vpack.c.b16 %v1082, %v1081
    %v1110 = vpack.c.b16 %v1084, %v1083
    %v1111 = vpack.c.b16 %v1086, %v1085
    %v1112 = vpack.c.b16 %v1088, %v1087
    %v1113 = vpack.c.b16 %v1090, %v1089
    %v1114 = vpack.c.b16 %v1092, %v1091
    %v1115 = vpack.c.b16 %v1094, %v1093
    %v1116 = vpack.c.b16 %v1096, %v1095
    %v1117 = vpack.c.b16 %v1098, %v1097
    %v1118 = vpack.c.b16 %v1100, %v1099
    %v1119 = vpack.c.b16 %v1102, %v1101
    %v1120 = vpack.c.b16 %v1104, %v1103
    %1137 = vmatprep.subr.bf16.mxu0 0
    %1138 = vmatpush1.bf16.msra.mxu0 %v1105
    %1139 = vmatprep.subr.bf16.mxu0 0
    %1140 = vmatpush1.bf16.msra.mxu0 %v1106
    %1141 = vmatprep.subr.bf16.mxu0 0
    %1142 = vmatpush1.bf16.msra.mxu0 %v1107
    %1143 = vmatprep.subr.bf16.mxu0 0
    %1144 = vmatpush1.bf16.msra.mxu0 %v1108
    %1145 = vmatprep.subr.bf16.mxu0 0
    %1146 = vmatpush1.bf16.msra.mxu0 %v1109
    %1147 = vmatprep.subr.bf16.mxu0 0
    %1148 = vmatpush1.bf16.msra.mxu0 %v1110
    %1149 = vmatprep.subr.bf16.mxu0 0
    %1150 = vmatpush1.bf16.msra.mxu0 %v1111
    %1151 = vmatprep.subr.bf16.mxu0 0
    %1152 = vmatpush1.bf16.msra.mxu0 %v1112
    %1153 = vmatprep.subr.bf16.mxu0 0
    %1154 = vmatpush1.bf16.msra.mxu0 %v1113
    %1155 = vmatprep.subr.bf16.mxu0 0
    %1156 = vmatpush1.bf16.msra.mxu0 %v1114
    %1157 = vmatprep.subr.bf16.mxu0 0
    %1158 = vmatpush1.bf16.msra.mxu0 %v1115
    %1159 = vmatprep.subr.bf16.mxu0 0
    %1160 = vmatpush1.bf16.msra.mxu0 %v1116
    %1161 = vmatprep.subr.bf16.mxu0 0
    %1162 = vmatpush1.bf16.msra.mxu0 %v1117
    %1163 = vmatprep.subr.bf16.mxu0 0
    %1164 = vmatpush1.bf16.msra.mxu0 %v1118
    %1165 = vmatprep.subr.bf16.mxu0 0
    %1166 = vmatpush1.bf16.msra.mxu0 %v1119
    %1167 = vmatprep.subr.bf16.mxu0 0
    %1168 = vmatpush1.bf16.msra.mxu0 %v1120
    %1169 = vmatprep.mubr.bf16.mxu0 %v1034
    %1170 = vmatmul.mubr.bf16.gmra.mrb[0].mxu0 %v1033
    %v1171 = vpop.f32.mrb[0].mxu0
    %v1172 = vadd.f32 %v1039, %v1171
    %v1173 = vpop.f32.mrb[0].mxu0
    %v1174 = vpop.f32.mrb[0].mxu0
    %v1175 = vpop.f32.mrb[0].mxu0
    %1176 = vdwg.mxu0
    %1177 = vst [vmem:[#allocation11] sm:$0x3] %v1172
    // Predicated region
    $region58: #{tpu_custom_call.1} parent=1 // pred_check
      _
    $region59: #{tpu_custom_call.1} parent=1 // pred_check_branch
      %1179 = sbr.rel (0) target = $region61
    $region60: #{tpu_custom_call.1} parent=1 // pred_region
      %s1181 = ssub.s32 32, 32
      %1182 = vsyncadd [#allocation4], %s1181
      %s1184 = sshll.u32 [#allocation11], 4
      %s1185 = int_to_ptr.vmem [resolvable:$true] %s1184
      %1187 = dma.vmem_to_hbm [thread:$0]  %s1185, 32, %s9, [#allocation4]
    $region61: #{tpu_custom_call.1} parent=1 // pred_fallthru
      _
    // Predicated region
    $region62: #{tpu_custom_call.1} parent=1 // pred_check
      _
    $region63: #{tpu_custom_call.1} parent=1 // pred_check_branch
      %1189 = sbr.rel (0) target = $region65
    $region64: #{tpu_custom_call.1} parent=1 // pred_region
      %1190 = dma.done [#allocation4], 32
    $region65: #{tpu_custom_call.1} parent=1 // pred_fallthru
      _
    %1191 = vsyncpa [#allocation3], 1
    %1192 = vsyncpa [#allocation6], 1
    %1193 = vsyncpa [#allocation9], 1
    %1194 = vsyncpa [#allocation4], 1

// kernel: tpu_custom_call.1
$region0: #{tpu_custom_call.1}
  #allocation0 [shape = 'u32[]', space=smem, size = 0x4, offset = 0x4, fixed_abs, tag = 'smem constant byte address 0x4 - core index']
  #allocation1 [shape = 'u32[144,128]{1,0:T(1,128)}', space=vmem, size = 0x12000, scoped, tag = 'internal scratch']
  %s0 = inlined_call_operand.hbm [shape: bf16[2,8,32], index: 0, kind: input, shape index: {}]
  %s1 = inlined_call_operand.hbm [shape: bf16[2,32,128], index: 1, kind: input, shape index: {}]
  %s2 = inlined_call_operand.hbm [shape: bf16[3,32,128], index: 2, kind: input, shape index: {}]
  %s3 = inlined_call_operand.vmem [shape: f32[1,128], index: 3, kind: input, shape index: {}]
  %s4 = inlined_call_operand.vmem [shape: f32[1,128], index: 4, kind: input, shape index: {}]
  %s5 = inlined_call_operand.hbm [shape: bf16[256,512], index: 5, kind: input, shape index: {}]
  %s6 = inlined_call_operand.vmem [shape: f32[1,512], index: 6, kind: input, shape index: {}]
  %s7 = inlined_call_operand.hbm [shape: bf16[256,128], index: 7, kind: input, shape index: {}]
  %s8 = inlined_call_operand.vmem [shape: f32[1,128], index: 8, kind: input, shape index: {}]
  %s9 = inlined_call_operand.hbm [shape: f32[2,128], index: 9, kind: output, shape index: {}]
  %s10 = sld [smem:[#allocation0]]
  $region66: #{tpu_custom_call.1} parent=0
    _
  %s12 = ssub.s32 1, %s10
  %s13 = scalar_select 0, %s12, %s10
  $region1: #{tpu_custom_call.1} parent=0
    #allocation2 [shape = 'u8[4096]{0}', space=vmem, size = 0x1000, scoped, tag = 'input window, operand 0, single buffered']
    #allocation3 [shape = 's32[1]{0}', space=sflag, size = 0x4, scoped, tag = 'scoped memory for tpu_custom_call.1']
    #allocation4 [shape = 's32[1]{0}', space=sflag, size = 0x4, scoped, tag = 'scoped memory for tpu_custom_call.1']
    #allocation5 [shape = 'u8[16384]{0}', space=vmem, size = 0x4000, scoped, tag = 'input window, operand 1, single buffered']
    #allocation6 [shape = 's32[1]{0}', space=sflag, size = 0x4, scoped, tag = 'scoped memory for tpu_custom_call.1']
    #allocation7 [shape = 'u8[24576]{0}', space=vmem, size = 0x6000, scoped, tag = 'input window, operand 2, single buffered']
    #allocation8 [shape = 'u8[262144]{0}', space=vmem, size = 0x40000, scoped, tag = 'input window, operand 5, single buffered']
    #allocation9 [shape = 's32[1]{0}', space=sflag, size = 0x4, scoped, tag = 'scoped memory for tpu_custom_call.1']
    #allocation10 [shape = 'u8[65536]{0}', space=vmem, size = 0x10000, scoped, tag = 'input window, operand 7, single buffered']
    #allocation11 [shape = 'u8[1024]{0}', space=vmem, size = 0x400, scoped, tag = 'output window, operand 0, single buffered']
    %14 = vsyncpa [#allocation3], 0
    %15 = vsyncpa [#allocation6], 0
    %16 = vsyncpa [#allocation9], 0
    %17 = vsyncpa [#allocation4], 0
    // Predicated region
    $region2: #{tpu_custom_call.1} parent=1 // pred_check
      _
    $region3: #{tpu_custom_call.1} parent=1 // pred_check_branch
      %19 = sbr.rel (0) target = $region5
    $region4: #{tpu_custom_call.1} parent=1 // pred_region
      %s21 = ssub.s32 128, 128
      %22 = vsyncadd [#allocation3], %s21
      %s23 = sshll.u32 [#allocation2], 4
      %s24 = int_to_ptr.vmem [resolvable:$true] %s23
      %29 = dma.hbm_to_vmem [thread:$0]  %s0, 128, %s24, [#allocation3], 64, 64, 4
    $region5: #{tpu_custom_call.1} parent=1 // pred_fallthru
      _
    // Predicated region
    $region6: #{tpu_custom_call.1} parent=1 // pred_check
      _
    $region7: #{tpu_custom_call.1} parent=1 // pred_check_branch
      %31 = sbr.rel (0) target = $region9
    $region8: #{tpu_custom_call.1} parent=1 // pred_region
      %s33 = ssub.s32 512, 512
      %34 = vsyncadd [#allocation6], %s33
      %s35 = sshll.u32 [#allocation5], 4
      %s36 = int_to_ptr.vmem [resolvable:$true] %s35
      %41 = dma.hbm_to_vmem [thread:$0]  %s1, 512, %s36, [#allocation6], 64, 64, 4
    $region9: #{tpu_custom_call.1} parent=1 // pred_fallthru
      _
    // Predicated region
    $region10: #{tpu_custom_call.1} parent=1 // pred_check
      _
    $region11: #{tpu_custom_call.1} parent=1 // pred_check_branch
      %43 = sbr.rel (0) target = $region13
    $region12: #{tpu_custom_call.1} parent=1 // pred_region
      %s45 = ssub.s32 768, 768
      %46 = vsyncadd [#allocation6], %s45
      %s47 = sshll.u32 [#allocation7], 4
      %s48 = int_to_ptr.vmem [resolvable:$true] %s47
      %53 = dma.hbm_to_vmem [thread:$0]  %s2, 768, %s48, [#allocation6], 64, 64, 4
    $region13: #{tpu_custom_call.1} parent=1 // pred_fallthru
      _
    // Predicated region
    $region14: #{tpu_custom_call.1} parent=1 // pred_check
      _
    $region15: #{tpu_custom_call.1} parent=1 // pred_check_branch
      %55 = sbr.rel (0) target = $region17
    $region16: #{tpu_custom_call.1} parent=1 // pred_region
      _
    $region17: #{tpu_custom_call.1} parent=1 // pred_fallthru
      _
    // Predicated region
    $region18: #{tpu_custom_call.1} parent=1 // pred_check
      _
    $region19: #{tpu_custom_call.1} parent=1 // pred_check_branch
      %57 = sbr.rel (0) target = $region21
    $region20: #{tpu_custom_call.1} parent=1 // pred_region
      _
    $region21: #{tpu_custom_call.1} parent=1 // pred_fallthru
      _
    // Predicated region
    $region22: #{tpu_custom_call.1} parent=1 // pred_check
      _
    $region23: #{tpu_custom_call.1} parent=1 // pred_check_branch
      %59 = sbr.rel (0) target = $region25
    $region24: #{tpu_custom_call.1} parent=1 // pred_region
      %s61 = ssub.s32 8192, 8192
      %62 = vsyncadd [#allocation9], %s61
      %s63 = sshll.u32 [#allocation8], 4
      %s64 = int_to_ptr.vmem [resolvable:$true] %s63
      %69 = dma.hbm_to_vmem [thread:$0]  %s5, 8192, %s64, [#allocation9], 256, 256, 16
    $region25: #{tpu_custom_call.1} parent=1 // pred_fallthru
      _
    // Predicated region
    $region26: #{tpu_custom_call.1} parent=1 // pred_check
      _
    $region27: #{tpu_custom_call.1} parent=1 // pred_check_branch
      %71 = sbr.rel (0) target = $region29
    $region28: #{tpu_custom_call.1} parent=1 // pred_region
      _
    $region29: #{tpu_custom_call.1} parent=1 // pred_fallthru
      _
    // Predicated region
    $region30: #{tpu_custom_call.1} parent=1 // pred_check
      _
    $region31: #{tpu_custom_call.1} parent=1 // pred_check_branch
      %73 = sbr.rel (0) target = $region33
    $region32: #{tpu_custom_call.1} parent=1 // pred_region
      %s75 = ssub.s32 2048, 2048
      %76 = vsyncadd [#allocation9], %s75
      %s77 = sshll.u32 [#allocation10], 4
      %s78 = int_to_ptr.vmem [resolvable:$true] %s77
      %83 = dma.hbm_to_vmem [thread:$0]  %s7, 2048, %s78, [#allocation9], 64, 64, 4
    $region33: #{tpu_custom_call.1} parent=1 // pred_fallthru
      _
    // Predicated region
    $region34: #{tpu_custom_call.1} parent=1 // pred_check
      _
    $region35: #{tpu_custom_call.1} parent=1 // pred_check_branch
      %85 = sbr.rel (0) target = $region37
    $region36: #{tpu_custom_call.1} parent=1 // pred_region
      _
    $region37: #{tpu_custom_call.1} parent=1 // pred_fallthru
      _
    // Predicated region
    $region38: #{tpu_custom_call.1} parent=1 // pred_check
      _
    $region39: #{tpu_custom_call.1} parent=1 // pred_check_branch
      %87 = sbr.rel (0) target = $region41
    $region40: #{tpu_custom_call.1} parent=1 // pred_region
      %88 = dma.done [#allocation3], 128
    $region41: #{tpu_custom_call.1} parent=1 // pred_fallthru
      _
    // Predicated region
    $region42: #{tpu_custom_call.1} parent=1 // pred_check
      _
    $region43: #{tpu_custom_call.1} parent=1 // pred_check_branch
      %90 = sbr.rel (0) target = $region45
    $region44: #{tpu_custom_call.1} parent=1 // pred_region
      %91 = dma.done [#allocation6], 512
    $region45: #{tpu_custom_call.1} parent=1 // pred_fallthru
      _
    // Predicated region
    $region46: #{tpu_custom_call.1} parent=1 // pred_check
      _
    $region47: #{tpu_custom_call.1} parent=1 // pred_check_branch
      %93 = sbr.rel (0) target = $region49
    $region48: #{tpu_custom_call.1} parent=1 // pred_region
      %94 = dma.done [#allocation6], 768
    $region49: #{tpu_custom_call.1} parent=1 // pred_fallthru
      _
    // Predicated region
    $region50: #{tpu_custom_call.1} parent=1 // pred_check
      _
    $region51: #{tpu_custom_call.1} parent=1 // pred_check_branch
      %96 = sbr.rel (0) target = $region53
    $region52: #{tpu_custom_call.1} parent=1 // pred_region
      %97 = dma.done [#allocation9], 8192
    $region53: #{tpu_custom_call.1} parent=1 // pred_fallthru
      _
    // Predicated region
    $region54: #{tpu_custom_call.1} parent=1 // pred_check
      _
    $region55: #{tpu_custom_call.1} parent=1 // pred_check_branch
      %99 = sbr.rel (0) target = $region57
    $region56: #{tpu_custom_call.1} parent=1 // pred_region
      %100 = dma.done [#allocation9], 2048
    $region57: #{tpu_custom_call.1} parent=1 // pred_fallthru
      _
    %v102 = vld [vmem:[#allocation2] sm:$0xf]
    %v103 = vld [vmem:[#allocation2 + $0x4] sm:$0xf]
    %v104 = vld [vmem:[#allocation5] sm:$0xf]
    %v105 = vld [vmem:[#allocation5 + $0x4] sm:$0xf]
    %v106 = vld [vmem:[#allocation5 + $0x8] sm:$0xf]
    %v107 = vld [vmem:[#allocation5 + $0xc] sm:$0xf]
    %v110 = vunpack.c.l.b16 %v102
    %v111 = vunpack.c.l.b16 %v103
    %v112 = vpack.c.b16 %v111, %v110
    %v117 = vunpack.c.l.b16 %v104
    %v118 = vunpack.c.l.b16 %v105
    %v119 = vunpack.c.l.b16 %v106
    %v120 = vunpack.c.l.b16 %v107
    %v121 = vpack.c.b16 %v118, %v117
    %v122 = vpack.c.b16 %v120, %v119
    %vm125 = vcmask 261120
    %v127 = vsel %vm125, %v112, 0
    %129 = vmatprep.subr.bf16.mxu0 0
    %130 = vmatpush1.bf16.msra.mxu0 %v121
    %131 = vmatprep.subr.bf16.mxu0 0
    %132 = vmatpush1.bf16.msra.mxu0 %v122
    %133 = vmatprep.subr.bf16.mxu0 0
    %134 = vmatpush1.bf16.msra.mxu0 0
    %135 = vmatprep.subr.bf16.mxu0 0
    %136 = vmatpush1.bf16.msra.mxu0 0
    %137 = vmatprep.subr.bf16.mxu0 0
    %138 = vmatpush1.bf16.msra.mxu0 0
    %139 = vmatprep.subr.bf16.mxu0 0
    %140 = vmatpush1.bf16.msra.mxu0 0
    %141 = vmatprep.subr.bf16.mxu0 0
    %142 = vmatpush1.bf16.msra.mxu0 0
    %143 = vmatprep.subr.bf16.mxu0 0
    %144 = vmatpush1.bf16.msra.mxu0 0
    %145 = vmatprep.subr.bf16.mxu0 0
    %146 = vmatpush1.bf16.msra.mxu0 0
    %147 = vmatprep.subr.bf16.mxu0 0
    %148 = vmatpush1.bf16.msra.mxu0 0
    %149 = vmatprep.subr.bf16.mxu0 0
    %150 = vmatpush1.bf16.msra.mxu0 0
    %151 = vmatprep.subr.bf16.mxu0 0
    %152 = vmatpush1.bf16.msra.mxu0 0
    %153 = vmatprep.subr.bf16.mxu0 0
    %154 = vmatpush1.bf16.msra.mxu0 0
    %155 = vmatprep.subr.bf16.mxu0 0
    %156 = vmatpush1.bf16.msra.mxu0 0
    %157 = vmatprep.subr.bf16.mxu0 0
    %158 = vmatpush1.bf16.msra.mxu0 0
    %159 = vmatprep.subr.bf16.mxu0 0
    %160 = vmatpush1.bf16.msra.mxu0 0
    %161 = vmatprep.mubr.bf16.mxu0 0
    %162 = vmatmul.mubr.bf16.gmra.mrb[0].mxu0 %v127
    %v163 = vpop.f32.mrb[0].mxu0
    %v164 = vadd.f32 0.0, %v163
    %v165 = vpop.f32.mrb[0].mxu0
    %v166 = vpop.f32.mrb[0].mxu0
    %v167 = vadd.f32 0.0, %v166
    %v168 = vpop.f32.mrb[0].mxu0
    %169 = vdwg.mxu0
    %s170 = scalar_lea.vmem [#allocation5], 16
    %v171 = vld [vmem:[%s170] sm:$0xf]
    %v172 = vld [vmem:[%s170 + $0x4] sm:$0xf]
    %v173 = vld [vmem:[%s170 + $0x8] sm:$0xf]
    %v174 = vld [vmem:[%s170 + $0xc] sm:$0xf]
    %v179 = vunpack.c.l.b16 %v171
    %v180 = vunpack.c.l.b16 %v172
    %v181 = vunpack.c.l.b16 %v173
    %v182 = vunpack.c.l.b16 %v174
    %v183 = vpack.c.b16 %v180, %v179
    %v184 = vpack.c.b16 %v182, %v181
    %187 = vmatprep.subr.bf16.mxu0 0
    %188 = vmatpush1.bf16.msra.mxu0 %v183
    %189 = vmatprep.subr.bf16.mxu0 0
    %190 = vmatpush1.bf16.msra.mxu0 %v184
    %191 = vmatprep.subr.bf16.mxu0 0
    %192 = vmatpush1.bf16.msra.mxu0 0
    %193 = vmatprep.subr.bf16.mxu0 0
    %194 = vmatpush1.bf16.msra.mxu0 0
    %195 = vmatprep.subr.bf16.mxu0 0
    %196 = vmatpush1.bf16.msra.mxu0 0
    %197 = vmatprep.subr.bf16.mxu0 0
    %198 = vmatpush1.bf16.msra.mxu0 0
    %199 = vmatprep.subr.bf16.mxu0 0
    %200 = vmatpush1.bf16.msra.mxu0 0
    %201 = vmatprep.subr.bf16.mxu0 0
    %202 = vmatpush1.bf16.msra.mxu0 0
    %203 = vmatprep.subr.bf16.mxu0 0
    %204 = vmatpush1.bf16.msra.mxu0 0
    %205 = vmatprep.subr.bf16.mxu0 0
    %206 = vmatpush1.bf16.msra.mxu0 0
    %207 = vmatprep.subr.bf16.mxu0 0
    %208 = vmatpush1.bf16.msra.mxu0 0
    %209 = vmatprep.subr.bf16.mxu0 0
    %210 = vmatpush1.bf16.msra.mxu0 0
    %211 = vmatprep.subr.bf16.mxu0 0
    %212 = vmatpush1.bf16.msra.mxu0 0
    %213 = vmatprep.subr.bf16.mxu0 0
    %214 = vmatpush1.bf16.msra.mxu0 0
    %215 = vmatprep.subr.bf16.mxu0 0
    %216 = vmatpush1.bf16.msra.mxu0 0
    %217 = vmatprep.subr.bf16.mxu0 0
    %218 = vmatpush1.bf16.msra.mxu0 0
    %219 = vmatprep.mubr.bf16.mxu0 0
    %220 = vmatmul.mubr.bf16.gmra.mrb[0].mxu0 %v127
    %v221 = vpop.f32.mrb[0].mxu0
    %v222 = vadd.f32 0.0, %v221
    %v223 = vpop.f32.mrb[0].mxu0
    %v224 = vpop.f32.mrb[0].mxu0
    %v225 = vadd.f32 0.0, %v224
    %v226 = vpop.f32.mrb[0].mxu0
    %227 = vdwg.mxu0
    %v230 = vrot.slane %v222, 1
    %v231 = vrot.slane %v225, 1
    %v234 = vadd.f32 %v164, %v230
    %v235 = vadd.f32 %v167, %v231
    %vm236 = vcmask 1046528
    %v237 = vsel %vm236, %v234, -inf
    %v238 = vrot.slane %v237, 4
    %v239 = vmax.f32 %v237, %v238
    %v240 = vrot.slane %v239, 2
    %v241 = vmax.f32 %v239, %v240
    %v242 = vrot.slane %v241, 1
    %v243 = vmax.f32 %v241, %v242
    %v244 = vsel %vm236, %v235, -inf
    %v245 = vrot.slane %v244, 4
    %v246 = vmax.f32 %v244, %v245
    %v247 = vrot.slane %v246, 2
    %v248 = vmax.f32 %v246, %v247
    %v249 = vrot.slane %v248, 1
    %v250 = vmax.f32 %v248, %v249
    %v251 = vld [vmem:[%s3] sm:$0x1]
    %v253 = vlaneseq
    %v254 = vshrl.u32 %v253, 7
    %v255 = vsub.s32 0, %v254
    %v256 = vrot.slane %v251, %v255
    %v258 = vadd.f32 %v243, %v256
    %v259 = vadd.f32 %v250, %v256
    %v260 = vmax.f32 %v258, 0.0
    %v261 = vmax.f32 %v259, 0.0
    %v262 = vld [vmem:[#allocation7] sm:$0xf]
    %v263 = vld [vmem:[#allocation7 + $0x4] sm:$0xf]
    %v264 = vld [vmem:[#allocation7 + $0x8] sm:$0xf]
    %v265 = vld [vmem:[#allocation7 + $0xc] sm:$0xf]
    %v270 = vunpack.c.l.b16 %v262
    %v271 = vunpack.c.l.b16 %v263
    %v272 = vunpack.c.l.b16 %v264
    %v273 = vunpack.c.l.b16 %v265
    %v274 = vpack.c.b16 %v271, %v270
    %v275 = vpack.c.b16 %v273, %v272
    %278 = vmatprep.subr.bf16.mxu0 0
    %279 = vmatpush1.bf16.msra.mxu0 %v274
    %280 = vmatprep.subr.bf16.mxu0 0
    %281 = vmatpush1.bf16.msra.mxu0 %v275
    %282 = vmatprep.subr.bf16.mxu0 0
    %283 = vmatpush1.bf16.msra.mxu0 0
    %284 = vmatprep.subr.bf16.mxu0 0
    %285 = vmatpush1.bf16.msra.mxu0 0
    %286 = vmatprep.subr.bf16.mxu0 0
    %287 = vmatpush1.bf16.msra.mxu0 0
    %288 = vmatprep.subr.bf16.mxu0 0
    %289 = vmatpush1.bf16.msra.mxu0 0
    %290 = vmatprep.subr.bf16.mxu0 0
    %291 = vmatpush1.bf16.msra.mxu0 0
    %292 = vmatprep.subr.bf16.mxu0 0
    %293 = vmatpush1.bf16.msra.mxu0 0
    %294 = vmatprep.subr.bf16.mxu0 0
    %295 = vmatpush1.bf16.msra.mxu0 0
    %296 = vmatprep.subr.bf16.mxu0 0
    %297 = vmatpush1.bf16.msra.mxu0 0
    %298 = vmatprep.subr.bf16.mxu0 0
    %299 = vmatpush1.bf16.msra.mxu0 0
    %300 = vmatprep.subr.bf16.mxu0 0
    %301 = vmatpush1.bf16.msra.mxu0 0
    %302 = vmatprep.subr.bf16.mxu0 0
    %303 = vmatpush1.bf16.msra.mxu0 0
    %304 = vmatprep.subr.bf16.mxu0 0
    %305 = vmatpush1.bf16.msra.mxu0 0
    %306 = vmatprep.subr.bf16.mxu0 0
    %307 = vmatpush1.bf16.msra.mxu0 0
    %308 = vmatprep.subr.bf16.mxu0 0
    %309 = vmatpush1.bf16.msra.mxu0 0
    %310 = vmatprep.mubr.bf16.mxu0 0
    %311 = vmatmul.mubr.bf16.gmra.mrb[0].mxu0 %v127
    %v312 = vpop.f32.mrb[0].mxu0
    %v313 = vadd.f32 0.0, %v312
    %v314 = vpop.f32.mrb[0].mxu0
    %v315 = vpop.f32.mrb[0].mxu0
    %v316 = vadd.f32 0.0, %v315
    %v317 = vpop.f32.mrb[0].mxu0
    %318 = vdwg.mxu0
    %s319 = scalar_lea.vmem [#allocation7], 16
    %v320 = vld [vmem:[%s319] sm:$0xf]
    %v321 = vld [vmem:[%s319 + $0x4] sm:$0xf]
    %v322 = vld [vmem:[%s319 + $0x8] sm:$0xf]
    %v323 = vld [vmem:[%s319 + $0xc] sm:$0xf]
    %v328 = vunpack.c.l.b16 %v320
    %v329 = vunpack.c.l.b16 %v321
    %v330 = vunpack.c.l.b16 %v322
    %v331 = vunpack.c.l.b16 %v323
    %v332 = vpack.c.b16 %v329, %v328
    %v333 = vpack.c.b16 %v331, %v330
    %336 = vmatprep.subr.bf16.mxu0 0
    %337 = vmatpush1.bf16.msra.mxu0 %v332
    %338 = vmatprep.subr.bf16.mxu0 0
    %339 = vmatpush1.bf16.msra.mxu0 %v333
    %340 = vmatprep.subr.bf16.mxu0 0
    %341 = vmatpush1.bf16.msra.mxu0 0
    %342 = vmatprep.subr.bf16.mxu0 0
    %343 = vmatpush1.bf16.msra.mxu0 0
    %344 = vmatprep.subr.bf16.mxu0 0
    %345 = vmatpush1.bf16.msra.mxu0 0
    %346 = vmatprep.subr.bf16.mxu0 0
    %347 = vmatpush1.bf16.msra.mxu0 0
    %348 = vmatprep.subr.bf16.mxu0 0
    %349 = vmatpush1.bf16.msra.mxu0 0
    %350 = vmatprep.subr.bf16.mxu0 0
    %351 = vmatpush1.bf16.msra.mxu0 0
    %352 = vmatprep.subr.bf16.mxu0 0
    %353 = vmatpush1.bf16.msra.mxu0 0
    %354 = vmatprep.subr.bf16.mxu0 0
    %355 = vmatpush1.bf16.msra.mxu0 0
    %356 = vmatprep.subr.bf16.mxu0 0
    %357 = vmatpush1.bf16.msra.mxu0 0
    %358 = vmatprep.subr.bf16.mxu0 0
    %359 = vmatpush1.bf16.msra.mxu0 0
    %360 = vmatprep.subr.bf16.mxu0 0
    %361 = vmatpush1.bf16.msra.mxu0 0
    %362 = vmatprep.subr.bf16.mxu0 0
    %363 = vmatpush1.bf16.msra.mxu0 0
    %364 = vmatprep.subr.bf16.mxu0 0
    %365 = vmatpush1.bf16.msra.mxu0 0
    %366 = vmatprep.subr.bf16.mxu0 0
    %367 = vmatpush1.bf16.msra.mxu0 0
    %368 = vmatprep.mubr.bf16.mxu0 0
    %369 = vmatmul.mubr.bf16.gmra.mrb[0].mxu0 %v127
    %v370 = vpop.f32.mrb[0].mxu0
    %v371 = vadd.f32 0.0, %v370
    %v372 = vpop.f32.mrb[0].mxu0
    %v373 = vpop.f32.mrb[0].mxu0
    %v374 = vadd.f32 0.0, %v373
    %v375 = vpop.f32.mrb[0].mxu0
    %376 = vdwg.mxu0
    %v379 = vrot.slane %v371, 1
    %v380 = vrot.slane %v374, 1
    %v383 = vadd.f32 %v313, %v379
    %v384 = vadd.f32 %v316, %v380
    %s385 = scalar_lea.vmem [#allocation7], 32
    %v386 = vld [vmem:[%s385] sm:$0xf]
    %v387 = vld [vmem:[%s385 + $0x4] sm:$0xf]
    %v388 = vld [vmem:[%s385 + $0x8] sm:$0xf]
    %v389 = vld [vmem:[%s385 + $0xc] sm:$0xf]
    %v394 = vunpack.c.l.b16 %v386
    %v395 = vunpack.c.l.b16 %v387
    %v396 = vunpack.c.l.b16 %v388
    %v397 = vunpack.c.l.b16 %v389
    %v398 = vpack.c.b16 %v395, %v394
    %v399 = vpack.c.b16 %v397, %v396
    %402 = vmatprep.subr.bf16.mxu0 0
    %403 = vmatpush1.bf16.msra.mxu0 %v398
    %404 = vmatprep.subr.bf16.mxu0 0
    %405 = vmatpush1.bf16.msra.mxu0 %v399
    %406 = vmatprep.subr.bf16.mxu0 0
    %407 = vmatpush1.bf16.msra.mxu0 0
    %408 = vmatprep.subr.bf16.mxu0 0
    %409 = vmatpush1.bf16.msra.mxu0 0
    %410 = vmatprep.subr.bf16.mxu0 0
    %411 = vmatpush1.bf16.msra.mxu0 0
    %412 = vmatprep.subr.bf16.mxu0 0
    %413 = vmatpush1.bf16.msra.mxu0 0
    %414 = vmatprep.subr.bf16.mxu0 0
    %415 = vmatpush1.bf16.msra.mxu0 0
    %416 = vmatprep.subr.bf16.mxu0 0
    %417 = vmatpush1.bf16.msra.mxu0 0
    %418 = vmatprep.subr.bf16.mxu0 0
    %419 = vmatpush1.bf16.msra.mxu0 0
    %420 = vmatprep.subr.bf16.mxu0 0
    %421 = vmatpush1.bf16.msra.mxu0 0
    %422 = vmatprep.subr.bf16.mxu0 0
    %423 = vmatpush1.bf16.msra.mxu0 0
    %424 = vmatprep.subr.bf16.mxu0 0
    %425 = vmatpush1.bf16.msra.mxu0 0
    %426 = vmatprep.subr.bf16.mxu0 0
    %427 = vmatpush1.bf16.msra.mxu0 0
    %428 = vmatprep.subr.bf16.mxu0 0
    %429 = vmatpush1.bf16.msra.mxu0 0
    %430 = vmatprep.subr.bf16.mxu0 0
    %431 = vmatpush1.bf16.msra.mxu0 0
    %432 = vmatprep.subr.bf16.mxu0 0
    %433 = vmatpush1.bf16.msra.mxu0 0
    %434 = vmatprep.mubr.bf16.mxu0 0
    %435 = vmatmul.mubr.bf16.gmra.mrb[0].mxu0 %v127
    %v436 = vpop.f32.mrb[0].mxu0
    %v437 = vadd.f32 0.0, %v436
    %v438 = vpop.f32.mrb[0].mxu0
    %v439 = vpop.f32.mrb[0].mxu0
    %v440 = vadd.f32 0.0, %v439
    %v441 = vpop.f32.mrb[0].mxu0
    %442 = vdwg.mxu0
    %v445 = vrot.slane %v437, 2
    %v446 = vrot.slane %v440, 2
    %v449 = vadd.f32 %v383, %v445
    %v450 = vadd.f32 %v384, %v446
    %vm451 = vcmask 1045504
    %v452 = vsel %vm451, %v449, -inf
    %v453 = vrot.slane %v452, 4
    %v454 = vmax.f32 %v452, %v453
    %v455 = vrot.slane %v454, 2
    %v456 = vmax.f32 %v454, %v455
    %v457 = vrot.slane %v456, 1
    %v458 = vmax.f32 %v456, %v457
    %v459 = vsel %vm451, %v450, -inf
    %v460 = vrot.slane %v459, 4
    %v461 = vmax.f32 %v459, %v460
    %v462 = vrot.slane %v461, 2
    %v463 = vmax.f32 %v461, %v462
    %v464 = vrot.slane %v463, 1
    %v465 = vmax.f32 %v463, %v464
    %v466 = vld [vmem:[%s4] sm:$0x1]
    %v468 = vlaneseq
    %v469 = vshrl.u32 %v468, 7
    %v470 = vsub.s32 0, %v469
    %v471 = vrot.slane %v466, %v470
    %v473 = vadd.f32 %v458, %v471
    %v474 = vadd.f32 %v465, %v471
    %v475 = vmax.f32 %v473, 0.0
    %v476 = vmax.f32 %v474, 0.0
    %v479 = vrot.slane %v261, 7
    %vm480 = vcmask 1041409
    %v481 = vsel %vm480, %v479, %v260
    %v485 = vrot.slane %v476, 7
    %v486 = vsel %vm480, %v485, %v475
    %v488 = vld [vmem:[#allocation10] sm:$0xf]
    %v489 = vld [vmem:[#allocation10 + $0x4] sm:$0xf]
    %v490 = vld [vmem:[#allocation10 + $0x8] sm:$0xf]
    %v491 = vld [vmem:[#allocation10 + $0xc] sm:$0xf]
    %v492 = vld [vmem:[#allocation10 + $0x10] sm:$0xf]
    %v493 = vld [vmem:[#allocation10 + $0x14] sm:$0xf]
    %v494 = vld [vmem:[#allocation10 + $0x18] sm:$0xf]
    %v495 = vld [vmem:[#allocation10 + $0x1c] sm:$0xf]
    %v496 = vld [vmem:[#allocation10 + $0x20] sm:$0xf]
    %v497 = vld [vmem:[#allocation10 + $0x24] sm:$0xf]
    %v498 = vld [vmem:[#allocation10 + $0x28] sm:$0xf]
    %v499 = vld [vmem:[#allocation10 + $0x2c] sm:$0xf]
    %v500 = vld [vmem:[#allocation10 + $0x30] sm:$0xf]
    %v501 = vld [vmem:[#allocation10 + $0x34] sm:$0xf]
    %v502 = vld [vmem:[#allocation10 + $0x38] sm:$0xf]
    %v503 = vld [vmem:[#allocation10 + $0x3c] sm:$0xf]
    %v504 = vld [vmem:[#allocation10 + $0x40] sm:$0xf]
    %v505 = vld [vmem:[#allocation10 + $0x44] sm:$0xf]
    %v506 = vld [vmem:[#allocation10 + $0x48] sm:$0xf]
    %v507 = vld [vmem:[#allocation10 + $0x4c] sm:$0xf]
    %v508 = vld [vmem:[#allocation10 + $0x50] sm:$0xf]
    %v509 = vld [vmem:[#allocation10 + $0x54] sm:$0xf]
    %v510 = vld [vmem:[#allocation10 + $0x58] sm:$0xf]
    %v511 = vld [vmem:[#allocation10 + $0x5c] sm:$0xf]
    %v512 = vld [vmem:[#allocation10 + $0x60] sm:$0xf]
    %v513 = vld [vmem:[#allocation10 + $0x64] sm:$0xf]
    %v514 = vld [vmem:[#allocation10 + $0x68] sm:$0xf]
    %v515 = vld [vmem:[#allocation10 + $0x6c] sm:$0xf]
    %v516 = vld [vmem:[#allocation10 + $0x70] sm:$0xf]
    %v517 = vld [vmem:[#allocation10 + $0x74] sm:$0xf]
    %v518 = vld [vmem:[#allocation10 + $0x78] sm:$0xf]
    %v519 = vld [vmem:[#allocation10 + $0x7c] sm:$0xf]
    %v520 = vld [vmem:[%s8] sm:$0x1]
    %v521 = vld [vmem:[#allocation8] sm:$0xff]
    %v522 = vld [vmem:[#allocation8 + $0x8] sm:$0xff]
    %v523 = vld [vmem:[#allocation8 + $0x10] sm:$0xff]
    %v524 = vld [vmem:[#allocation8 + $0x18] sm:$0xff]
    %v525 = vld [vmem:[#allocation8 + $0x20] sm:$0xff]
    %v526 = vld [vmem:[#allocation8 + $0x28] sm:$0xff]
    %v527 = vld [vmem:[#allocation8 + $0x30] sm:$0xff]
    %v528 = vld [vmem:[#allocation8 + $0x38] sm:$0xff]
    %v529 = vld [vmem:[#allocation8 + $0x40] sm:$0xff]
    %v530 = vld [vmem:[#allocation8 + $0x48] sm:$0xff]
    %v531 = vld [vmem:[#allocation8 + $0x50] sm:$0xff]
    %v532 = vld [vmem:[#allocation8 + $0x58] sm:$0xff]
    %v533 = vld [vmem:[#allocation8 + $0x60] sm:$0xff]
    %v534 = vld [vmem:[#allocation8 + $0x68] sm:$0xff]
    %v535 = vld [vmem:[#allocation8 + $0x70] sm:$0xff]
    %v536 = vld [vmem:[#allocation8 + $0x78] sm:$0xff]
    %v537 = vld [vmem:[#allocation8 + $0x80] sm:$0xff]
    %v538 = vld [vmem:[#allocation8 + $0x88] sm:$0xff]
    %v539 = vld [vmem:[#allocation8 + $0x90] sm:$0xff]
    %v540 = vld [vmem:[#allocation8 + $0x98] sm:$0xff]
    %v541 = vld [vmem:[#allocation8 + $0xa0] sm:$0xff]
    %v542 = vld [vmem:[#allocation8 + $0xa8] sm:$0xff]
    %v543 = vld [vmem:[#allocation8 + $0xb0] sm:$0xff]
    %v544 = vld [vmem:[#allocation8 + $0xb8] sm:$0xff]
    %v545 = vld [vmem:[#allocation8 + $0xc0] sm:$0xff]
    %v546 = vld [vmem:[#allocation8 + $0xc8] sm:$0xff]
    %v547 = vld [vmem:[#allocation8 + $0xd0] sm:$0xff]
    %v548 = vld [vmem:[#allocation8 + $0xd8] sm:$0xff]
    %v549 = vld [vmem:[#allocation8 + $0xe0] sm:$0xff]
    %v550 = vld [vmem:[#allocation8 + $0xe8] sm:$0xff]
    %v551 = vld [vmem:[#allocation8 + $0xf0] sm:$0xff]
    %v552 = vld [vmem:[#allocation8 + $0xf8] sm:$0xff]
    %v553 = vld [vmem:[#allocation8 + $0x100] sm:$0xff]
    %v554 = vld [vmem:[#allocation8 + $0x108] sm:$0xff]
    %v555 = vld [vmem:[#allocation8 + $0x110] sm:$0xff]
    %v556 = vld [vmem:[#allocation8 + $0x118] sm:$0xff]
    %v557 = vld [vmem:[#allocation8 + $0x120] sm:$0xff]
    %v558 = vld [vmem:[#allocation8 + $0x128] sm:$0xff]
    %v559 = vld [vmem:[#allocation8 + $0x130] sm:$0xff]
    %v560 = vld [vmem:[#allocation8 + $0x138] sm:$0xff]
    %v561 = vld [vmem:[#allocation8 + $0x140] sm:$0xff]
    %v562 = vld [vmem:[#allocation8 + $0x148] sm:$0xff]
    %v563 = vld [vmem:[#allocation8 + $0x150] sm:$0xff]
    %v564 = vld [vmem:[#allocation8 + $0x158] sm:$0xff]
    %v565 = vld [vmem:[#allocation8 + $0x160] sm:$0xff]
    %v566 = vld [vmem:[#allocation8 + $0x168] sm:$0xff]
    %v567 = vld [vmem:[#allocation8 + $0x170] sm:$0xff]
    %v568 = vld [vmem:[#allocation8 + $0x178] sm:$0xff]
    %v569 = vld [vmem:[#allocation8 + $0x180] sm:$0xff]
    %v570 = vld [vmem:[#allocation8 + $0x188] sm:$0xff]
    %v571 = vld [vmem:[#allocation8 + $0x190] sm:$0xff]
    %v572 = vld [vmem:[#allocation8 + $0x198] sm:$0xff]
    %v573 = vld [vmem:[#allocation8 + $0x1a0] sm:$0xff]
    %v574 = vld [vmem:[#allocation8 + $0x1a8] sm:$0xff]
    %v575 = vld [vmem:[#allocation8 + $0x1b0] sm:$0xff]
    %v576 = vld [vmem:[#allocation8 + $0x1b8] sm:$0xff]
    %v577 = vld [vmem:[#allocation8 + $0x1c0] sm:$0xff]
    %v578 = vld [vmem:[#allocation8 + $0x1c8] sm:$0xff]
    %v579 = vld [vmem:[#allocation8 + $0x1d0] sm:$0xff]
    %v580 = vld [vmem:[#allocation8 + $0x1d8] sm:$0xff]
    %v581 = vld [vmem:[#allocation8 + $0x1e0] sm:$0xff]
    %v582 = vld [vmem:[#allocation8 + $0x1e8] sm:$0xff]
    %v583 = vld [vmem:[#allocation8 + $0x1f0] sm:$0xff]
    %v584 = vld [vmem:[#allocation8 + $0x1f8] sm:$0xff]
    %v585 = vld [vmem:[%s6] sm:$0xf]
    %v586 = vpack.c.bf16 %v481, %v481
    %v587 = vpack.c.bf16 %v486, %v486
    %v589 = vlaneseq
    %v590 = vshrl.u32 %v589, 7
    %v591 = vsub.s32 0, %v590
    %v592 = vrot.slane %v585, %v591
    %v593 = vlaneseq
    %v594 = vshrl.u32 %v593, 7
    %v595 = vsub.s32 1, %v594
    %v596 = vrot.slane %v585, %v595
    %v597 = vlaneseq
    %v598 = vshrl.u32 %v597, 7
    %v599 = vsub.s32 2, %v598
    %v600 = vrot.slane %v585, %v599
    %v601 = vlaneseq
    %v602 = vshrl.u32 %v601, 7
    %v603 = vsub.s32 3, %v602
    %v604 = vrot.slane %v585, %v603
    %v673 = vunpack.c.l.b16 %v521
    %v674 = vunpack.c.h.b16 %v521
    %v675 = vunpack.c.l.b16 %v522
    %v676 = vunpack.c.h.b16 %v522
    %v677 = vunpack.c.l.b16 %v523
    %v678 = vunpack.c.h.b16 %v523
    %v679 = vunpack.c.l.b16 %v524
    %v680 = vunpack.c.h.b16 %v524
    %v681 = vunpack.c.l.b16 %v525
    %v682 = vunpack.c.h.b16 %v525
    %v683 = vunpack.c.l.b16 %v526
    %v684 = vunpack.c.h.b16 %v526
    %v685 = vunpack.c.l.b16 %v527
    %v686 = vunpack.c.h.b16 %v527
    %v687 = vunpack.c.l.b16 %v528
    %v688 = vunpack.c.h.b16 %v528
    %v689 = vunpack.c.l.b16 %v529
    %v690 = vunpack.c.h.b16 %v529
    %v691 = vunpack.c.l.b16 %v530
    %v692 = vunpack.c.h.b16 %v530
    %v693 = vunpack.c.l.b16 %v531
    %v694 = vunpack.c.h.b16 %v531
    %v695 = vunpack.c.l.b16 %v532
    %v696 = vunpack.c.h.b16 %v532
    %v697 = vunpack.c.l.b16 %v533
    %v698 = vunpack.c.h.b16 %v533
    %v699 = vunpack.c.l.b16 %v534
    %v700 = vunpack.c.h.b16 %v534
    %v701 = vunpack.c.l.b16 %v535
    %v702 = vunpack.c.h.b16 %v535
    %v703 = vunpack.c.l.b16 %v536
    %v704 = vunpack.c.h.b16 %v536
    %v705 = vunpack.c.l.b16 %v537
    %v706 = vunpack.c.h.b16 %v537
    %v707 = vunpack.c.l.b16 %v538
    %v708 = vunpack.c.h.b16 %v538
    %v709 = vunpack.c.l.b16 %v539
    %v710 = vunpack.c.h.b16 %v539
    %v711 = vunpack.c.l.b16 %v540
    %v712 = vunpack.c.h.b16 %v540
    %v713 = vunpack.c.l.b16 %v541
    %v714 = vunpack.c.h.b16 %v541
    %v715 = vunpack.c.l.b16 %v542
    %v716 = vunpack.c.h.b16 %v542
    %v717 = vunpack.c.l.b16 %v543
    %v718 = vunpack.c.h.b16 %v543
    %v719 = vunpack.c.l.b16 %v544
    %v720 = vunpack.c.h.b16 %v544
    %v721 = vunpack.c.l.b16 %v545
    %v722 = vunpack.c.h.b16 %v545
    %v723 = vunpack.c.l.b16 %v546
    %v724 = vunpack.c.h.b16 %v546
    %v725 = vunpack.c.l.b16 %v547
    %v726 = vunpack.c.h.b16 %v547
    %v727 = vunpack.c.l.b16 %v548
    %v728 = vunpack.c.h.b16 %v548
    %v729 = vunpack.c.l.b16 %v549
    %v730 = vunpack.c.h.b16 %v549
    %v731 = vunpack.c.l.b16 %v550
    %v732 = vunpack.c.h.b16 %v550
    %v733 = vunpack.c.l.b16 %v551
    %v734 = vunpack.c.h.b16 %v551
    %v735 = vunpack.c.l.b16 %v552
    %v736 = vunpack.c.h.b16 %v552
    %v737 = vunpack.c.l.b16 %v553
    %v738 = vunpack.c.h.b16 %v553
    %v739 = vunpack.c.l.b16 %v554
    %v740 = vunpack.c.h.b16 %v554
    %v741 = vunpack.c.l.b16 %v555
    %v742 = vunpack.c.h.b16 %v555
    %v743 = vunpack.c.l.b16 %v556
    %v744 = vunpack.c.h.b16 %v556
    %v745 = vunpack.c.l.b16 %v557
    %v746 = vunpack.c.h.b16 %v557
    %v747 = vunpack.c.l.b16 %v558
    %v748 = vunpack.c.h.b16 %v558
    %v749 = vunpack.c.l.b16 %v559
    %v750 = vunpack.c.h.b16 %v559
    %v751 = vunpack.c.l.b16 %v560
    %v752 = vunpack.c.h.b16 %v560
    %v753 = vunpack.c.l.b16 %v561
    %v754 = vunpack.c.h.b16 %v561
    %v755 = vunpack.c.l.b16 %v562
    %v756 = vunpack.c.h.b16 %v562
    %v757 = vunpack.c.l.b16 %v563
    %v758 = vunpack.c.h.b16 %v563
    %v759 = vunpack.c.l.b16 %v564
    %v760 = vunpack.c.h.b16 %v564
    %v761 = vunpack.c.l.b16 %v565
    %v762 = vunpack.c.h.b16 %v565
    %v763 = vunpack.c.l.b16 %v566
    %v764 = vunpack.c.h.b16 %v566
    %v765 = vunpack.c.l.b16 %v567
    %v766 = vunpack.c.h.b16 %v567
    %v767 = vunpack.c.l.b16 %v568
    %v768 = vunpack.c.h.b16 %v568
    %v769 = vunpack.c.l.b16 %v569
    %v770 = vunpack.c.h.b16 %v569
    %v771 = vunpack.c.l.b16 %v570
    %v772 = vunpack.c.h.b16 %v570
    %v773 = vunpack.c.l.b16 %v571
    %v774 = vunpack.c.h.b16 %v571
    %v775 = vunpack.c.l.b16 %v572
    %v776 = vunpack.c.h.b16 %v572
    %v777 = vunpack.c.l.b16 %v573
    %v778 = vunpack.c.h.b16 %v573
    %v779 = vunpack.c.l.b16 %v574
    %v780 = vunpack.c.h.b16 %v574
    %v781 = vunpack.c.l.b16 %v575
    %v782 = vunpack.c.h.b16 %v575
    %v783 = vunpack.c.l.b16 %v576
    %v784 = vunpack.c.h.b16 %v576
    %v785 = vunpack.c.l.b16 %v577
    %v786 = vunpack.c.h.b16 %v577
    %v787 = vunpack.c.l.b16 %v578
    %v788 = vunpack.c.h.b16 %v578
    %v789 = vunpack.c.l.b16 %v579
    %v790 = vunpack.c.h.b16 %v579
    %v791 = vunpack.c.l.b16 %v580
    %v792 = vunpack.c.h.b16 %v580
    %v793 = vunpack.c.l.b16 %v581
    %v794 = vunpack.c.h.b16 %v581
    %v795 = vunpack.c.l.b16 %v582
    %v796 = vunpack.c.h.b16 %v582
    %v797 = vunpack.c.l.b16 %v583
    %v798 = vunpack.c.h.b16 %v583
    %v799 = vunpack.c.l.b16 %v584
    %v800 = vunpack.c.h.b16 %v584
    %v801 = vpack.c.b16 %v677, %v673
    %v802 = vpack.c.b16 %v678, %v674
    %v803 = vpack.c.b16 %v679, %v675
    %v804 = vpack.c.b16 %v680, %v676
    %v805 = vpack.c.b16 %v685, %v681
    %v806 = vpack.c.b16 %v686, %v682
    %v807 = vpack.c.b16 %v687, %v683
    %v808 = vpack.c.b16 %v688, %v684
    %v809 = vpack.c.b16 %v693, %v689
    %v810 = vpack.c.b16 %v694, %v690
    %v811 = vpack.c.b16 %v695, %v691
    %v812 = vpack.c.b16 %v696, %v692
    %v813 = vpack.c.b16 %v701, %v697
    %v814 = vpack.c.b16 %v702, %v698
    %v815 = vpack.c.b16 %v703, %v699
    %v816 = vpack.c.b16 %v704, %v700
    %v817 = vpack.c.b16 %v709, %v705
    %v818 = vpack.c.b16 %v710, %v706
    %v819 = vpack.c.b16 %v711, %v707
    %v820 = vpack.c.b16 %v712, %v708
    %v821 = vpack.c.b16 %v717, %v713
    %v822 = vpack.c.b16 %v718, %v714
    %v823 = vpack.c.b16 %v719, %v715
    %v824 = vpack.c.b16 %v720, %v716
    %v825 = vpack.c.b16 %v725, %v721
    %v826 = vpack.c.b16 %v726, %v722
    %v827 = vpack.c.b16 %v727, %v723
    %v828 = vpack.c.b16 %v728, %v724
    %v829 = vpack.c.b16 %v733, %v729
    %v830 = vpack.c.b16 %v734, %v730
    %v831 = vpack.c.b16 %v735, %v731
    %v832 = vpack.c.b16 %v736, %v732
    %v833 = vpack.c.b16 %v741, %v737
    %v834 = vpack.c.b16 %v742, %v738
    %v835 = vpack.c.b16 %v743, %v739
    %v836 = vpack.c.b16 %v744, %v740
    %v837 = vpack.c.b16 %v749, %v745
    %v838 = vpack.c.b16 %v750, %v746
    %v839 = vpack.c.b16 %v751, %v747
    %v840 = vpack.c.b16 %v752, %v748
    %v841 = vpack.c.b16 %v757, %v753
    %v842 = vpack.c.b16 %v758, %v754
    %v843 = vpack.c.b16 %v759, %v755
    %v844 = vpack.c.b16 %v760, %v756
    %v845 = vpack.c.b16 %v765, %v761
    %v846 = vpack.c.b16 %v766, %v762
    %v847 = vpack.c.b16 %v767, %v763
    %v848 = vpack.c.b16 %v768, %v764
    %v849 = vpack.c.b16 %v773, %v769
    %v850 = vpack.c.b16 %v774, %v770
    %v851 = vpack.c.b16 %v775, %v771
    %v852 = vpack.c.b16 %v776, %v772
    %v853 = vpack.c.b16 %v781, %v777
    %v854 = vpack.c.b16 %v782, %v778
    %v855 = vpack.c.b16 %v783, %v779
    %v856 = vpack.c.b16 %v784, %v780
    %v857 = vpack.c.b16 %v789, %v785
    %v858 = vpack.c.b16 %v790, %v786
    %v859 = vpack.c.b16 %v791, %v787
    %v860 = vpack.c.b16 %v792, %v788
    %v861 = vpack.c.b16 %v797, %v793
    %v862 = vpack.c.b16 %v798, %v794
    %v863 = vpack.c.b16 %v799, %v795
    %v864 = vpack.c.b16 %v800, %v796
    %929 = vmatprep.subr.bf16.mxu0 %v802
    %930 = vmatpush1.bf16.msra.mxu0 %v801
    %931 = vmatprep.subr.bf16.mxu0 %v806
    %932 = vmatpush1.bf16.msra.mxu0 %v805
    %933 = vmatprep.subr.bf16.mxu0 %v810
    %934 = vmatpush1.bf16.msra.mxu0 %v809
    %935 = vmatprep.subr.bf16.mxu0 %v814
    %936 = vmatpush1.bf16.msra.mxu0 %v813
    %937 = vmatprep.subr.bf16.mxu0 %v818
    %938 = vmatpush1.bf16.msra.mxu0 %v817
    %939 = vmatprep.subr.bf16.mxu0 %v822
    %940 = vmatpush1.bf16.msra.mxu0 %v821
    %941 = vmatprep.subr.bf16.mxu0 %v826
    %942 = vmatpush1.bf16.msra.mxu0 %v825
    %943 = vmatprep.subr.bf16.mxu0 %v830
    %944 = vmatpush1.bf16.msra.mxu0 %v829
    %945 = vmatprep.subr.bf16.mxu0 %v834
    %946 = vmatpush1.bf16.msra.mxu0 %v833
    %947 = vmatprep.subr.bf16.mxu0 %v838
    %948 = vmatpush1.bf16.msra.mxu0 %v837
    %949 = vmatprep.subr.bf16.mxu0 %v842
    %950 = vmatpush1.bf16.msra.mxu0 %v841
    %951 = vmatprep.subr.bf16.mxu0 %v846
    %952 = vmatpush1.bf16.msra.mxu0 %v845
    %953 = vmatprep.subr.bf16.mxu0 %v850
    %954 = vmatpush1.bf16.msra.mxu0 %v849
    %955 = vmatprep.subr.bf16.mxu0 %v854
    %956 = vmatpush1.bf16.msra.mxu0 %v853
    %957 = vmatprep.subr.bf16.mxu0 %v858
    %958 = vmatpush1.bf16.msra.mxu0 %v857
    %959 = vmatprep.subr.bf16.mxu0 %v862
    %960 = vmatpush1.bf16.msra.mxu0 %v861
    %961 = vmatprep.mubr.bf16.mxu0 %v587
    %962 = vmatmul.mubr.bf16.gmra.mrb[0].mxu0 %v586
    %v963 = vpop.f32.mrb[0].mxu0
    %v964 = vadd.f32 %v592, %v963
    %v965 = vpop.f32.mrb[0].mxu0
    %v966 = vadd.f32 %v596, %v965
    %v967 = vpop.f32.mrb[0].mxu0
    %v968 = vpop.f32.mrb[0].mxu0
    %969 = vdwg.mxu0
    %970 = vmatprep.subr.bf16.mxu0 %v804
    %971 = vmatpush1.bf16.msra.mxu0 %v803
    %972 = vmatprep.subr.bf16.mxu0 %v808
    %973 = vmatpush1.bf16.msra.mxu0 %v807
    %974 = vmatprep.subr.bf16.mxu0 %v812
    %975 = vmatpush1.bf16.msra.mxu0 %v811
    %976 = vmatprep.subr.bf16.mxu0 %v816
    %977 = vmatpush1.bf16.msra.mxu0 %v815
    %978 = vmatprep.subr.bf16.mxu0 %v820
    %979 = vmatpush1.bf16.msra.mxu0 %v819
    %980 = vmatprep.subr.bf16.mxu0 %v824
    %981 = vmatpush1.bf16.msra.mxu0 %v823
    %982 = vmatprep.subr.bf16.mxu0 %v828
    %983 = vmatpush1.bf16.msra.mxu0 %v827
    %984 = vmatprep.subr.bf16.mxu0 %v832
    %985 = vmatpush1.bf16.msra.mxu0 %v831
    %986 = vmatprep.subr.bf16.mxu0 %v836
    %987 = vmatpush1.bf16.msra.mxu0 %v835
    %988 = vmatprep.subr.bf16.mxu0 %v840
    %989 = vmatpush1.bf16.msra.mxu0 %v839
    %990 = vmatprep.subr.bf16.mxu0 %v844
    %991 = vmatpush1.bf16.msra.mxu0 %v843
    %992 = vmatprep.subr.bf16.mxu0 %v848
    %993 = vmatpush1.bf16.msra.mxu0 %v847
    %994 = vmatprep.subr.bf16.mxu0 %v852
    %995 = vmatpush1.bf16.msra.mxu0 %v851
    %996 = vmatprep.subr.bf16.mxu0 %v856
    %997 = vmatpush1.bf16.msra.mxu0 %v855
    %998 = vmatprep.subr.bf16.mxu0 %v860
    %999 = vmatpush1.bf16.msra.mxu0 %v859
    %1000 = vmatprep.subr.bf16.mxu0 %v864
    %1001 = vmatpush1.bf16.msra.mxu0 %v863
    %1002 = vmatprep.mubr.bf16.mxu0 %v587
    %1003 = vmatmul.mubr.bf16.gmra.mrb[0].mxu0 %v586
    %v1004 = vpop.f32.mrb[0].mxu0
    %v1005 = vadd.f32 %v600, %v1004
    %v1006 = vpop.f32.mrb[0].mxu0
    %v1007 = vadd.f32 %v604, %v1006
    %v1008 = vpop.f32.mrb[0].mxu0
    %v1009 = vpop.f32.mrb[0].mxu0
    %1010 = vdwg.mxu0
    %v1011 = vmax.f32 %v964, 0.0
    %v1012 = vmax.f32 %v966, 0.0
    %v1013 = vxor.u32 %v1005, 2147483648
    %v1014 = vxor.u32 %v1007, 2147483648
    %v1015 = vmul.f32 %v1013, 1.442695
    %v1016 = vpow.pop %v1015
    %v1017 = vmul.f32 %v1014, 1.442695
    %v1018 = vpow.pop %v1017
    %v1019 = vadd.f32 %v1016, 1.0
    %v1020 = vadd.f32 %v1018, 1.0
    %v1021 = vrcp.pop %v1019
    %v1022 = vmul.f32 1.0, %v1021
    %v1023 = vrcp.pop %v1020
    %v1024 = vmul.f32 1.0, %v1023
    %v1025 = vmul.f32 %v1022, %v481
    %v1026 = vmul.f32 %v1024, %v486
    %v1027 = vsub.f32 1.0, %v1022
    %v1028 = vsub.f32 1.0, %v1024
    %v1029 = vmul.f32 %v1027, %v1011
    %v1030 = vmul.f32 %v1028, %v1012
    %v1031 = vadd.f32 %v1025, %v1029
    %v1032 = vadd.f32 %v1026, %v1030
    %v1033 = vpack.c.bf16 %v1031, %v1031
    %v1034 = vpack.c.bf16 %v1032, %v1032
    %v1036 = vlaneseq
    %v1037 = vshrl.u32 %v1036, 7
    %v1038 = vsub.s32 0, %v1037
    %v1039 = vrot.slane %v520, %v1038
    %v1073 = vunpack.c.l.b16 %v488
    %v1074 = vunpack.c.l.b16 %v489
    %v1075 = vunpack.c.l.b16 %v490
    %v1076 = vunpack.c.l.b16 %v491
    %v1077 = vunpack.c.l.b16 %v492
    %v1078 = vunpack.c.l.b16 %v493
    %v1079 = vunpack.c.l.b16 %v494
    %v1080 = vunpack.c.l.b16 %v495
    %v1081 = vunpack.c.l.b16 %v496
    %v1082 = vunpack.c.l.b16 %v497
    %v1083 = vunpack.c.l.b16 %v498
    %v1084 = vunpack.c.l.b16 %v499
    %v1085 = vunpack.c.l.b16 %v500
    %v1086 = vunpack.c.l.b16 %v501
    %v1087 = vunpack.c.l.b16 %v502
    %v1088 = vunpack.c.l.b16 %v503
    %v1089 = vunpack.c.l.b16 %v504
    %v1090 = vunpack.c.l.b16 %v505
    %v1091 = vunpack.c.l.b16 %v506
    %v1092 = vunpack.c.l.b16 %v507
    %v1093 = vunpack.c.l.b16 %v508
    %v1094 = vunpack.c.l.b16 %v509
    %v1095 = vunpack.c.l.b16 %v510
    %v1096 = vunpack.c.l.b16 %v511
    %v1097 = vunpack.c.l.b16 %v512
    %v1098 = vunpack.c.l.b16 %v513
    %v1099 = vunpack.c.l.b16 %v514
    %v1100 = vunpack.c.l.b16 %v515
    %v1101 = vunpack.c.l.b16 %v516
    %v1102 = vunpack.c.l.b16 %v517
    %v1103 = vunpack.c.l.b16 %v518
    %v1104 = vunpack.c.l.b16 %v519
    %v1105 = vpack.c.b16 %v1074, %v1073
    %v1106 = vpack.c.b16 %v1076, %v1075
    %v1107 = vpack.c.b16 %v1078, %v1077
    %v1108 = vpack.c.b16 %v1080, %v1079
    %v1109 = vpack.c.b16 %v1082, %v1081
    %v1110 = vpack.c.b16 %v1084, %v1083
    %v1111 = vpack.c.b16 %v1086, %v1085
    %v1112 = vpack.c.b16 %v1088, %v1087
    %v1113 = vpack.c.b16 %v1090, %v1089
    %v1114 = vpack.c.b16 %v1092, %v1091
    %v1115 = vpack.c.b16 %v1094, %v1093
    %v1116 = vpack.c.b16 %v1096, %v1095
    %v1117 = vpack.c.b16 %v1098, %v1097
    %v1118 = vpack.c.b16 %v1100, %v1099
    %v1119 = vpack.c.b16 %v1102, %v1101
    %v1120 = vpack.c.b16 %v1104, %v1103
    %1137 = vmatprep.subr.bf16.mxu0 0
    %1138 = vmatpush1.bf16.msra.mxu0 %v1105
    %1139 = vmatprep.subr.bf16.mxu0 0
    %1140 = vmatpush1.bf16.msra.mxu0 %v1106
    %1141 = vmatprep.subr.bf16.mxu0 0
    %1142 = vmatpush1.bf16.msra.mxu0 %v1107
    %1143 = vmatprep.subr.bf16.mxu0 0
    %1144 = vmatpush1.bf16.msra.mxu0 %v1108
    %1145 = vmatprep.subr.bf16.mxu0 0
    %1146 = vmatpush1.bf16.msra.mxu0 %v1109
    %1147 = vmatprep.subr.bf16.mxu0 0
    %1148 = vmatpush1.bf16.msra.mxu0 %v1110
    %1149 = vmatprep.subr.bf16.mxu0 0
    %1150 = vmatpush1.bf16.msra.mxu0 %v1111
    %1151 = vmatprep.subr.bf16.mxu0 0
    %1152 = vmatpush1.bf16.msra.mxu0 %v1112
    %1153 = vmatprep.subr.bf16.mxu0 0
    %1154 = vmatpush1.bf16.msra.mxu0 %v1113
    %1155 = vmatprep.subr.bf16.mxu0 0
    %1156 = vmatpush1.bf16.msra.mxu0 %v1114
    %1157 = vmatprep.subr.bf16.mxu0 0
    %1158 = vmatpush1.bf16.msra.mxu0 %v1115
    %1159 = vmatprep.subr.bf16.mxu0 0
    %1160 = vmatpush1.bf16.msra.mxu0 %v1116
    %1161 = vmatprep.subr.bf16.mxu0 0
    %1162 = vmatpush1.bf16.msra.mxu0 %v1117
    %1163 = vmatprep.subr.bf16.mxu0 0
    %1164 = vmatpush1.bf16.msra.mxu0 %v1118
    %1165 = vmatprep.subr.bf16.mxu0 0
    %1166 = vmatpush1.bf16.msra.mxu0 %v1119
    %1167 = vmatprep.subr.bf16.mxu0 0
    %1168 = vmatpush1.bf16.msra.mxu0 %v1120
    %1169 = vmatprep.mubr.bf16.mxu0 %v1034
    %1170 = vmatmul.mubr.bf16.gmra.mrb[0].mxu0 %v1033
    %v1171 = vpop.f32.mrb[0].mxu0
    %v1172 = vadd.f32 %v1039, %v1171
    %v1173 = vpop.f32.mrb[0].mxu0
    %v1174 = vpop.f32.mrb[0].mxu0
    %v1175 = vpop.f32.mrb[0].mxu0
    %1176 = vdwg.mxu0
    %1177 = vst [vmem:[#allocation11] sm:$0x3] %v1172
    // Predicated region
    $region58: #{tpu_custom_call.1} parent=1 // pred_check
      _
    $region59: #{tpu_custom_call.1} parent=1 // pred_check_branch
      %1179 = sbr.rel (0) target = $region61
    $region60: #{tpu_custom_call.1} parent=1 // pred_region
      %s1181 = ssub.s32 32, 32
      %1182 = vsyncadd [#allocation4], %s1181
      %s1184 = sshll.u32 [#allocation11], 4
      %s1185 = int_to_ptr.vmem [resolvable:$true] %s1184
      %1187 = dma.vmem_to_hbm [thread:$0]  %s1185, 32, %s9, [#allocation4]
    $region61: #{tpu_custom_call.1} parent=1 // pred_fallthru
      _
    // Predicated region
    $region62: #{tpu_custom_call.1} parent=1 // pred_check
      _
    $region63: #{tpu_custom_call.1} parent=1 // pred_check_branch
      %1189 = sbr.rel (0) target = $region65
    $region64: #{tpu_custom_call.1} parent=1 // pred_region
      %1190 = dma.done [#allocation4], 32
    $region65: #{tpu_custom_call.1} parent=1 // pred_fallthru
      _
    %1191 = vsyncpa [#allocation3], 1
    %1192 = vsyncpa [#allocation6], 1
    %1193 = vsyncpa [#allocation9], 1
    %1194 = vsyncpa [#allocation4], 1

</llo_original>
